<compile_context>
chip_gen: v5e
topology: v5e:2x2
jax: 0.10.0
libtpu: 0.0.40
codegen_flags: <defaults>
</compile_context>

<pallas_src>
import jax
import jax.numpy as jnp
from jax.experimental import pallas as pl
from jax.experimental.pallas import tpu as pltpu


# ----------------------------------------------------------------------------
# Kernel
# ----------------------------------------------------------------------------
def lstm_kernel(x_ref, wih0_ref, whh0_ref, b0_ref, w1_ref, b1_ref,
                wfc_ref, bfc_ref, out_ref):
    TB = x_ref.shape[0]                 # T * B (time-major, flattened)
    Hp = whh0_ref.shape[0]              # padded hidden size (multiple of 128)
    B = out_ref.shape[0]
    T = TB // B
    f32 = jnp.float32

    # Hoisted: layer-0 input projection for ALL time steps in one MXU matmul,
    # with the combined layer-0 bias (b_ih + b_hh) folded in.
    xproj = (jnp.dot(x_ref[...], wih0_ref[...], preferred_element_type=f32)
             + b0_ref[...])                                       # (T*B, 4Hp)

    whh0 = whh0_ref[...]                                          # (Hp, 4Hp)
    w1 = w1_ref[...]                                              # (2Hp, 4Hp)
    b1 = jnp.broadcast_to(b1_ref[...], (B, 4 * Hp))               # hoisted bcast

    def activate(gates):                 # PyTorch gate order: i, f, g, o
        i = jax.nn.sigmoid(gates[:, 0 * Hp:1 * Hp])
        f = jax.nn.sigmoid(gates[:, 1 * Hp:2 * Hp])
        g = jnp.tanh(gates[:, 2 * Hp:3 * Hp])
        o = jax.nn.sigmoid(gates[:, 3 * Hp:4 * Hp])
        return i, f, g, o

    zeros = jnp.zeros((B, Hp), f32)
    h0, c0, h1, c1 = zeros, zeros, zeros, zeros

    # Static unroll over time: gives the scheduler cross-step visibility so
    # EUP gate activations overlap the next step's MXU work.
    for t in range(T):
        # --- layer 0: only the recurrent matmul is left on the serial path ---
        g0 = xproj[t * B:(t + 1) * B, :] + jnp.dot(
            h0, whh0, preferred_element_type=f32)
        i0, f0, gg0, o0 = activate(g0)
        c0 = f0 * c0 + i0 * gg0
        h0 = o0 * jnp.tanh(c0)

        # --- layer 1: one fused matmul of [h0, h1] against [W_ih_l1; W_hh_l1] ---
        hh = jnp.concatenate([h0, h1], axis=1)                    # (B, 2Hp)
        g1 = jnp.dot(hh, w1, preferred_element_type=f32) + b1
        i1, f1, gg1, o1 = activate(g1)
        c1 = f1 * c1 + i1 * gg1
        h1 = o1 * jnp.tanh(c1)

    # fc on the last step's top-layer hidden state (output padded to 128 lanes)
    out_ref[...] = (jnp.dot(h1, wfc_ref[...], preferred_element_type=f32)
                    + bfc_ref[...])


# ----------------------------------------------------------------------------
# Wrapper: pad / transpose weights, launch kernel
# ----------------------------------------------------------------------------
def _round_up(v, m):
    return ((v + m - 1) // m) * m


def _pad_gates(w, H, Hp, pad_in_to=None):
    """(4H, in) -> (4Hp, in_padded): zero-pad each gate block's rows H->Hp."""
    din = w.shape[1]
    w = w.reshape(4, H, din)
    w = jnp.pad(w, ((0, 0), (0, Hp - H), (0, 0)))
    w = w.reshape(4 * Hp, din)
    if pad_in_to is not None and pad_in_to != din:
        w = jnp.pad(w, ((0, 0), (0, pad_in_to - din)))
    return w.astype(jnp.float32)


def _pad_gate_bias(b, H, Hp):
    b = b.reshape(4, H)
    b = jnp.pad(b, ((0, 0), (0, Hp - H)))
    return b.reshape(1, 4 * Hp).astype(jnp.float32)


def lstm_forward(x, params):
    """x: (B, T, D) float32 (batch_first, like PyTorch)."""
    B, T, D = x.shape
    H = params["whh0"].shape[1]        # weight_hh_l0: (4H, H)
    C = params["wfc"].shape[0]         # fc weight: (C, H)
    Hp = _round_up(H, 128)             # lane-align each gate block
    Cp = _round_up(C, 128)             # lane-dense output store

    # time-major, flattened to (T*B, D) so the layer-0 input projection is a
    # single MXU matmul inside the kernel.
    x2d = jnp.transpose(x, (1, 0, 2)).reshape(T * B, D).astype(jnp.float32)

    # NOTE: weights stay f32 for v5e portability + tight tolerance; casting
    # wih*/whh*/wfc (and x) to bf16 here is the v6e/v7x DMA/MXU-rate option.
    wih0 = _pad_gates(params["wih0"], H, Hp).T                    # (D, 4Hp)
    whh0 = _pad_gates(params["whh0"], H, Hp, pad_in_to=Hp).T      # (Hp, 4Hp)
    b0 = _pad_gate_bias(params["bih0"] + params["bhh0"], H, Hp)   # (1, 4Hp)
    wih1 = _pad_gates(params["wih1"], H, Hp, pad_in_to=Hp).T      # (Hp, 4Hp)
    whh1 = _pad_gates(params["whh1"], H, Hp, pad_in_to=Hp).T      # (Hp, 4Hp)
    w1 = jnp.concatenate([wih1, whh1], axis=0)                    # (2Hp, 4Hp)
    b1 = _pad_gate_bias(params["bih1"] + params["bhh1"], H, Hp)   # (1, 4Hp)
    wfc = jnp.pad(params["wfc"].astype(jnp.float32),
                  ((0, Cp - C), (0, Hp - H))).T                   # (Hp, Cp)
    bfc = jnp.pad(params["bfc"].astype(jnp.float32),
                  (0, Cp - C)).reshape(1, Cp)                     # (1, Cp)

    # Everything is tiny: keep all operands fully resident in VMEM, no grid.
    # TODO(synk): for long T / large B, stream x over a time-grid axis
    # ("arbitrary", h/c carried in VMEM scratch) and split the batch across
    # TensorCores on v7x; unnecessary at these shapes.
    vmem = pl.BlockSpec(memory_space=pltpu.MemorySpace.VMEM)
    out_p = pl.pallas_call(
        lstm_kernel,
        out_shape=jax.ShapeDtypeStruct((B, Cp), jnp.float32),
        in_specs=[vmem] * 8,
        out_specs=vmem,
    )(x2d, wih0, whh0, b0, w1, b1, wfc, bfc)
    return out_p[:, :C]


# ----------------------------------------------------------------------------
# Pure-JAX reference (matches torch.nn.LSTM(batch_first=True) + Linear)
# ----------------------------------------------------------------------------
def lstm_reference(x, params):
    B, T, D = x.shape
    H = params["whh0"].shape[1]

    def cell(xt, h, c, wih, whh, bih, bhh):
        gates = xt @ wih.T + bih + h @ whh.T + bhh
        i = jax.nn.sigmoid(gates[:, 0 * H:1 * H])
        f = jax.nn.sigmoid(gates[:, 1 * H:2 * H])
        g = jnp.tanh(gates[:, 2 * H:3 * H])
        o = jax.nn.sigmoid(gates[:, 3 * H:4 * H])
        c_new = f * c + i * g
        return o * jnp.tanh(c_new), c_new

    h0 = c0 = h1 = c1 = jnp.zeros((B, H), jnp.float32)
    for t in range(T):
        h0, c0 = cell(x[:, t, :], h0, c0, params["wih0"], params["whh0"],
                      params["bih0"], params["bhh0"])
        h1, c1 = cell(h0, h1, c1, params["wih1"], params["whh1"],
                      params["bih1"], params["bhh1"])
    return h1 @ params["wfc"].T + params["bfc"]


def init_params(key, input_size, hidden_size, num_classes):
    """Deterministic init mimicking PyTorch's U(-1/sqrt(H), 1/sqrt(H))."""
    H, D, C = hidden_size, input_size, num_classes
    s = 1.0 / jnp.sqrt(jnp.float32(H))
    ks = jax.random.split(key, 10)
    u = lambda k, shape: jax.random.uniform(k, shape, jnp.float32, -s, s)
    return {
        "wih0": u(ks[0], (4 * H, D)),  "whh0": u(ks[1], (4 * H, H)),
        "bih0": u(ks[2], (4 * H,)),    "bhh0": u(ks[3], (4 * H,)),
        "wih1": u(ks[4], (4 * H, H)),  "whh1": u(ks[5], (4 * H, H)),
        "bih1": u(ks[6], (4 * H,)),    "bhh1": u(ks[7], (4 * H,)),
        "wfc":  u(ks[8], (C, H)),      "bfc":  u(ks[9], (C,)),
    }


if __name__ == "__main__":
    # small shapes consistent with the module (num_layers=2 is baked into the kernel)
    B, T = 8, 8
    input_size, hidden_size, num_classes = 16, 32, 8

    key = jax.random.PRNGKey(0)
    kx, kp = jax.random.split(key)
    x = jax.random.normal(kx, (B, T, input_size), jnp.float32)
    params = init_params(kp, input_size, hidden_size, num_classes)

    out = lstm_forward(x, params)
    out = jax.block_until_ready(out)

    ref = lstm_reference(x, params)
    assert out.shape == (B, num_classes)
    assert jnp.allclose(out, ref, atol=1e-4, rtol=1e-4), "mismatch vs reference"
    print("KERNEL_OK")
</pallas_src>

<mosaic_0001>
module attributes {stable_mosaic.version = 11 : i64} {
  func.func @lstm_kernel(%arg0: memref<64x16xf32, #tpu.memory_space<vmem>>, %arg1: memref<16x512xf32, #tpu.memory_space<vmem>>, %arg2: memref<128x512xf32, #tpu.memory_space<vmem>>, %arg3: memref<1x512xf32, #tpu.memory_space<vmem>>, %arg4: memref<256x512xf32, #tpu.memory_space<vmem>>, %arg5: memref<1x512xf32, #tpu.memory_space<vmem>>, %arg6: memref<128x128xf32, #tpu.memory_space<vmem>>, %arg7: memref<1x128xf32, #tpu.memory_space<vmem>>, %arg8: memref<8x128xf32, #tpu.memory_space<vmem>>) attributes {dimension_semantics = [], scalar_prefetch = 0 : i64, scratch_operands = 0 : i64, tpu.core_type = #tpu.core_type<tc>} {
    %c0 = arith.constant 0 : index
    %c0_0 = arith.constant 0 : index
    %0 = vector.load %arg0[%c0, %c0_0] : memref<64x16xf32, #tpu.memory_space<vmem>>, vector<64x16xf32>
    %c0_1 = arith.constant 0 : index
    %c0_2 = arith.constant 0 : index
    %1 = vector.load %arg1[%c0_1, %c0_2] : memref<16x512xf32, #tpu.memory_space<vmem>>, vector<16x512xf32>
    %cst = arith.constant dense<0.000000e+00> : vector<64x512xf32>
    %2 = tpu.matmul %0, %1, %cst {dimension_numbers = #tpu.dot_dimension_numbers<[1], [0], [0], [1], [0, 0, 1, 1], [], []>} : vector<64x16xf32>, vector<16x512xf32>, vector<64x512xf32> -> vector<64x512xf32>
    %c0_3 = arith.constant 0 : index
    %c0_4 = arith.constant 0 : index
    %3 = vector.load %arg3[%c0_3, %c0_4] : memref<1x512xf32, #tpu.memory_space<vmem>>, vector<1x512xf32>
    %4 = vector.broadcast %3 : vector<1x512xf32> to vector<64x512xf32>
    %5 = arith.addf %2, %4 : vector<64x512xf32>
    %c0_5 = arith.constant 0 : index
    %c0_6 = arith.constant 0 : index
    %6 = vector.load %arg2[%c0_5, %c0_6] : memref<128x512xf32, #tpu.memory_space<vmem>>, vector<128x512xf32>
    %c0_7 = arith.constant 0 : index
    %c0_8 = arith.constant 0 : index
    %7 = vector.load %arg4[%c0_7, %c0_8] : memref<256x512xf32, #tpu.memory_space<vmem>>, vector<256x512xf32>
    %c0_9 = arith.constant 0 : index
    %c0_10 = arith.constant 0 : index
    %8 = vector.load %arg5[%c0_9, %c0_10] : memref<1x512xf32, #tpu.memory_space<vmem>>, vector<1x512xf32>
    %9 = vector.shape_cast %8 : vector<1x512xf32> to vector<1x512xf32>
    %10 = vector.broadcast %9 : vector<1x512xf32> to vector<8x512xf32>
    %cst_11 = arith.constant 0.000000e+00 : f32
    %11 = vector.broadcast %cst_11 : f32 to vector<8x128xf32>
    %12 = vector.extract_strided_slice %5 {offsets = [0, 0], sizes = [8, 512], strides = [1, 1]} : vector<64x512xf32> to vector<8x512xf32>
    %cst_12 = arith.constant dense<0.000000e+00> : vector<8x512xf32>
    %13 = tpu.matmul %11, %6, %cst_12 {dimension_numbers = #tpu.dot_dimension_numbers<[1], [0], [0], [1], [0, 0, 1, 1], [], []>} : vector<8x128xf32>, vector<128x512xf32>, vector<8x512xf32> -> vector<8x512xf32>
    %14 = arith.addf %12, %13 : vector<8x512xf32>
    %15 = vector.extract_strided_slice %14 {offsets = [0, 0], sizes = [8, 128], strides = [1, 1]} : vector<8x512xf32> to vector<8x128xf32>
    %16 = arith.negf %15 : vector<8x128xf32>
    %17 = math.exp %16 : vector<8x128xf32>
    %cst_13 = arith.constant 1.000000e+00 : f32
    %18 = vector.broadcast %cst_13 : f32 to vector<8x128xf32>
    %19 = arith.addf %18, %17 : vector<8x128xf32>
    %20 = arith.divf %18, %19 : vector<8x128xf32>
    %21 = vector.extract_strided_slice %14 {offsets = [0, 128], sizes = [8, 128], strides = [1, 1]} : vector<8x512xf32> to vector<8x128xf32>
    %22 = arith.negf %21 : vector<8x128xf32>
    %23 = math.exp %22 : vector<8x128xf32>
    %cst_14 = arith.constant 1.000000e+00 : f32
    %24 = vector.broadcast %cst_14 : f32 to vector<8x128xf32>
    %25 = arith.addf %24, %23 : vector<8x128xf32>
    %26 = arith.divf %24, %25 : vector<8x128xf32>
    %27 = vector.extract_strided_slice %14 {offsets = [0, 256], sizes = [8, 128], strides = [1, 1]} : vector<8x512xf32> to vector<8x128xf32>
    %28 = math.tanh %27 : vector<8x128xf32>
    %29 = vector.extract_strided_slice %14 {offsets = [0, 384], sizes = [8, 128], strides = [1, 1]} : vector<8x512xf32> to vector<8x128xf32>
    %30 = arith.negf %29 : vector<8x128xf32>
    %31 = math.exp %30 : vector<8x128xf32>
    %cst_15 = arith.constant 1.000000e+00 : f32
    %32 = vector.broadcast %cst_15 : f32 to vector<8x128xf32>
    %33 = arith.addf %32, %31 : vector<8x128xf32>
    %34 = arith.divf %32, %33 : vector<8x128xf32>
    %35 = arith.mulf %26, %11 : vector<8x128xf32>
    %36 = arith.mulf %20, %28 : vector<8x128xf32>
    %37 = arith.addf %35, %36 : vector<8x128xf32>
    %38 = math.tanh %37 : vector<8x128xf32>
    %39 = arith.mulf %34, %38 : vector<8x128xf32>
    %40 = tpu.concatenate %39, %11 in 1 : vector<8x128xf32>, vector<8x128xf32> -> vector<8x256xf32>
    %cst_16 = arith.constant dense<0.000000e+00> : vector<8x512xf32>
    %41 = tpu.matmul %40, %7, %cst_16 {dimension_numbers = #tpu.dot_dimension_numbers<[1], [0], [0], [1], [0, 0, 1, 1], [], []>} : vector<8x256xf32>, vector<256x512xf32>, vector<8x512xf32> -> vector<8x512xf32>
    %42 = arith.addf %41, %10 : vector<8x512xf32>
    %43 = vector.extract_strided_slice %42 {offsets = [0, 0], sizes = [8, 128], strides = [1, 1]} : vector<8x512xf32> to vector<8x128xf32>
    %44 = arith.negf %43 : vector<8x128xf32>
    %45 = math.exp %44 : vector<8x128xf32>
    %cst_17 = arith.constant 1.000000e+00 : f32
    %46 = vector.broadcast %cst_17 : f32 to vector<8x128xf32>
    %47 = arith.addf %46, %45 : vector<8x128xf32>
    %48 = arith.divf %46, %47 : vector<8x128xf32>
    %49 = vector.extract_strided_slice %42 {offsets = [0, 128], sizes = [8, 128], strides = [1, 1]} : vector<8x512xf32> to vector<8x128xf32>
    %50 = arith.negf %49 : vector<8x128xf32>
    %51 = math.exp %50 : vector<8x128xf32>
    %cst_18 = arith.constant 1.000000e+00 : f32
    %52 = vector.broadcast %cst_18 : f32 to vector<8x128xf32>
    %53 = arith.addf %52, %51 : vector<8x128xf32>
    %54 = arith.divf %52, %53 : vector<8x128xf32>
    %55 = vector.extract_strided_slice %42 {offsets = [0, 256], sizes = [8, 128], strides = [1, 1]} : vector<8x512xf32> to vector<8x128xf32>
    %56 = math.tanh %55 : vector<8x128xf32>
    %57 = vector.extract_strided_slice %42 {offsets = [0, 384], sizes = [8, 128], strides = [1, 1]} : vector<8x512xf32> to vector<8x128xf32>
    %58 = arith.negf %57 : vector<8x128xf32>
    %59 = math.exp %58 : vector<8x128xf32>
    %cst_19 = arith.constant 1.000000e+00 : f32
    %60 = vector.broadcast %cst_19 : f32 to vector<8x128xf32>
    %61 = arith.addf %60, %59 : vector<8x128xf32>
    %62 = arith.divf %60, %61 : vector<8x128xf32>
    %63 = arith.mulf %54, %11 : vector<8x128xf32>
    %64 = arith.mulf %48, %56 : vector<8x128xf32>
    %65 = arith.addf %63, %64 : vector<8x128xf32>
    %66 = math.tanh %65 : vector<8x128xf32>
    %67 = arith.mulf %62, %66 : vector<8x128xf32>
    %68 = vector.extract_strided_slice %5 {offsets = [8, 0], sizes = [8, 512], strides = [1, 1]} : vector<64x512xf32> to vector<8x512xf32>
    %cst_20 = arith.constant dense<0.000000e+00> : vector<8x512xf32>
    %69 = tpu.matmul %39, %6, %cst_20 {dimension_numbers = #tpu.dot_dimension_numbers<[1], [0], [0], [1], [0, 0, 1, 1], [], []>} : vector<8x128xf32>, vector<128x512xf32>, vector<8x512xf32> -> vector<8x512xf32>
    %70 = arith.addf %68, %69 : vector<8x512xf32>
    %71 = vector.extract_strided_slice %70 {offsets = [0, 0], sizes = [8, 128], strides = [1, 1]} : vector<8x512xf32> to vector<8x128xf32>
    %72 = arith.negf %71 : vector<8x128xf32>
    %73 = math.exp %72 : vector<8x128xf32>
    %cst_21 = arith.constant 1.000000e+00 : f32
    %74 = vector.broadcast %cst_21 : f32 to vector<8x128xf32>
    %75 = arith.addf %74, %73 : vector<8x128xf32>
    %76 = arith.divf %74, %75 : vector<8x128xf32>
    %77 = vector.extract_strided_slice %70 {offsets = [0, 128], sizes = [8, 128], strides = [1, 1]} : vector<8x512xf32> to vector<8x128xf32>
    %78 = arith.negf %77 : vector<8x128xf32>
    %79 = math.exp %78 : vector<8x128xf32>
    %cst_22 = arith.constant 1.000000e+00 : f32
    %80 = vector.broadcast %cst_22 : f32 to vector<8x128xf32>
    %81 = arith.addf %80, %79 : vector<8x128xf32>
    %82 = arith.divf %80, %81 : vector<8x128xf32>
    %83 = vector.extract_strided_slice %70 {offsets = [0, 256], sizes = [8, 128], strides = [1, 1]} : vector<8x512xf32> to vector<8x128xf32>
    %84 = math.tanh %83 : vector<8x128xf32>
    %85 = vector.extract_strided_slice %70 {offsets = [0, 384], sizes = [8, 128], strides = [1, 1]} : vector<8x512xf32> to vector<8x128xf32>
    %86 = arith.negf %85 : vector<8x128xf32>
    %87 = math.exp %86 : vector<8x128xf32>
    %cst_23 = arith.constant 1.000000e+00 : f32
    %88 = vector.broadcast %cst_23 : f32 to vector<8x128xf32>
    %89 = arith.addf %88, %87 : vector<8x128xf32>
    %90 = arith.divf %88, %89 : vector<8x128xf32>
    %91 = arith.mulf %82, %37 : vector<8x128xf32>
    %92 = arith.mulf %76, %84 : vector<8x128xf32>
    %93 = arith.addf %91, %92 : vector<8x128xf32>
    %94 = math.tanh %93 : vector<8x128xf32>
    %95 = arith.mulf %90, %94 : vector<8x128xf32>
    %96 = tpu.concatenate %95, %67 in 1 : vector<8x128xf32>, vector<8x128xf32> -> vector<8x256xf32>
    %cst_24 = arith.constant dense<0.000000e+00> : vector<8x512xf32>
    %97 = tpu.matmul %96, %7, %cst_24 {dimension_numbers = #tpu.dot_dimension_numbers<[1], [0], [0], [1], [0, 0, 1, 1], [], []>} : vector<8x256xf32>, vector<256x512xf32>, vector<8x512xf32> -> vector<8x512xf32>
    %98 = arith.addf %97, %10 : vector<8x512xf32>
    %99 = vector.extract_strided_slice %98 {offsets = [0, 0], sizes = [8, 128], strides = [1, 1]} : vector<8x512xf32> to vector<8x128xf32>
    %100 = arith.negf %99 : vector<8x128xf32>
    %101 = math.exp %100 : vector<8x128xf32>
    %cst_25 = arith.constant 1.000000e+00 : f32
    %102 = vector.broadcast %cst_25 : f32 to vector<8x128xf32>
    %103 = arith.addf %102, %101 : vector<8x128xf32>
    %104 = arith.divf %102, %103 : vector<8x128xf32>
    %105 = vector.extract_strided_slice %98 {offsets = [0, 128], sizes = [8, 128], strides = [1, 1]} : vector<8x512xf32> to vector<8x128xf32>
    %106 = arith.negf %105 : vector<8x128xf32>
    %107 = math.exp %106 : vector<8x128xf32>
    %cst_26 = arith.constant 1.000000e+00 : f32
    %108 = vector.broadcast %cst_26 : f32 to vector<8x128xf32>
    %109 = arith.addf %108, %107 : vector<8x128xf32>
    %110 = arith.divf %108, %109 : vector<8x128xf32>
    %111 = vector.extract_strided_slice %98 {offsets = [0, 256], sizes = [8, 128], strides = [1, 1]} : vector<8x512xf32> to vector<8x128xf32>
    %112 = math.tanh %111 : vector<8x128xf32>
    %113 = vector.extract_strided_slice %98 {offsets = [0, 384], sizes = [8, 128], strides = [1, 1]} : vector<8x512xf32> to vector<8x128xf32>
    %114 = arith.negf %113 : vector<8x128xf32>
    %115 = math.exp %114 : vector<8x128xf32>
    %cst_27 = arith.constant 1.000000e+00 : f32
    %116 = vector.broadcast %cst_27 : f32 to vector<8x128xf32>
    %117 = arith.addf %116, %115 : vector<8x128xf32>
    %118 = arith.divf %116, %117 : vector<8x128xf32>
    %119 = arith.mulf %110, %65 : vector<8x128xf32>
    %120 = arith.mulf %104, %112 : vector<8x128xf32>
    %121 = arith.addf %119, %120 : vector<8x128xf32>
    %122 = math.tanh %121 : vector<8x128xf32>
    %123 = arith.mulf %118, %122 : vector<8x128xf32>
    %124 = vector.extract_strided_slice %5 {offsets = [16, 0], sizes = [8, 512], strides = [1, 1]} : vector<64x512xf32> to vector<8x512xf32>
    %cst_28 = arith.constant dense<0.000000e+00> : vector<8x512xf32>
    %125 = tpu.matmul %95, %6, %cst_28 {dimension_numbers = #tpu.dot_dimension_numbers<[1], [0], [0], [1], [0, 0, 1, 1], [], []>} : vector<8x128xf32>, vector<128x512xf32>, vector<8x512xf32> -> vector<8x512xf32>
    %126 = arith.addf %124, %125 : vector<8x512xf32>
    %127 = vector.extract_strided_slice %126 {offsets = [0, 0], sizes = [8, 128], strides = [1, 1]} : vector<8x512xf32> to vector<8x128xf32>
    %128 = arith.negf %127 : vector<8x128xf32>
    %129 = math.exp %128 : vector<8x128xf32>
    %cst_29 = arith.constant 1.000000e+00 : f32
    %130 = vector.broadcast %cst_29 : f32 to vector<8x128xf32>
    %131 = arith.addf %130, %129 : vector<8x128xf32>
    %132 = arith.divf %130, %131 : vector<8x128xf32>
    %133 = vector.extract_strided_slice %126 {offsets = [0, 128], sizes = [8, 128], strides = [1, 1]} : vector<8x512xf32> to vector<8x128xf32>
    %134 = arith.negf %133 : vector<8x128xf32>
    %135 = math.exp %134 : vector<8x128xf32>
    %cst_30 = arith.constant 1.000000e+00 : f32
    %136 = vector.broadcast %cst_30 : f32 to vector<8x128xf32>
    %137 = arith.addf %136, %135 : vector<8x128xf32>
    %138 = arith.divf %136, %137 : vector<8x128xf32>
    %139 = vector.extract_strided_slice %126 {offsets = [0, 256], sizes = [8, 128], strides = [1, 1]} : vector<8x512xf32> to vector<8x128xf32>
    %140 = math.tanh %139 : vector<8x128xf32>
    %141 = vector.extract_strided_slice %126 {offsets = [0, 384], sizes = [8, 128], strides = [1, 1]} : vector<8x512xf32> to vector<8x128xf32>
    %142 = arith.negf %141 : vector<8x128xf32>
    %143 = math.exp %142 : vector<8x128xf32>
    %cst_31 = arith.constant 1.000000e+00 : f32
    %144 = vector.broadcast %cst_31 : f32 to vector<8x128xf32>
    %145 = arith.addf %144, %143 : vector<8x128xf32>
    %146 = arith.divf %144, %145 : vector<8x128xf32>
    %147 = arith.mulf %138, %93 : vector<8x128xf32>
    %148 = arith.mulf %132, %140 : vector<8x128xf32>
    %149 = arith.addf %147, %148 : vector<8x128xf32>
    %150 = math.tanh %149 : vector<8x128xf32>
    %151 = arith.mulf %146, %150 : vector<8x128xf32>
    %152 = tpu.concatenate %151, %123 in 1 : vector<8x128xf32>, vector<8x128xf32> -> vector<8x256xf32>
    %cst_32 = arith.constant dense<0.000000e+00> : vector<8x512xf32>
    %153 = tpu.matmul %152, %7, %cst_32 {dimension_numbers = #tpu.dot_dimension_numbers<[1], [0], [0], [1], [0, 0, 1, 1], [], []>} : vector<8x256xf32>, vector<256x512xf32>, vector<8x512xf32> -> vector<8x512xf32>
    %154 = arith.addf %153, %10 : vector<8x512xf32>
    %155 = vector.extract_strided_slice %154 {offsets = [0, 0], sizes = [8, 128], strides = [1, 1]} : vector<8x512xf32> to vector<8x128xf32>
    %156 = arith.negf %155 : vector<8x128xf32>
    %157 = math.exp %156 : vector<8x128xf32>
    %cst_33 = arith.constant 1.000000e+00 : f32
    %158 = vector.broadcast %cst_33 : f32 to vector<8x128xf32>
    %159 = arith.addf %158, %157 : vector<8x128xf32>
    %160 = arith.divf %158, %159 : vector<8x128xf32>
    %161 = vector.extract_strided_slice %154 {offsets = [0, 128], sizes = [8, 128], strides = [1, 1]} : vector<8x512xf32> to vector<8x128xf32>
    %162 = arith.negf %161 : vector<8x128xf32>
    %163 = math.exp %162 : vector<8x128xf32>
    %cst_34 = arith.constant 1.000000e+00 : f32
    %164 = vector.broadcast %cst_34 : f32 to vector<8x128xf32>
    %165 = arith.addf %164, %163 : vector<8x128xf32>
    %166 = arith.divf %164, %165 : vector<8x128xf32>
    %167 = vector.extract_strided_slice %154 {offsets = [0, 256], sizes = [8, 128], strides = [1, 1]} : vector<8x512xf32> to vector<8x128xf32>
    %168 = math.tanh %167 : vector<8x128xf32>
    %169 = vector.extract_strided_slice %154 {offsets = [0, 384], sizes = [8, 128], strides = [1, 1]} : vector<8x512xf32> to vector<8x128xf32>
    %170 = arith.negf %169 : vector<8x128xf32>
    %171 = math.exp %170 : vector<8x128xf32>
    %cst_35 = arith.constant 1.000000e+00 : f32
    %172 = vector.broadcast %cst_35 : f32 to vector<8x128xf32>
    %173 = arith.addf %172, %171 : vector<8x128xf32>
    %174 = arith.divf %172, %173 : vector<8x128xf32>
    %175 = arith.mulf %166, %121 : vector<8x128xf32>
    %176 = arith.mulf %160, %168 : vector<8x128xf32>
    %177 = arith.addf %175, %176 : vector<8x128xf32>
    %178 = math.tanh %177 : vector<8x128xf32>
    %179 = arith.mulf %174, %178 : vector<8x128xf32>
    %180 = vector.extract_strided_slice %5 {offsets = [24, 0], sizes = [8, 512], strides = [1, 1]} : vector<64x512xf32> to vector<8x512xf32>
    %cst_36 = arith.constant dense<0.000000e+00> : vector<8x512xf32>
    %181 = tpu.matmul %151, %6, %cst_36 {dimension_numbers = #tpu.dot_dimension_numbers<[1], [0], [0], [1], [0, 0, 1, 1], [], []>} : vector<8x128xf32>, vector<128x512xf32>, vector<8x512xf32> -> vector<8x512xf32>
    %182 = arith.addf %180, %181 : vector<8x512xf32>
    %183 = vector.extract_strided_slice %182 {offsets = [0, 0], sizes = [8, 128], strides = [1, 1]} : vector<8x512xf32> to vector<8x128xf32>
    %184 = arith.negf %183 : vector<8x128xf32>
    %185 = math.exp %184 : vector<8x128xf32>
    %cst_37 = arith.constant 1.000000e+00 : f32
    %186 = vector.broadcast %cst_37 : f32 to vector<8x128xf32>
    %187 = arith.addf %186, %185 : vector<8x128xf32>
    %188 = arith.divf %186, %187 : vector<8x128xf32>
    %189 = vector.extract_strided_slice %182 {offsets = [0, 128], sizes = [8, 128], strides = [1, 1]} : vector<8x512xf32> to vector<8x128xf32>
    %190 = arith.negf %189 : vector<8x128xf32>
    %191 = math.exp %190 : vector<8x128xf32>
    %cst_38 = arith.constant 1.000000e+00 : f32
    %192 = vector.broadcast %cst_38 : f32 to vector<8x128xf32>
    %193 = arith.addf %192, %191 : vector<8x128xf32>
    %194 = arith.divf %192, %193 : vector<8x128xf32>
    %195 = vector.extract_strided_slice %182 {offsets = [0, 256], sizes = [8, 128], strides = [1, 1]} : vector<8x512xf32> to vector<8x128xf32>
    %196 = math.tanh %195 : vector<8x128xf32>
    %197 = vector.extract_strided_slice %182 {offsets = [0, 384], sizes = [8, 128], strides = [1, 1]} : vector<8x512xf32> to vector<8x128xf32>
    %198 = arith.negf %197 : vector<8x128xf32>
    %199 = math.exp %198 : vector<8x128xf32>
    %cst_39 = arith.constant 1.000000e+00 : f32
    %200 = vector.broadcast %cst_39 : f32 to vector<8x128xf32>
    %201 = arith.addf %200, %199 : vector<8x128xf32>
    %202 = arith.divf %200, %201 : vector<8x128xf32>
    %203 = arith.mulf %194, %149 : vector<8x128xf32>
    %204 = arith.mulf %188, %196 : vector<8x128xf32>
    %205 = arith.addf %203, %204 : vector<8x128xf32>
    %206 = math.tanh %205 : vector<8x128xf32>
    %207 = arith.mulf %202, %206 : vector<8x128xf32>
    %208 = tpu.concatenate %207, %179 in 1 : vector<8x128xf32>, vector<8x128xf32> -> vector<8x256xf32>
    %cst_40 = arith.constant dense<0.000000e+00> : vector<8x512xf32>
    %209 = tpu.matmul %208, %7, %cst_40 {dimension_numbers = #tpu.dot_dimension_numbers<[1], [0], [0], [1], [0, 0, 1, 1], [], []>} : vector<8x256xf32>, vector<256x512xf32>, vector<8x512xf32> -> vector<8x512xf32>
    %210 = arith.addf %209, %10 : vector<8x512xf32>
    %211 = vector.extract_strided_slice %210 {offsets = [0, 0], sizes = [8, 128], strides = [1, 1]} : vector<8x512xf32> to vector<8x128xf32>
    %212 = arith.negf %211 : vector<8x128xf32>
    %213 = math.exp %212 : vector<8x128xf32>
    %cst_41 = arith.constant 1.000000e+00 : f32
    %214 = vector.broadcast %cst_41 : f32 to vector<8x128xf32>
    %215 = arith.addf %214, %213 : vector<8x128xf32>
    %216 = arith.divf %214, %215 : vector<8x128xf32>
    %217 = vector.extract_strided_slice %210 {offsets = [0, 128], sizes = [8, 128], strides = [1, 1]} : vector<8x512xf32> to vector<8x128xf32>
    %218 = arith.negf %217 : vector<8x128xf32>
    %219 = math.exp %218 : vector<8x128xf32>
    %cst_42 = arith.constant 1.000000e+00 : f32
    %220 = vector.broadcast %cst_42 : f32 to vector<8x128xf32>
    %221 = arith.addf %220, %219 : vector<8x128xf32>
    %222 = arith.divf %220, %221 : vector<8x128xf32>
    %223 = vector.extract_strided_slice %210 {offsets = [0, 256], sizes = [8, 128], strides = [1, 1]} : vector<8x512xf32> to vector<8x128xf32>
    %224 = math.tanh %223 : vector<8x128xf32>
    %225 = vector.extract_strided_slice %210 {offsets = [0, 384], sizes = [8, 128], strides = [1, 1]} : vector<8x512xf32> to vector<8x128xf32>
    %226 = arith.negf %225 : vector<8x128xf32>
    %227 = math.exp %226 : vector<8x128xf32>
    %cst_43 = arith.constant 1.000000e+00 : f32
    %228 = vector.broadcast %cst_43 : f32 to vector<8x128xf32>
    %229 = arith.addf %228, %227 : vector<8x128xf32>
    %230 = arith.divf %228, %229 : vector<8x128xf32>
    %231 = arith.mulf %222, %177 : vector<8x128xf32>
    %232 = arith.mulf %216, %224 : vector<8x128xf32>
    %233 = arith.addf %231, %232 : vector<8x128xf32>
    %234 = math.tanh %233 : vector<8x128xf32>
    %235 = arith.mulf %230, %234 : vector<8x128xf32>
    %236 = vector.extract_strided_slice %5 {offsets = [32, 0], sizes = [8, 512], strides = [1, 1]} : vector<64x512xf32> to vector<8x512xf32>
    %cst_44 = arith.constant dense<0.000000e+00> : vector<8x512xf32>
    %237 = tpu.matmul %207, %6, %cst_44 {dimension_numbers = #tpu.dot_dimension_numbers<[1], [0], [0], [1], [0, 0, 1, 1], [], []>} : vector<8x128xf32>, vector<128x512xf32>, vector<8x512xf32> -> vector<8x512xf32>
    %238 = arith.addf %236, %237 : vector<8x512xf32>
    %239 = vector.extract_strided_slice %238 {offsets = [0, 0], sizes = [8, 128], strides = [1, 1]} : vector<8x512xf32> to vector<8x128xf32>
    %240 = arith.negf %239 : vector<8x128xf32>
    %241 = math.exp %240 : vector<8x128xf32>
    %cst_45 = arith.constant 1.000000e+00 : f32
    %242 = vector.broadcast %cst_45 : f32 to vector<8x128xf32>
    %243 = arith.addf %242, %241 : vector<8x128xf32>
    %244 = arith.divf %242, %243 : vector<8x128xf32>
    %245 = vector.extract_strided_slice %238 {offsets = [0, 128], sizes = [8, 128], strides = [1, 1]} : vector<8x512xf32> to vector<8x128xf32>
    %246 = arith.negf %245 : vector<8x128xf32>
    %247 = math.exp %246 : vector<8x128xf32>
    %cst_46 = arith.constant 1.000000e+00 : f32
    %248 = vector.broadcast %cst_46 : f32 to vector<8x128xf32>
    %249 = arith.addf %248, %247 : vector<8x128xf32>
    %250 = arith.divf %248, %249 : vector<8x128xf32>
    %251 = vector.extract_strided_slice %238 {offsets = [0, 256], sizes = [8, 128], strides = [1, 1]} : vector<8x512xf32> to vector<8x128xf32>
    %252 = math.tanh %251 : vector<8x128xf32>
    %253 = vector.extract_strided_slice %238 {offsets = [0, 384], sizes = [8, 128], strides = [1, 1]} : vector<8x512xf32> to vector<8x128xf32>
    %254 = arith.negf %253 : vector<8x128xf32>
    %255 = math.exp %254 : vector<8x128xf32>
    %cst_47 = arith.constant 1.000000e+00 : f32
    %256 = vector.broadcast %cst_47 : f32 to vector<8x128xf32>
    %257 = arith.addf %256, %255 : vector<8x128xf32>
    %258 = arith.divf %256, %257 : vector<8x128xf32>
    %259 = arith.mulf %250, %205 : vector<8x128xf32>
    %260 = arith.mulf %244, %252 : vector<8x128xf32>
    %261 = arith.addf %259, %260 : vector<8x128xf32>
    %262 = math.tanh %261 : vector<8x128xf32>
    %263 = arith.mulf %258, %262 : vector<8x128xf32>
    %264 = tpu.concatenate %263, %235 in 1 : vector<8x128xf32>, vector<8x128xf32> -> vector<8x256xf32>
    %cst_48 = arith.constant dense<0.000000e+00> : vector<8x512xf32>
    %265 = tpu.matmul %264, %7, %cst_48 {dimension_numbers = #tpu.dot_dimension_numbers<[1], [0], [0], [1], [0, 0, 1, 1], [], []>} : vector<8x256xf32>, vector<256x512xf32>, vector<8x512xf32> -> vector<8x512xf32>
    %266 = arith.addf %265, %10 : vector<8x512xf32>
    %267 = vector.extract_strided_slice %266 {offsets = [0, 0], sizes = [8, 128], strides = [1, 1]} : vector<8x512xf32> to vector<8x128xf32>
    %268 = arith.negf %267 : vector<8x128xf32>
    %269 = math.exp %268 : vector<8x128xf32>
    %cst_49 = arith.constant 1.000000e+00 : f32
    %270 = vector.broadcast %cst_49 : f32 to vector<8x128xf32>
    %271 = arith.addf %270, %269 : vector<8x128xf32>
    %272 = arith.divf %270, %271 : vector<8x128xf32>
    %273 = vector.extract_strided_slice %266 {offsets = [0, 128], sizes = [8, 128], strides = [1, 1]} : vector<8x512xf32> to vector<8x128xf32>
    %274 = arith.negf %273 : vector<8x128xf32>
    %275 = math.exp %274 : vector<8x128xf32>
    %cst_50 = arith.constant 1.000000e+00 : f32
    %276 = vector.broadcast %cst_50 : f32 to vector<8x128xf32>
    %277 = arith.addf %276, %275 : vector<8x128xf32>
    %278 = arith.divf %276, %277 : vector<8x128xf32>
    %279 = vector.extract_strided_slice %266 {offsets = [0, 256], sizes = [8, 128], strides = [1, 1]} : vector<8x512xf32> to vector<8x128xf32>
    %280 = math.tanh %279 : vector<8x128xf32>
    %281 = vector.extract_strided_slice %266 {offsets = [0, 384], sizes = [8, 128], strides = [1, 1]} : vector<8x512xf32> to vector<8x128xf32>
    %282 = arith.negf %281 : vector<8x128xf32>
    %283 = math.exp %282 : vector<8x128xf32>
    %cst_51 = arith.constant 1.000000e+00 : f32
    %284 = vector.broadcast %cst_51 : f32 to vector<8x128xf32>
    %285 = arith.addf %284, %283 : vector<8x128xf32>
    %286 = arith.divf %284, %285 : vector<8x128xf32>
    %287 = arith.mulf %278, %233 : vector<8x128xf32>
    %288 = arith.mulf %272, %280 : vector<8x128xf32>
    %289 = arith.addf %287, %288 : vector<8x128xf32>
    %290 = math.tanh %289 : vector<8x128xf32>
    %291 = arith.mulf %286, %290 : vector<8x128xf32>
    %292 = vector.extract_strided_slice %5 {offsets = [40, 0], sizes = [8, 512], strides = [1, 1]} : vector<64x512xf32> to vector<8x512xf32>
    %cst_52 = arith.constant dense<0.000000e+00> : vector<8x512xf32>
    %293 = tpu.matmul %263, %6, %cst_52 {dimension_numbers = #tpu.dot_dimension_numbers<[1], [0], [0], [1], [0, 0, 1, 1], [], []>} : vector<8x128xf32>, vector<128x512xf32>, vector<8x512xf32> -> vector<8x512xf32>
    %294 = arith.addf %292, %293 : vector<8x512xf32>
    %295 = vector.extract_strided_slice %294 {offsets = [0, 0], sizes = [8, 128], strides = [1, 1]} : vector<8x512xf32> to vector<8x128xf32>
    %296 = arith.negf %295 : vector<8x128xf32>
    %297 = math.exp %296 : vector<8x128xf32>
    %cst_53 = arith.constant 1.000000e+00 : f32
    %298 = vector.broadcast %cst_53 : f32 to vector<8x128xf32>
    %299 = arith.addf %298, %297 : vector<8x128xf32>
    %300 = arith.divf %298, %299 : vector<8x128xf32>
    %301 = vector.extract_strided_slice %294 {offsets = [0, 128], sizes = [8, 128], strides = [1, 1]} : vector<8x512xf32> to vector<8x128xf32>
    %302 = arith.negf %301 : vector<8x128xf32>
    %303 = math.exp %302 : vector<8x128xf32>
    %cst_54 = arith.constant 1.000000e+00 : f32
    %304 = vector.broadcast %cst_54 : f32 to vector<8x128xf32>
    %305 = arith.addf %304, %303 : vector<8x128xf32>
    %306 = arith.divf %304, %305 : vector<8x128xf32>
    %307 = vector.extract_strided_slice %294 {offsets = [0, 256], sizes = [8, 128], strides = [1, 1]} : vector<8x512xf32> to vector<8x128xf32>
    %308 = math.tanh %307 : vector<8x128xf32>
    %309 = vector.extract_strided_slice %294 {offsets = [0, 384], sizes = [8, 128], strides = [1, 1]} : vector<8x512xf32> to vector<8x128xf32>
    %310 = arith.negf %309 : vector<8x128xf32>
    %311 = math.exp %310 : vector<8x128xf32>
    %cst_55 = arith.constant 1.000000e+00 : f32
    %312 = vector.broadcast %cst_55 : f32 to vector<8x128xf32>
    %313 = arith.addf %312, %311 : vector<8x128xf32>
    %314 = arith.divf %312, %313 : vector<8x128xf32>
    %315 = arith.mulf %306, %261 : vector<8x128xf32>
    %316 = arith.mulf %300, %308 : vector<8x128xf32>
    %317 = arith.addf %315, %316 : vector<8x128xf32>
    %318 = math.tanh %317 : vector<8x128xf32>
    %319 = arith.mulf %314, %318 : vector<8x128xf32>
    %320 = tpu.concatenate %319, %291 in 1 : vector<8x128xf32>, vector<8x128xf32> -> vector<8x256xf32>
    %cst_56 = arith.constant dense<0.000000e+00> : vector<8x512xf32>
    %321 = tpu.matmul %320, %7, %cst_56 {dimension_numbers = #tpu.dot_dimension_numbers<[1], [0], [0], [1], [0, 0, 1, 1], [], []>} : vector<8x256xf32>, vector<256x512xf32>, vector<8x512xf32> -> vector<8x512xf32>
    %322 = arith.addf %321, %10 : vector<8x512xf32>
    %323 = vector.extract_strided_slice %322 {offsets = [0, 0], sizes = [8, 128], strides = [1, 1]} : vector<8x512xf32> to vector<8x128xf32>
    %324 = arith.negf %323 : vector<8x128xf32>
    %325 = math.exp %324 : vector<8x128xf32>
    %cst_57 = arith.constant 1.000000e+00 : f32
    %326 = vector.broadcast %cst_57 : f32 to vector<8x128xf32>
    %327 = arith.addf %326, %325 : vector<8x128xf32>
    %328 = arith.divf %326, %327 : vector<8x128xf32>
    %329 = vector.extract_strided_slice %322 {offsets = [0, 128], sizes = [8, 128], strides = [1, 1]} : vector<8x512xf32> to vector<8x128xf32>
    %330 = arith.negf %329 : vector<8x128xf32>
    %331 = math.exp %330 : vector<8x128xf32>
    %cst_58 = arith.constant 1.000000e+00 : f32
    %332 = vector.broadcast %cst_58 : f32 to vector<8x128xf32>
    %333 = arith.addf %332, %331 : vector<8x128xf32>
    %334 = arith.divf %332, %333 : vector<8x128xf32>
    %335 = vector.extract_strided_slice %322 {offsets = [0, 256], sizes = [8, 128], strides = [1, 1]} : vector<8x512xf32> to vector<8x128xf32>
    %336 = math.tanh %335 : vector<8x128xf32>
    %337 = vector.extract_strided_slice %322 {offsets = [0, 384], sizes = [8, 128], strides = [1, 1]} : vector<8x512xf32> to vector<8x128xf32>
    %338 = arith.negf %337 : vector<8x128xf32>
    %339 = math.exp %338 : vector<8x128xf32>
    %cst_59 = arith.constant 1.000000e+00 : f32
    %340 = vector.broadcast %cst_59 : f32 to vector<8x128xf32>
    %341 = arith.addf %340, %339 : vector<8x128xf32>
    %342 = arith.divf %340, %341 : vector<8x128xf32>
    %343 = arith.mulf %334, %289 : vector<8x128xf32>
    %344 = arith.mulf %328, %336 : vector<8x128xf32>
    %345 = arith.addf %343, %344 : vector<8x128xf32>
    %346 = math.tanh %345 : vector<8x128xf32>
    %347 = arith.mulf %342, %346 : vector<8x128xf32>
    %348 = vector.extract_strided_slice %5 {offsets = [48, 0], sizes = [8, 512], strides = [1, 1]} : vector<64x512xf32> to vector<8x512xf32>
    %cst_60 = arith.constant dense<0.000000e+00> : vector<8x512xf32>
    %349 = tpu.matmul %319, %6, %cst_60 {dimension_numbers = #tpu.dot_dimension_numbers<[1], [0], [0], [1], [0, 0, 1, 1], [], []>} : vector<8x128xf32>, vector<128x512xf32>, vector<8x512xf32> -> vector<8x512xf32>
    %350 = arith.addf %348, %349 : vector<8x512xf32>
    %351 = vector.extract_strided_slice %350 {offsets = [0, 0], sizes = [8, 128], strides = [1, 1]} : vector<8x512xf32> to vector<8x128xf32>
    %352 = arith.negf %351 : vector<8x128xf32>
    %353 = math.exp %352 : vector<8x128xf32>
    %cst_61 = arith.constant 1.000000e+00 : f32
    %354 = vector.broadcast %cst_61 : f32 to vector<8x128xf32>
    %355 = arith.addf %354, %353 : vector<8x128xf32>
    %356 = arith.divf %354, %355 : vector<8x128xf32>
    %357 = vector.extract_strided_slice %350 {offsets = [0, 128], sizes = [8, 128], strides = [1, 1]} : vector<8x512xf32> to vector<8x128xf32>
    %358 = arith.negf %357 : vector<8x128xf32>
    %359 = math.exp %358 : vector<8x128xf32>
    %cst_62 = arith.constant 1.000000e+00 : f32
    %360 = vector.broadcast %cst_62 : f32 to vector<8x128xf32>
    %361 = arith.addf %360, %359 : vector<8x128xf32>
    %362 = arith.divf %360, %361 : vector<8x128xf32>
    %363 = vector.extract_strided_slice %350 {offsets = [0, 256], sizes = [8, 128], strides = [1, 1]} : vector<8x512xf32> to vector<8x128xf32>
    %364 = math.tanh %363 : vector<8x128xf32>
    %365 = vector.extract_strided_slice %350 {offsets = [0, 384], sizes = [8, 128], strides = [1, 1]} : vector<8x512xf32> to vector<8x128xf32>
    %366 = arith.negf %365 : vector<8x128xf32>
    %367 = math.exp %366 : vector<8x128xf32>
    %cst_63 = arith.constant 1.000000e+00 : f32
    %368 = vector.broadcast %cst_63 : f32 to vector<8x128xf32>
    %369 = arith.addf %368, %367 : vector<8x128xf32>
    %370 = arith.divf %368, %369 : vector<8x128xf32>
    %371 = arith.mulf %362, %317 : vector<8x128xf32>
    %372 = arith.mulf %356, %364 : vector<8x128xf32>
    %373 = arith.addf %371, %372 : vector<8x128xf32>
    %374 = math.tanh %373 : vector<8x128xf32>
    %375 = arith.mulf %370, %374 : vector<8x128xf32>
    %376 = tpu.concatenate %375, %347 in 1 : vector<8x128xf32>, vector<8x128xf32> -> vector<8x256xf32>
    %cst_64 = arith.constant dense<0.000000e+00> : vector<8x512xf32>
    %377 = tpu.matmul %376, %7, %cst_64 {dimension_numbers = #tpu.dot_dimension_numbers<[1], [0], [0], [1], [0, 0, 1, 1], [], []>} : vector<8x256xf32>, vector<256x512xf32>, vector<8x512xf32> -> vector<8x512xf32>
    %378 = arith.addf %377, %10 : vector<8x512xf32>
    %379 = vector.extract_strided_slice %378 {offsets = [0, 0], sizes = [8, 128], strides = [1, 1]} : vector<8x512xf32> to vector<8x128xf32>
    %380 = arith.negf %379 : vector<8x128xf32>
    %381 = math.exp %380 : vector<8x128xf32>
    %cst_65 = arith.constant 1.000000e+00 : f32
    %382 = vector.broadcast %cst_65 : f32 to vector<8x128xf32>
    %383 = arith.addf %382, %381 : vector<8x128xf32>
    %384 = arith.divf %382, %383 : vector<8x128xf32>
    %385 = vector.extract_strided_slice %378 {offsets = [0, 128], sizes = [8, 128], strides = [1, 1]} : vector<8x512xf32> to vector<8x128xf32>
    %386 = arith.negf %385 : vector<8x128xf32>
    %387 = math.exp %386 : vector<8x128xf32>
    %cst_66 = arith.constant 1.000000e+00 : f32
    %388 = vector.broadcast %cst_66 : f32 to vector<8x128xf32>
    %389 = arith.addf %388, %387 : vector<8x128xf32>
    %390 = arith.divf %388, %389 : vector<8x128xf32>
    %391 = vector.extract_strided_slice %378 {offsets = [0, 256], sizes = [8, 128], strides = [1, 1]} : vector<8x512xf32> to vector<8x128xf32>
    %392 = math.tanh %391 : vector<8x128xf32>
    %393 = vector.extract_strided_slice %378 {offsets = [0, 384], sizes = [8, 128], strides = [1, 1]} : vector<8x512xf32> to vector<8x128xf32>
    %394 = arith.negf %393 : vector<8x128xf32>
    %395 = math.exp %394 : vector<8x128xf32>
    %cst_67 = arith.constant 1.000000e+00 : f32
    %396 = vector.broadcast %cst_67 : f32 to vector<8x128xf32>
    %397 = arith.addf %396, %395 : vector<8x128xf32>
    %398 = arith.divf %396, %397 : vector<8x128xf32>
    %399 = arith.mulf %390, %345 : vector<8x128xf32>
    %400 = arith.mulf %384, %392 : vector<8x128xf32>
    %401 = arith.addf %399, %400 : vector<8x128xf32>
    %402 = math.tanh %401 : vector<8x128xf32>
    %403 = arith.mulf %398, %402 : vector<8x128xf32>
    %404 = vector.extract_strided_slice %5 {offsets = [56, 0], sizes = [8, 512], strides = [1, 1]} : vector<64x512xf32> to vector<8x512xf32>
    %cst_68 = arith.constant dense<0.000000e+00> : vector<8x512xf32>
    %405 = tpu.matmul %375, %6, %cst_68 {dimension_numbers = #tpu.dot_dimension_numbers<[1], [0], [0], [1], [0, 0, 1, 1], [], []>} : vector<8x128xf32>, vector<128x512xf32>, vector<8x512xf32> -> vector<8x512xf32>
    %406 = arith.addf %404, %405 : vector<8x512xf32>
    %407 = vector.extract_strided_slice %406 {offsets = [0, 0], sizes = [8, 128], strides = [1, 1]} : vector<8x512xf32> to vector<8x128xf32>
    %408 = arith.negf %407 : vector<8x128xf32>
    %409 = math.exp %408 : vector<8x128xf32>
    %cst_69 = arith.constant 1.000000e+00 : f32
    %410 = vector.broadcast %cst_69 : f32 to vector<8x128xf32>
    %411 = arith.addf %410, %409 : vector<8x128xf32>
    %412 = arith.divf %410, %411 : vector<8x128xf32>
    %413 = vector.extract_strided_slice %406 {offsets = [0, 128], sizes = [8, 128], strides = [1, 1]} : vector<8x512xf32> to vector<8x128xf32>
    %414 = arith.negf %413 : vector<8x128xf32>
    %415 = math.exp %414 : vector<8x128xf32>
    %cst_70 = arith.constant 1.000000e+00 : f32
    %416 = vector.broadcast %cst_70 : f32 to vector<8x128xf32>
    %417 = arith.addf %416, %415 : vector<8x128xf32>
    %418 = arith.divf %416, %417 : vector<8x128xf32>
    %419 = vector.extract_strided_slice %406 {offsets = [0, 256], sizes = [8, 128], strides = [1, 1]} : vector<8x512xf32> to vector<8x128xf32>
    %420 = math.tanh %419 : vector<8x128xf32>
    %421 = vector.extract_strided_slice %406 {offsets = [0, 384], sizes = [8, 128], strides = [1, 1]} : vector<8x512xf32> to vector<8x128xf32>
    %422 = arith.negf %421 : vector<8x128xf32>
    %423 = math.exp %422 : vector<8x128xf32>
    %cst_71 = arith.constant 1.000000e+00 : f32
    %424 = vector.broadcast %cst_71 : f32 to vector<8x128xf32>
    %425 = arith.addf %424, %423 : vector<8x128xf32>
    %426 = arith.divf %424, %425 : vector<8x128xf32>
    %427 = arith.mulf %418, %373 : vector<8x128xf32>
    %428 = arith.mulf %412, %420 : vector<8x128xf32>
    %429 = arith.addf %427, %428 : vector<8x128xf32>
    %430 = math.tanh %429 : vector<8x128xf32>
    %431 = arith.mulf %426, %430 : vector<8x128xf32>
    %432 = tpu.concatenate %431, %403 in 1 : vector<8x128xf32>, vector<8x128xf32> -> vector<8x256xf32>
    %cst_72 = arith.constant dense<0.000000e+00> : vector<8x512xf32>
    %433 = tpu.matmul %432, %7, %cst_72 {dimension_numbers = #tpu.dot_dimension_numbers<[1], [0], [0], [1], [0, 0, 1, 1], [], []>} : vector<8x256xf32>, vector<256x512xf32>, vector<8x512xf32> -> vector<8x512xf32>
    %434 = arith.addf %433, %10 : vector<8x512xf32>
    %435 = vector.extract_strided_slice %434 {offsets = [0, 0], sizes = [8, 128], strides = [1, 1]} : vector<8x512xf32> to vector<8x128xf32>
    %436 = arith.negf %435 : vector<8x128xf32>
    %437 = math.exp %436 : vector<8x128xf32>
    %cst_73 = arith.constant 1.000000e+00 : f32
    %438 = vector.broadcast %cst_73 : f32 to vector<8x128xf32>
    %439 = arith.addf %438, %437 : vector<8x128xf32>
    %440 = arith.divf %438, %439 : vector<8x128xf32>
    %441 = vector.extract_strided_slice %434 {offsets = [0, 128], sizes = [8, 128], strides = [1, 1]} : vector<8x512xf32> to vector<8x128xf32>
    %442 = arith.negf %441 : vector<8x128xf32>
    %443 = math.exp %442 : vector<8x128xf32>
    %cst_74 = arith.constant 1.000000e+00 : f32
    %444 = vector.broadcast %cst_74 : f32 to vector<8x128xf32>
    %445 = arith.addf %444, %443 : vector<8x128xf32>
    %446 = arith.divf %444, %445 : vector<8x128xf32>
    %447 = vector.extract_strided_slice %434 {offsets = [0, 256], sizes = [8, 128], strides = [1, 1]} : vector<8x512xf32> to vector<8x128xf32>
    %448 = math.tanh %447 : vector<8x128xf32>
    %449 = vector.extract_strided_slice %434 {offsets = [0, 384], sizes = [8, 128], strides = [1, 1]} : vector<8x512xf32> to vector<8x128xf32>
    %450 = arith.negf %449 : vector<8x128xf32>
    %451 = math.exp %450 : vector<8x128xf32>
    %cst_75 = arith.constant 1.000000e+00 : f32
    %452 = vector.broadcast %cst_75 : f32 to vector<8x128xf32>
    %453 = arith.addf %452, %451 : vector<8x128xf32>
    %454 = arith.divf %452, %453 : vector<8x128xf32>
    %455 = arith.mulf %446, %401 : vector<8x128xf32>
    %456 = arith.mulf %440, %448 : vector<8x128xf32>
    %457 = arith.addf %455, %456 : vector<8x128xf32>
    %458 = math.tanh %457 : vector<8x128xf32>
    %459 = arith.mulf %454, %458 : vector<8x128xf32>
    %c0_76 = arith.constant 0 : index
    %c0_77 = arith.constant 0 : index
    %460 = vector.load %arg6[%c0_76, %c0_77] : memref<128x128xf32, #tpu.memory_space<vmem>>, vector<128x128xf32>
    %cst_78 = arith.constant dense<0.000000e+00> : vector<8x128xf32>
    %461 = tpu.matmul %459, %460, %cst_78 {dimension_numbers = #tpu.dot_dimension_numbers<[1], [0], [0], [1], [0, 0, 1, 1], [], []>} : vector<8x128xf32>, vector<128x128xf32>, vector<8x128xf32> -> vector<8x128xf32>
    %c0_79 = arith.constant 0 : index
    %c0_80 = arith.constant 0 : index
    %462 = vector.load %arg7[%c0_79, %c0_80] : memref<1x128xf32, #tpu.memory_space<vmem>>, vector<1x128xf32>
    %463 = vector.broadcast %462 : vector<1x128xf32> to vector<8x128xf32>
    %464 = arith.addf %461, %463 : vector<8x128xf32>
    %c0_81 = arith.constant 0 : index
    %c0_82 = arith.constant 0 : index
    %465 = vector.load %arg8[%c0_81, %c0_82] : memref<8x128xf32, #tpu.memory_space<vmem>>, vector<8x128xf32>
    tpu.vector_store %arg8[%c0_81, %c0_82], %464 {strides = array<i32>} : memref<8x128xf32, #tpu.memory_space<vmem>>, vector<8x128xf32>,
    return
  }
}

</mosaic_0001>

<llo_original>
// kernel: tpu_custom_call.1
$region0: #{tpu_custom_call.1}
  #allocation0 [shape = 'u32[]', space=smem, size = 0x4, offset = 0x4, fixed_abs, tag = 'smem constant byte address 0x4 - core index']
  #allocation1 [shape = 'u32[72,128]{1,0:T(1,128)}', space=vmem, size = 0x9000, scoped, tag = 'internal scratch']
  %s0 = inlined_call_operand.vmem [shape: f32[64,16], index: 0, kind: input, shape index: {}]
  %s1 = inlined_call_operand.vmem [shape: f32[16,512], index: 1, kind: input, shape index: {}]
  %s2 = inlined_call_operand.hbm [shape: f32[128,512], index: 2, kind: input, shape index: {}]
  %s3 = inlined_call_operand.vmem [shape: f32[1,512], index: 3, kind: input, shape index: {}]
  %s4 = inlined_call_operand.hbm [shape: f32[256,512], index: 4, kind: input, shape index: {}]
  %s5 = inlined_call_operand.vmem [shape: f32[1,512], index: 5, kind: input, shape index: {}]
  %s6 = inlined_call_operand.hbm [shape: f32[128,128], index: 6, kind: input, shape index: {}]
  %s7 = inlined_call_operand.vmem [shape: f32[1,128], index: 7, kind: input, shape index: {}]
  %s8 = inlined_call_operand.hbm [shape: f32[8,128], index: 8, kind: output, shape index: {}]
  %s9 = sld [smem:[#allocation0]]
  $region54: #{tpu_custom_call.1} parent=0
    _
  %s11 = ssub.s32 1, %s9
  %s12 = scalar_select 0, %s11, %s9
  $region1: #{tpu_custom_call.1} parent=0
    #allocation2 [shape = 'u8[262144]{0}', space=vmem, size = 0x40000, scoped, tag = 'input window, operand 2, single buffered']
    #allocation3 [shape = 's32[1]{0}', space=sflag, size = 0x4, scoped, tag = 'scoped memory for tpu_custom_call.1']
    #allocation4 [shape = 's32[1]{0}', space=sflag, size = 0x4, scoped, tag = 'scoped memory for tpu_custom_call.1']
    #allocation5 [shape = 'u8[524288]{0}', space=vmem, size = 0x80000, scoped, tag = 'input window, operand 4, single buffered']
    #allocation6 [shape = 's32[1]{0}', space=sflag, size = 0x4, scoped, tag = 'scoped memory for tpu_custom_call.1']
    #allocation7 [shape = 'u8[65536]{0}', space=vmem, size = 0x10000, scoped, tag = 'input window, operand 6, single buffered']
    #allocation8 [shape = 'u8[4096]{0}', space=vmem, size = 0x1000, scoped, tag = 'output window, operand 0, single buffered']
    %13 = vsyncpa [#allocation3], 0
    %14 = vsyncpa [#allocation6], 0
    %15 = vsyncpa [#allocation4], 0
    // Predicated region
    $region2: #{tpu_custom_call.1} parent=1 // pred_check
      _
    $region3: #{tpu_custom_call.1} parent=1 // pred_check_branch
      %17 = sbr.rel (0) target = $region5
    $region4: #{tpu_custom_call.1} parent=1 // pred_region
      _
    $region5: #{tpu_custom_call.1} parent=1 // pred_fallthru
      _
    // Predicated region
    $region6: #{tpu_custom_call.1} parent=1 // pred_check
      _
    $region7: #{tpu_custom_call.1} parent=1 // pred_check_branch
      %19 = sbr.rel (0) target = $region9
    $region8: #{tpu_custom_call.1} parent=1 // pred_region
      _
    $region9: #{tpu_custom_call.1} parent=1 // pred_fallthru
      _
    // Predicated region
    $region10: #{tpu_custom_call.1} parent=1 // pred_check
      _
    $region11: #{tpu_custom_call.1} parent=1 // pred_check_branch
      %21 = sbr.rel (0) target = $region13
    $region12: #{tpu_custom_call.1} parent=1 // pred_region
      %23 = vsyncadd [#allocation3], 0
      %s24 = sshll.u32 %s2, 4
      %s25 = int_to_ptr.hbm [resolvable:$true] %s24
      %s26 = sshll.u32 [#allocation2], 4
      %s27 = int_to_ptr.vmem [resolvable:$true] %s26
      %32 = dma.hbm_to_vmem [thread:$0]  %s25, 8192, %s27, [#allocation3], 512, 512, 32
    $region13: #{tpu_custom_call.1} parent=1 // pred_fallthru
      _
    // Predicated region
    $region14: #{tpu_custom_call.1} parent=1 // pred_check
      _
    $region15: #{tpu_custom_call.1} parent=1 // pred_check_branch
      %34 = sbr.rel (0) target = $region17
    $region16: #{tpu_custom_call.1} parent=1 // pred_region
      _
    $region17: #{tpu_custom_call.1} parent=1 // pred_fallthru
      _
    // Predicated region
    $region18: #{tpu_custom_call.1} parent=1 // pred_check
      _
    $region19: #{tpu_custom_call.1} parent=1 // pred_check_branch
      %36 = sbr.rel (0) target = $region21
    $region20: #{tpu_custom_call.1} parent=1 // pred_region
      %38 = vsyncadd [#allocation6], 0
      %s39 = sshll.u32 %s4, 4
      %s40 = int_to_ptr.hbm [resolvable:$true] %s39
      %s41 = sshll.u32 [#allocation5], 4
      %s42 = int_to_ptr.vmem [resolvable:$true] %s41
      %47 = dma.hbm_to_vmem [thread:$0]  %s40, 16384, %s42, [#allocation6], 512, 512, 32
    $region21: #{tpu_custom_call.1} parent=1 // pred_fallthru
      _
    // Predicated region
    $region22: #{tpu_custom_call.1} parent=1 // pred_check
      _
    $region23: #{tpu_custom_call.1} parent=1 // pred_check_branch
      %49 = sbr.rel (0) target = $region25
    $region24: #{tpu_custom_call.1} parent=1 // pred_region
      _
    $region25: #{tpu_custom_call.1} parent=1 // pred_fallthru
      _
    // Predicated region
    $region26: #{tpu_custom_call.1} parent=1 // pred_check
      _
    $region27: #{tpu_custom_call.1} parent=1 // pred_check_branch
      %51 = sbr.rel (0) target = $region29
    $region28: #{tpu_custom_call.1} parent=1 // pred_region
      %53 = vsyncadd [#allocation6], 0
      %s54 = sshll.u32 %s6, 4
      %s55 = int_to_ptr.hbm [resolvable:$true] %s54
      %s56 = sshll.u32 [#allocation7], 4
      %s57 = int_to_ptr.vmem [resolvable:$true] %s56
      %62 = dma.hbm_to_vmem [thread:$0]  %s55, 2048, %s57, [#allocation6], 128, 128, 8
    $region29: #{tpu_custom_call.1} parent=1 // pred_fallthru
      _
    // Predicated region
    $region30: #{tpu_custom_call.1} parent=1 // pred_check
      _
    $region31: #{tpu_custom_call.1} parent=1 // pred_check_branch
      %64 = sbr.rel (0) target = $region33
    $region32: #{tpu_custom_call.1} parent=1 // pred_region
      _
    $region33: #{tpu_custom_call.1} parent=1 // pred_fallthru
      _
    // Predicated region
    $region34: #{tpu_custom_call.1} parent=1 // pred_check
      _
    $region35: #{tpu_custom_call.1} parent=1 // pred_check_branch
      %66 = sbr.rel (0) target = $region37
    $region36: #{tpu_custom_call.1} parent=1 // pred_region
      %68 = dma.done [#allocation3], 8192
    $region37: #{tpu_custom_call.1} parent=1 // pred_fallthru
      _
    // Predicated region
    $region38: #{tpu_custom_call.1} parent=1 // pred_check
      _
    $region39: #{tpu_custom_call.1} parent=1 // pred_check_branch
      %70 = sbr.rel (0) target = $region41
    $region40: #{tpu_custom_call.1} parent=1 // pred_region
      %72 = dma.done [#allocation6], 16384
    $region41: #{tpu_custom_call.1} parent=1 // pred_fallthru
      _
    // Predicated region
    $region42: #{tpu_custom_call.1} parent=1 // pred_check
      _
    $region43: #{tpu_custom_call.1} parent=1 // pred_check_branch
      %74 = sbr.rel (0) target = $region45
    $region44: #{tpu_custom_call.1} parent=1 // pred_region
      %76 = dma.done [#allocation6], 2048
    $region45: #{tpu_custom_call.1} parent=1 // pred_fallthru
      _
    %v77 = vld [vmem:[%s0] sm:$0xff]
    %v78 = vld [vmem:[%s0 + $0x8] sm:$0xff]
    %v79 = vld [vmem:[%s0 + $0x10] sm:$0xff]
    %v80 = vld [vmem:[%s0 + $0x18] sm:$0xff]
    %v81 = vld [vmem:[%s0 + $0x20] sm:$0xff]
    %v82 = vld [vmem:[%s0 + $0x28] sm:$0xff]
    %v83 = vld [vmem:[%s0 + $0x30] sm:$0xff]
    %v84 = vld [vmem:[%s0 + $0x38] sm:$0xff]
    %v85 = vld [vmem:[%s1] sm:$0xff]
    %v86 = vld [vmem:[%s1 + $0x8] sm:$0xff]
    %v87 = vld [vmem:[%s1 + $0x10] sm:$0xff]
    %v88 = vld [vmem:[%s1 + $0x18] sm:$0xff]
    %v89 = vld [vmem:[%s1 + $0x20] sm:$0xff]
    %v90 = vld [vmem:[%s1 + $0x28] sm:$0xff]
    %v91 = vld [vmem:[%s1 + $0x30] sm:$0xff]
    %v92 = vld [vmem:[%s1 + $0x38] sm:$0xff]
    %v93 = vld [vmem:[%s3] sm:$0xf]
    %v95 = vperm.slane %v93, 0
    %v96 = vperm.slane %v93, 1
    %v97 = vperm.slane %v93, 2
    %v98 = vperm.slane %v93, 3
    %vm103 = vcmask 130048
    %v105 = vsel %vm103, %v77, 0
    %v108 = vsel %vm103, %v78, 0
    %v111 = vsel %vm103, %v79, 0
    %v114 = vsel %vm103, %v80, 0
    %v117 = vsel %vm103, %v81, 0
    %v120 = vsel %vm103, %v82, 0
    %v123 = vsel %vm103, %v83, 0
    %v126 = vsel %vm103, %v84, 0
    %128 = vmatpush.msra.mxu0 0.0
    %129 = vmatpush.msra.mxu0 0.0
    %130 = vmatpush.msra.mxu0 0.0
    %131 = vmatpush.msra.mxu0 0.0
    %132 = vmatpush.msra.mxu0 0.0
    %133 = vmatpush.msra.mxu0 0.0
    %134 = vmatpush.msra.mxu0 0.0
    %135 = vmatpush.msra.mxu0 0.0
    %136 = vmatpush.msra.mxu0 0.0
    %137 = vmatpush.msra.mxu0 0.0
    %138 = vmatpush.msra.mxu0 0.0
    %139 = vmatpush.msra.mxu0 0.0
    %140 = vmatpush.msra.mxu0 0.0
    %141 = vmatpush.msra.mxu0 0.0
    %142 = vmatpush.msra.mxu0 %v89
    %143 = vmatpush.msra.mxu0 %v85
    %144 = vmatmul.f32.gmra.mxu0 %v105
    %v145 = vpop.f32.mrf.mxu0
    %v146 = vadd.f32 %v95, %v145
    %147 = vmatmul.f32.gmra.mxu0 %v108
    %v148 = vpop.f32.mrf.mxu0
    %v149 = vadd.f32 %v95, %v148
    %150 = vmatmul.f32.gmra.mxu0 %v111
    %v151 = vpop.f32.mrf.mxu0
    %v152 = vadd.f32 %v95, %v151
    %153 = vmatmul.f32.gmra.mxu0 %v114
    %v154 = vpop.f32.mrf.mxu0
    %v155 = vadd.f32 %v95, %v154
    %156 = vmatmul.f32.gmra.mxu0 %v117
    %v157 = vpop.f32.mrf.mxu0
    %v158 = vadd.f32 %v95, %v157
    %159 = vmatmul.f32.gmra.mxu0 %v120
    %v160 = vpop.f32.mrf.mxu0
    %v161 = vadd.f32 %v95, %v160
    %162 = vmatmul.f32.gmra.mxu0 %v123
    %v163 = vpop.f32.mrf.mxu0
    %v164 = vadd.f32 %v95, %v163
    %165 = vmatmul.f32.gmra.mxu0 %v126
    %v166 = vpop.f32.mrf.mxu0
    %v167 = vadd.f32 %v95, %v166
    %168 = vdwg.mxu0
    %169 = vmatpush.msra.mxu0 0.0
    %170 = vmatpush.msra.mxu0 0.0
    %171 = vmatpush.msra.mxu0 0.0
    %172 = vmatpush.msra.mxu0 0.0
    %173 = vmatpush.msra.mxu0 0.0
    %174 = vmatpush.msra.mxu0 0.0
    %175 = vmatpush.msra.mxu0 0.0
    %176 = vmatpush.msra.mxu0 0.0
    %177 = vmatpush.msra.mxu0 0.0
    %178 = vmatpush.msra.mxu0 0.0
    %179 = vmatpush.msra.mxu0 0.0
    %180 = vmatpush.msra.mxu0 0.0
    %181 = vmatpush.msra.mxu0 0.0
    %182 = vmatpush.msra.mxu0 0.0
    %183 = vmatpush.msra.mxu0 %v90
    %184 = vmatpush.msra.mxu0 %v86
    %185 = vmatmul.f32.gmra.mxu0 %v105
    %v186 = vpop.f32.mrf.mxu0
    %v187 = vadd.f32 %v96, %v186
    %188 = vmatmul.f32.gmra.mxu0 %v108
    %v189 = vpop.f32.mrf.mxu0
    %v190 = vadd.f32 %v96, %v189
    %191 = vmatmul.f32.gmra.mxu0 %v111
    %v192 = vpop.f32.mrf.mxu0
    %v193 = vadd.f32 %v96, %v192
    %194 = vmatmul.f32.gmra.mxu0 %v114
    %v195 = vpop.f32.mrf.mxu0
    %v196 = vadd.f32 %v96, %v195
    %197 = vmatmul.f32.gmra.mxu0 %v117
    %v198 = vpop.f32.mrf.mxu0
    %v199 = vadd.f32 %v96, %v198
    %200 = vmatmul.f32.gmra.mxu0 %v120
    %v201 = vpop.f32.mrf.mxu0
    %v202 = vadd.f32 %v96, %v201
    %203 = vmatmul.f32.gmra.mxu0 %v123
    %v204 = vpop.f32.mrf.mxu0
    %v205 = vadd.f32 %v96, %v204
    %206 = vmatmul.f32.gmra.mxu0 %v126
    %v207 = vpop.f32.mrf.mxu0
    %v208 = vadd.f32 %v96, %v207
    %209 = vdwg.mxu0
    %210 = vmatpush.msra.mxu0 0.0
    %211 = vmatpush.msra.mxu0 0.0
    %212 = vmatpush.msra.mxu0 0.0
    %213 = vmatpush.msra.mxu0 0.0
    %214 = vmatpush.msra.mxu0 0.0
    %215 = vmatpush.msra.mxu0 0.0
    %216 = vmatpush.msra.mxu0 0.0
    %217 = vmatpush.msra.mxu0 0.0
    %218 = vmatpush.msra.mxu0 0.0
    %219 = vmatpush.msra.mxu0 0.0
    %220 = vmatpush.msra.mxu0 0.0
    %221 = vmatpush.msra.mxu0 0.0
    %222 = vmatpush.msra.mxu0 0.0
    %223 = vmatpush.msra.mxu0 0.0
    %224 = vmatpush.msra.mxu0 %v91
    %225 = vmatpush.msra.mxu0 %v87
    %226 = vmatmul.f32.gmra.mxu0 %v105
    %v227 = vpop.f32.mrf.mxu0
    %v228 = vadd.f32 %v97, %v227
    %229 = vmatmul.f32.gmra.mxu0 %v108
    %v230 = vpop.f32.mrf.mxu0
    %v231 = vadd.f32 %v97, %v230
    %232 = vmatmul.f32.gmra.mxu0 %v111
    %v233 = vpop.f32.mrf.mxu0
    %v234 = vadd.f32 %v97, %v233
    %235 = vmatmul.f32.gmra.mxu0 %v114
    %v236 = vpop.f32.mrf.mxu0
    %v237 = vadd.f32 %v97, %v236
    %238 = vmatmul.f32.gmra.mxu0 %v117
    %v239 = vpop.f32.mrf.mxu0
    %v240 = vadd.f32 %v97, %v239
    %241 = vmatmul.f32.gmra.mxu0 %v120
    %v242 = vpop.f32.mrf.mxu0
    %v243 = vadd.f32 %v97, %v242
    %244 = vmatmul.f32.gmra.mxu0 %v123
    %v245 = vpop.f32.mrf.mxu0
    %v246 = vadd.f32 %v97, %v245
    %247 = vmatmul.f32.gmra.mxu0 %v126
    %v248 = vpop.f32.mrf.mxu0
    %v249 = vadd.f32 %v97, %v248
    %250 = vdwg.mxu0
    %251 = vmatpush.msra.mxu0 0.0
    %252 = vmatpush.msra.mxu0 0.0
    %253 = vmatpush.msra.mxu0 0.0
    %254 = vmatpush.msra.mxu0 0.0
    %255 = vmatpush.msra.mxu0 0.0
    %256 = vmatpush.msra.mxu0 0.0
    %257 = vmatpush.msra.mxu0 0.0
    %258 = vmatpush.msra.mxu0 0.0
    %259 = vmatpush.msra.mxu0 0.0
    %260 = vmatpush.msra.mxu0 0.0
    %261 = vmatpush.msra.mxu0 0.0
    %262 = vmatpush.msra.mxu0 0.0
    %263 = vmatpush.msra.mxu0 0.0
    %264 = vmatpush.msra.mxu0 0.0
    %265 = vmatpush.msra.mxu0 %v92
    %266 = vmatpush.msra.mxu0 %v88
    %267 = vmatmul.f32.gmra.mxu0 %v105
    %v268 = vpop.f32.mrf.mxu0
    %v269 = vadd.f32 %v98, %v268
    %270 = vmatmul.f32.gmra.mxu0 %v108
    %v271 = vpop.f32.mrf.mxu0
    %v272 = vadd.f32 %v98, %v271
    %273 = vmatmul.f32.gmra.mxu0 %v111
    %v274 = vpop.f32.mrf.mxu0
    %v275 = vadd.f32 %v98, %v274
    %276 = vmatmul.f32.gmra.mxu0 %v114
    %v277 = vpop.f32.mrf.mxu0
    %v278 = vadd.f32 %v98, %v277
    %279 = vmatmul.f32.gmra.mxu0 %v117
    %v280 = vpop.f32.mrf.mxu0
    %v281 = vadd.f32 %v98, %v280
    %282 = vmatmul.f32.gmra.mxu0 %v120
    %v283 = vpop.f32.mrf.mxu0
    %v284 = vadd.f32 %v98, %v283
    %285 = vmatmul.f32.gmra.mxu0 %v123
    %v286 = vpop.f32.mrf.mxu0
    %v287 = vadd.f32 %v98, %v286
    %288 = vmatmul.f32.gmra.mxu0 %v126
    %v289 = vpop.f32.mrf.mxu0
    %v290 = vadd.f32 %v98, %v289
    %291 = vdwg.mxu0
    %v292 = vld [vmem:[#allocation2] sm:$0xff]
    %v293 = vld [vmem:[#allocation2 + $0x8] sm:$0xff]
    %v294 = vld [vmem:[#allocation2 + $0x10] sm:$0xff]
    %v295 = vld [vmem:[#allocation2 + $0x18] sm:$0xff]
    %v296 = vld [vmem:[#allocation2 + $0x20] sm:$0xff]
    %v297 = vld [vmem:[#allocation2 + $0x28] sm:$0xff]
    %v298 = vld [vmem:[#allocation2 + $0x30] sm:$0xff]
    %v299 = vld [vmem:[#allocation2 + $0x38] sm:$0xff]
    %v300 = vld [vmem:[#allocation2 + $0x40] sm:$0xff]
    %v301 = vld [vmem:[#allocation2 + $0x48] sm:$0xff]
    %v302 = vld [vmem:[#allocation2 + $0x50] sm:$0xff]
    %v303 = vld [vmem:[#allocation2 + $0x58] sm:$0xff]
    %v304 = vld [vmem:[#allocation2 + $0x60] sm:$0xff]
    %v305 = vld [vmem:[#allocation2 + $0x68] sm:$0xff]
    %v306 = vld [vmem:[#allocation2 + $0x70] sm:$0xff]
    %v307 = vld [vmem:[#allocation2 + $0x78] sm:$0xff]
    %v308 = vld [vmem:[#allocation2 + $0x80] sm:$0xff]
    %v309 = vld [vmem:[#allocation2 + $0x88] sm:$0xff]
    %v310 = vld [vmem:[#allocation2 + $0x90] sm:$0xff]
    %v311 = vld [vmem:[#allocation2 + $0x98] sm:$0xff]
    %v312 = vld [vmem:[#allocation2 + $0xa0] sm:$0xff]
    %v313 = vld [vmem:[#allocation2 + $0xa8] sm:$0xff]
    %v314 = vld [vmem:[#allocation2 + $0xb0] sm:$0xff]
    %v315 = vld [vmem:[#allocation2 + $0xb8] sm:$0xff]
    %v316 = vld [vmem:[#allocation2 + $0xc0] sm:$0xff]
    %v317 = vld [vmem:[#allocation2 + $0xc8] sm:$0xff]
    %v318 = vld [vmem:[#allocation2 + $0xd0] sm:$0xff]
    %v319 = vld [vmem:[#allocation2 + $0xd8] sm:$0xff]
    %v320 = vld [vmem:[#allocation2 + $0xe0] sm:$0xff]
    %v321 = vld [vmem:[#allocation2 + $0xe8] sm:$0xff]
    %v322 = vld [vmem:[#allocation2 + $0xf0] sm:$0xff]
    %v323 = vld [vmem:[#allocation2 + $0xf8] sm:$0xff]
    %v324 = vld [vmem:[#allocation2 + $0x100] sm:$0xff]
    %v325 = vld [vmem:[#allocation2 + $0x108] sm:$0xff]
    %v326 = vld [vmem:[#allocation2 + $0x110] sm:$0xff]
    %v327 = vld [vmem:[#allocation2 + $0x118] sm:$0xff]
    %v328 = vld [vmem:[#allocation2 + $0x120] sm:$0xff]
    %v329 = vld [vmem:[#allocation2 + $0x128] sm:$0xff]
    %v330 = vld [vmem:[#allocation2 + $0x130] sm:$0xff]
    %v331 = vld [vmem:[#allocation2 + $0x138] sm:$0xff]
    %v332 = vld [vmem:[#allocation2 + $0x140] sm:$0xff]
    %v333 = vld [vmem:[#allocation2 + $0x148] sm:$0xff]
    %v334 = vld [vmem:[#allocation2 + $0x150] sm:$0xff]
    %v335 = vld [vmem:[#allocation2 + $0x158] sm:$0xff]
    %v336 = vld [vmem:[#allocation2 + $0x160] sm:$0xff]
    %v337 = vld [vmem:[#allocation2 + $0x168] sm:$0xff]
    %v338 = vld [vmem:[#allocation2 + $0x170] sm:$0xff]
    %v339 = vld [vmem:[#allocation2 + $0x178] sm:$0xff]
    %v340 = vld [vmem:[#allocation2 + $0x180] sm:$0xff]
    %v341 = vld [vmem:[#allocation2 + $0x188] sm:$0xff]
    %v342 = vld [vmem:[#allocation2 + $0x190] sm:$0xff]
    %v343 = vld [vmem:[#allocation2 + $0x198] sm:$0xff]
    %v344 = vld [vmem:[#allocation2 + $0x1a0] sm:$0xff]
    %v345 = vld [vmem:[#allocation2 + $0x1a8] sm:$0xff]
    %v346 = vld [vmem:[#allocation2 + $0x1b0] sm:$0xff]
    %v347 = vld [vmem:[#allocation2 + $0x1b8] sm:$0xff]
    %v348 = vld [vmem:[#allocation2 + $0x1c0] sm:$0xff]
    %v349 = vld [vmem:[#allocation2 + $0x1c8] sm:$0xff]
    %v350 = vld [vmem:[#allocation2 + $0x1d0] sm:$0xff]
    %v351 = vld [vmem:[#allocation2 + $0x1d8] sm:$0xff]
    %v352 = vld [vmem:[#allocation2 + $0x1e0] sm:$0xff]
    %v353 = vld [vmem:[#allocation2 + $0x1e8] sm:$0xff]
    %v354 = vld [vmem:[#allocation2 + $0x1f0] sm:$0xff]
    %v355 = vld [vmem:[#allocation2 + $0x1f8] sm:$0xff]
    %v356 = vld [vmem:[#allocation5] sm:$0xff]
    %v357 = vld [vmem:[#allocation5 + $0x8] sm:$0xff]
    %v358 = vld [vmem:[#allocation5 + $0x10] sm:$0xff]
    %v359 = vld [vmem:[#allocation5 + $0x18] sm:$0xff]
    %v360 = vld [vmem:[#allocation5 + $0x20] sm:$0xff]
    %v361 = vld [vmem:[#allocation5 + $0x28] sm:$0xff]
    %v362 = vld [vmem:[#allocation5 + $0x30] sm:$0xff]
    %v363 = vld [vmem:[#allocation5 + $0x38] sm:$0xff]
    %v364 = vld [vmem:[#allocation5 + $0x40] sm:$0xff]
    %v365 = vld [vmem:[#allocation5 + $0x48] sm:$0xff]
    %v366 = vld [vmem:[#allocation5 + $0x50] sm:$0xff]
    %v367 = vld [vmem:[#allocation5 + $0x58] sm:$0xff]
    %v368 = vld [vmem:[#allocation5 + $0x60] sm:$0xff]
    %v369 = vld [vmem:[#allocation5 + $0x68] sm:$0xff]
    %v370 = vld [vmem:[#allocation5 + $0x70] sm:$0xff]
    %v371 = vld [vmem:[#allocation5 + $0x78] sm:$0xff]
    %v372 = vld [vmem:[#allocation5 + $0x80] sm:$0xff]
    %v373 = vld [vmem:[#allocation5 + $0x88] sm:$0xff]
    %v374 = vld [vmem:[#allocation5 + $0x90] sm:$0xff]
    %v375 = vld [vmem:[#allocation5 + $0x98] sm:$0xff]
    %v376 = vld [vmem:[#allocation5 + $0xa0] sm:$0xff]
    %v377 = vld [vmem:[#allocation5 + $0xa8] sm:$0xff]
    %v378 = vld [vmem:[#allocation5 + $0xb0] sm:$0xff]
    %v379 = vld [vmem:[#allocation5 + $0xb8] sm:$0xff]
    %v380 = vld [vmem:[#allocation5 + $0xc0] sm:$0xff]
    %v381 = vld [vmem:[#allocation5 + $0xc8] sm:$0xff]
    %v382 = vld [vmem:[#allocation5 + $0xd0] sm:$0xff]
    %v383 = vld [vmem:[#allocation5 + $0xd8] sm:$0xff]
    %v384 = vld [vmem:[#allocation5 + $0xe0] sm:$0xff]
    %v385 = vld [vmem:[#allocation5 + $0xe8] sm:$0xff]
    %v386 = vld [vmem:[#allocation5 + $0xf0] sm:$0xff]
    %v387 = vld [vmem:[#allocation5 + $0xf8] sm:$0xff]
    %v388 = vld [vmem:[#allocation5 + $0x100] sm:$0xff]
    %v389 = vld [vmem:[#allocation5 + $0x108] sm:$0xff]
    %v390 = vld [vmem:[#allocation5 + $0x110] sm:$0xff]
    %v391 = vld [vmem:[#allocation5 + $0x118] sm:$0xff]
    %v392 = vld [vmem:[#allocation5 + $0x120] sm:$0xff]
    %v393 = vld [vmem:[#allocation5 + $0x128] sm:$0xff]
    %v394 = vld [vmem:[#allocation5 + $0x130] sm:$0xff]
    %v395 = vld [vmem:[#allocation5 + $0x138] sm:$0xff]
    %v396 = vld [vmem:[#allocation5 + $0x140] sm:$0xff]
    %v397 = vld [vmem:[#allocation5 + $0x148] sm:$0xff]
    %v398 = vld [vmem:[#allocation5 + $0x150] sm:$0xff]
    %v399 = vld [vmem:[#allocation5 + $0x158] sm:$0xff]
    %v400 = vld [vmem:[#allocation5 + $0x160] sm:$0xff]
    %v401 = vld [vmem:[#allocation5 + $0x168] sm:$0xff]
    %v402 = vld [vmem:[#allocation5 + $0x170] sm:$0xff]
    %v403 = vld [vmem:[#allocation5 + $0x178] sm:$0xff]
    %v404 = vld [vmem:[#allocation5 + $0x180] sm:$0xff]
    %v405 = vld [vmem:[#allocation5 + $0x188] sm:$0xff]
    %v406 = vld [vmem:[#allocation5 + $0x190] sm:$0xff]
    %v407 = vld [vmem:[#allocation5 + $0x198] sm:$0xff]
    %v408 = vld [vmem:[#allocation5 + $0x1a0] sm:$0xff]
    %v409 = vld [vmem:[#allocation5 + $0x1a8] sm:$0xff]
    %v410 = vld [vmem:[#allocation5 + $0x1b0] sm:$0xff]
    %v411 = vld [vmem:[#allocation5 + $0x1b8] sm:$0xff]
    %v412 = vld [vmem:[#allocation5 + $0x1c0] sm:$0xff]
    %v413 = vld [vmem:[#allocation5 + $0x1c8] sm:$0xff]
    %v414 = vld [vmem:[#allocation5 + $0x1d0] sm:$0xff]
    %v415 = vld [vmem:[#allocation5 + $0x1d8] sm:$0xff]
    %v416 = vld [vmem:[#allocation5 + $0x1e0] sm:$0xff]
    %v417 = vld [vmem:[#allocation5 + $0x1e8] sm:$0xff]
    %v418 = vld [vmem:[#allocation5 + $0x1f0] sm:$0xff]
    %v419 = vld [vmem:[#allocation5 + $0x1f8] sm:$0xff]
    %v420 = vld [vmem:[#allocation5 + $0x200] sm:$0xff]
    %v421 = vld [vmem:[#allocation5 + $0x208] sm:$0xff]
    %v422 = vld [vmem:[#allocation5 + $0x210] sm:$0xff]
    %v423 = vld [vmem:[#allocation5 + $0x218] sm:$0xff]
    %v424 = vld [vmem:[#allocation5 + $0x220] sm:$0xff]
    %v425 = vld [vmem:[#allocation5 + $0x228] sm:$0xff]
    %v426 = vld [vmem:[#allocation5 + $0x230] sm:$0xff]
    %v427 = vld [vmem:[#allocation5 + $0x238] sm:$0xff]
    %v428 = vld [vmem:[#allocation5 + $0x240] sm:$0xff]
    %v429 = vld [vmem:[#allocation5 + $0x248] sm:$0xff]
    %v430 = vld [vmem:[#allocation5 + $0x250] sm:$0xff]
    %v431 = vld [vmem:[#allocation5 + $0x258] sm:$0xff]
    %v432 = vld [vmem:[#allocation5 + $0x260] sm:$0xff]
    %v433 = vld [vmem:[#allocation5 + $0x268] sm:$0xff]
    %v434 = vld [vmem:[#allocation5 + $0x270] sm:$0xff]
    %v435 = vld [vmem:[#allocation5 + $0x278] sm:$0xff]
    %v436 = vld [vmem:[#allocation5 + $0x280] sm:$0xff]
    %v437 = vld [vmem:[#allocation5 + $0x288] sm:$0xff]
    %v438 = vld [vmem:[#allocation5 + $0x290] sm:$0xff]
    %v439 = vld [vmem:[#allocation5 + $0x298] sm:$0xff]
    %v440 = vld [vmem:[#allocation5 + $0x2a0] sm:$0xff]
    %v441 = vld [vmem:[#allocation5 + $0x2a8] sm:$0xff]
    %v442 = vld [vmem:[#allocation5 + $0x2b0] sm:$0xff]
    %v443 = vld [vmem:[#allocation5 + $0x2b8] sm:$0xff]
    %v444 = vld [vmem:[#allocation5 + $0x2c0] sm:$0xff]
    %v445 = vld [vmem:[#allocation5 + $0x2c8] sm:$0xff]
    %v446 = vld [vmem:[#allocation5 + $0x2d0] sm:$0xff]
    %v447 = vld [vmem:[#allocation5 + $0x2d8] sm:$0xff]
    %v448 = vld [vmem:[#allocation5 + $0x2e0] sm:$0xff]
    %v449 = vld [vmem:[#allocation5 + $0x2e8] sm:$0xff]
    %v450 = vld [vmem:[#allocation5 + $0x2f0] sm:$0xff]
    %v451 = vld [vmem:[#allocation5 + $0x2f8] sm:$0xff]
    %v452 = vld [vmem:[#allocation5 + $0x300] sm:$0xff]
    %v453 = vld [vmem:[#allocation5 + $0x308] sm:$0xff]
    %v454 = vld [vmem:[#allocation5 + $0x310] sm:$0xff]
    %v455 = vld [vmem:[#allocation5 + $0x318] sm:$0xff]
    %v456 = vld [vmem:[#allocation5 + $0x320] sm:$0xff]
    %v457 = vld [vmem:[#allocation5 + $0x328] sm:$0xff]
    %v458 = vld [vmem:[#allocation5 + $0x330] sm:$0xff]
    %v459 = vld [vmem:[#allocation5 + $0x338] sm:$0xff]
    %v460 = vld [vmem:[#allocation5 + $0x340] sm:$0xff]
    %v461 = vld [vmem:[#allocation5 + $0x348] sm:$0xff]
    %v462 = vld [vmem:[#allocation5 + $0x350] sm:$0xff]
    %v463 = vld [vmem:[#allocation5 + $0x358] sm:$0xff]
    %v464 = vld [vmem:[#allocation5 + $0x360] sm:$0xff]
    %v465 = vld [vmem:[#allocation5 + $0x368] sm:$0xff]
    %v466 = vld [vmem:[#allocation5 + $0x370] sm:$0xff]
    %v467 = vld [vmem:[#allocation5 + $0x378] sm:$0xff]
    %v468 = vld [vmem:[#allocation5 + $0x380] sm:$0xff]
    %v469 = vld [vmem:[#allocation5 + $0x388] sm:$0xff]
    %v470 = vld [vmem:[#allocation5 + $0x390] sm:$0xff]
    %v471 = vld [vmem:[#allocation5 + $0x398] sm:$0xff]
    %v472 = vld [vmem:[#allocation5 + $0x3a0] sm:$0xff]
    %v473 = vld [vmem:[#allocation5 + $0x3a8] sm:$0xff]
    %v474 = vld [vmem:[#allocation5 + $0x3b0] sm:$0xff]
    %v475 = vld [vmem:[#allocation5 + $0x3b8] sm:$0xff]
    %v476 = vld [vmem:[#allocation5 + $0x3c0] sm:$0xff]
    %v477 = vld [vmem:[#allocation5 + $0x3c8] sm:$0xff]
    %v478 = vld [vmem:[#allocation5 + $0x3d0] sm:$0xff]
    %v479 = vld [vmem:[#allocation5 + $0x3d8] sm:$0xff]
    %v480 = vld [vmem:[#allocation5 + $0x3e0] sm:$0xff]
    %v481 = vld [vmem:[#allocation5 + $0x3e8] sm:$0xff]
    %v482 = vld [vmem:[#allocation5 + $0x3f0] sm:$0xff]
    %v483 = vld [vmem:[#allocation5 + $0x3f8] sm:$0xff]
    %v484 = vld [vmem:[%s5] sm:$0xf]
    %v486 = vperm.slane %v484, 0
    %v487 = vperm.slane %v484, 1
    %v488 = vperm.slane %v484, 2
    %v489 = vperm.slane %v484, 3
    %494 = vmatpush.msra.mxu0 %v352
    %495 = vmatpush.msra.mxu0 %v348
    %496 = vmatpush.msra.mxu0 %v344
    %497 = vmatpush.msra.mxu0 %v340
    %498 = vmatpush.msra.mxu0 %v336
    %499 = vmatpush.msra.mxu0 %v332
    %500 = vmatpush.msra.mxu0 %v328
    %501 = vmatpush.msra.mxu0 %v324
    %502 = vmatpush.msra.mxu0 %v320
    %503 = vmatpush.msra.mxu0 %v316
    %504 = vmatpush.msra.mxu0 %v312
    %505 = vmatpush.msra.mxu0 %v308
    %506 = vmatpush.msra.mxu0 %v304
    %507 = vmatpush.msra.mxu0 %v300
    %508 = vmatpush.msra.mxu0 %v296
    %509 = vmatpush.msra.mxu0 %v292
    %510 = vmatmul.f32.gmra.mxu0 0.0
    %v511 = vpop.f32.mrf.mxu0
    %v512 = vadd.f32 0.0, %v511
    %513 = vdwg.mxu0
    %514 = vmatpush.msra.mxu0 %v353
    %515 = vmatpush.msra.mxu0 %v349
    %516 = vmatpush.msra.mxu0 %v345
    %517 = vmatpush.msra.mxu0 %v341
    %518 = vmatpush.msra.mxu0 %v337
    %519 = vmatpush.msra.mxu0 %v333
    %520 = vmatpush.msra.mxu0 %v329
    %521 = vmatpush.msra.mxu0 %v325
    %522 = vmatpush.msra.mxu0 %v321
    %523 = vmatpush.msra.mxu0 %v317
    %524 = vmatpush.msra.mxu0 %v313
    %525 = vmatpush.msra.mxu0 %v309
    %526 = vmatpush.msra.mxu0 %v305
    %527 = vmatpush.msra.mxu0 %v301
    %528 = vmatpush.msra.mxu0 %v297
    %529 = vmatpush.msra.mxu0 %v293
    %530 = vmatmul.f32.gmra.mxu0 0.0
    %v531 = vpop.f32.mrf.mxu0
    %v532 = vadd.f32 0.0, %v531
    %533 = vdwg.mxu0
    %534 = vmatpush.msra.mxu0 %v354
    %535 = vmatpush.msra.mxu0 %v350
    %536 = vmatpush.msra.mxu0 %v346
    %537 = vmatpush.msra.mxu0 %v342
    %538 = vmatpush.msra.mxu0 %v338
    %539 = vmatpush.msra.mxu0 %v334
    %540 = vmatpush.msra.mxu0 %v330
    %541 = vmatpush.msra.mxu0 %v326
    %542 = vmatpush.msra.mxu0 %v322
    %543 = vmatpush.msra.mxu0 %v318
    %544 = vmatpush.msra.mxu0 %v314
    %545 = vmatpush.msra.mxu0 %v310
    %546 = vmatpush.msra.mxu0 %v306
    %547 = vmatpush.msra.mxu0 %v302
    %548 = vmatpush.msra.mxu0 %v298
    %549 = vmatpush.msra.mxu0 %v294
    %550 = vmatmul.f32.gmra.mxu0 0.0
    %v551 = vpop.f32.mrf.mxu0
    %v552 = vadd.f32 0.0, %v551
    %553 = vdwg.mxu0
    %554 = vmatpush.msra.mxu0 %v355
    %555 = vmatpush.msra.mxu0 %v351
    %556 = vmatpush.msra.mxu0 %v347
    %557 = vmatpush.msra.mxu0 %v343
    %558 = vmatpush.msra.mxu0 %v339
    %559 = vmatpush.msra.mxu0 %v335
    %560 = vmatpush.msra.mxu0 %v331
    %561 = vmatpush.msra.mxu0 %v327
    %562 = vmatpush.msra.mxu0 %v323
    %563 = vmatpush.msra.mxu0 %v319
    %564 = vmatpush.msra.mxu0 %v315
    %565 = vmatpush.msra.mxu0 %v311
    %566 = vmatpush.msra.mxu0 %v307
    %567 = vmatpush.msra.mxu0 %v303
    %568 = vmatpush.msra.mxu0 %v299
    %569 = vmatpush.msra.mxu0 %v295
    %570 = vmatmul.f32.gmra.mxu0 0.0
    %v571 = vpop.f32.mrf.mxu0
    %v572 = vadd.f32 0.0, %v571
    %573 = vdwg.mxu0
    %v574 = vadd.f32 %v146, %v512
    %v575 = vadd.f32 %v187, %v532
    %v576 = vadd.f32 %v228, %v552
    %v577 = vadd.f32 %v269, %v572
    %v578 = vxor.u32 %v574, 2147483648
    %v579 = vmul.f32 %v578, 1.442695
    %v580 = vpow.pop %v579
    %v581 = vadd.f32 %v580, 1.0
    %v582 = vrcp.pop %v581
    %v583 = vmul.f32 %v581, %v582
    %v584 = vsub.f32 1.0, %v583
    %v585 = vmul.f32 %v582, %v584
    %v586 = vadd.f32 %v582, %v585
    %vm587 = vweird.f32 %v581
    %vm588 = vweird.f32 %v582
    %vm589 = vmor %vm587, %vm588
    %v590 = vsel %vm589, %v582, %v586
    %v591 = vand.u32 2147483647, %v581
    %vm592 = vcmp.eq.f32.partialorder %v591, 8.507059e+37
    %v593 = vand.u32 %v581, 2147483648
    %v594 = vor.u32 1.1754944e-38, %v593
    %v595 = vsel %vm592, %v594, %v590
    %v596 = vmul.f32 1.0, %v595
    %v597 = vxor.u32 %v575, 2147483648
    %v598 = vmul.f32 %v597, 1.442695
    %v599 = vpow.pop %v598
    %v600 = vadd.f32 %v599, 1.0
    %v601 = vrcp.pop %v600
    %v602 = vmul.f32 %v600, %v601
    %v603 = vsub.f32 1.0, %v602
    %v604 = vmul.f32 %v601, %v603
    %v605 = vadd.f32 %v601, %v604
    %vm606 = vweird.f32 %v600
    %vm607 = vweird.f32 %v601
    %vm608 = vmor %vm606, %vm607
    %v609 = vsel %vm608, %v601, %v605
    %v610 = vand.u32 2147483647, %v600
    %vm611 = vcmp.eq.f32.partialorder %v610, 8.507059e+37
    %v612 = vand.u32 %v600, 2147483648
    %v613 = vor.u32 1.1754944e-38, %v612
    %v614 = vsel %vm611, %v613, %v609
    %v615 = vmul.f32 1.0, %v614
    %v616 = vtanh.pop %v576
    %v617 = vxor.u32 %v577, 2147483648
    %v618 = vmul.f32 %v617, 1.442695
    %v619 = vpow.pop %v618
    %v620 = vadd.f32 %v619, 1.0
    %v621 = vrcp.pop %v620
    %v622 = vmul.f32 %v620, %v621
    %v623 = vsub.f32 1.0, %v622
    %v624 = vmul.f32 %v621, %v623
    %v625 = vadd.f32 %v621, %v624
    %vm626 = vweird.f32 %v620
    %vm627 = vweird.f32 %v621
    %vm628 = vmor %vm626, %vm627
    %v629 = vsel %vm628, %v621, %v625
    %v630 = vand.u32 2147483647, %v620
    %vm631 = vcmp.eq.f32.partialorder %v630, 8.507059e+37
    %v632 = vand.u32 %v620, 2147483648
    %v633 = vor.u32 1.1754944e-38, %v632
    %v634 = vsel %vm631, %v633, %v629
    %v635 = vmul.f32 1.0, %v634
    %v636 = vmul.f32 %v615, 0.0
    %v637 = vmul.f32 %v596, %v616
    %v638 = vadd.f32 %v636, %v637
    %v639 = vtanh.pop %v638
    %v640 = vmul.f32 %v635, %v639
    %641 = vmatpush.msra.mxu0 %v416
    %642 = vmatpush.msra.mxu0 %v412
    %643 = vmatpush.msra.mxu0 %v408
    %644 = vmatpush.msra.mxu0 %v404
    %645 = vmatpush.msra.mxu0 %v400
    %646 = vmatpush.msra.mxu0 %v396
    %647 = vmatpush.msra.mxu0 %v392
    %648 = vmatpush.msra.mxu0 %v388
    %649 = vmatpush.msra.mxu0 %v384
    %650 = vmatpush.msra.mxu0 %v380
    %651 = vmatpush.msra.mxu0 %v376
    %652 = vmatpush.msra.mxu0 %v372
    %653 = vmatpush.msra.mxu0 %v368
    %654 = vmatpush.msra.mxu0 %v364
    %655 = vmatpush.msra.mxu0 %v360
    %656 = vmatpush.msra.mxu0 %v356
    %657 = vmatmul.f32.gmra.mxu0 %v640
    %v658 = vpop.f32.mrf.mxu0
    %v659 = vadd.f32 %v486, %v658
    %660 = vdwg.mxu0
    %661 = vmatpush.msra.mxu0 %v480
    %662 = vmatpush.msra.mxu0 %v476
    %663 = vmatpush.msra.mxu0 %v472
    %664 = vmatpush.msra.mxu0 %v468
    %665 = vmatpush.msra.mxu0 %v464
    %666 = vmatpush.msra.mxu0 %v460
    %667 = vmatpush.msra.mxu0 %v456
    %668 = vmatpush.msra.mxu0 %v452
    %669 = vmatpush.msra.mxu0 %v448
    %670 = vmatpush.msra.mxu0 %v444
    %671 = vmatpush.msra.mxu0 %v440
    %672 = vmatpush.msra.mxu0 %v436
    %673 = vmatpush.msra.mxu0 %v432
    %674 = vmatpush.msra.mxu0 %v428
    %675 = vmatpush.msra.mxu0 %v424
    %676 = vmatpush.msra.mxu0 %v420
    %677 = vmatmul.f32.gmra.mxu0 0.0
    %v678 = vpop.f32.mrf.mxu0
    %v679 = vadd.f32 %v659, %v678
    %680 = vdwg.mxu0
    %681 = vmatpush.msra.mxu0 %v417
    %682 = vmatpush.msra.mxu0 %v413
    %683 = vmatpush.msra.mxu0 %v409
    %684 = vmatpush.msra.mxu0 %v405
    %685 = vmatpush.msra.mxu0 %v401
    %686 = vmatpush.msra.mxu0 %v397
    %687 = vmatpush.msra.mxu0 %v393
    %688 = vmatpush.msra.mxu0 %v389
    %689 = vmatpush.msra.mxu0 %v385
    %690 = vmatpush.msra.mxu0 %v381
    %691 = vmatpush.msra.mxu0 %v377
    %692 = vmatpush.msra.mxu0 %v373
    %693 = vmatpush.msra.mxu0 %v369
    %694 = vmatpush.msra.mxu0 %v365
    %695 = vmatpush.msra.mxu0 %v361
    %696 = vmatpush.msra.mxu0 %v357
    %697 = vmatmul.f32.gmra.mxu0 %v640
    %v698 = vpop.f32.mrf.mxu0
    %v699 = vadd.f32 %v487, %v698
    %700 = vdwg.mxu0
    %701 = vmatpush.msra.mxu0 %v481
    %702 = vmatpush.msra.mxu0 %v477
    %703 = vmatpush.msra.mxu0 %v473
    %704 = vmatpush.msra.mxu0 %v469
    %705 = vmatpush.msra.mxu0 %v465
    %706 = vmatpush.msra.mxu0 %v461
    %707 = vmatpush.msra.mxu0 %v457
    %708 = vmatpush.msra.mxu0 %v453
    %709 = vmatpush.msra.mxu0 %v449
    %710 = vmatpush.msra.mxu0 %v445
    %711 = vmatpush.msra.mxu0 %v441
    %712 = vmatpush.msra.mxu0 %v437
    %713 = vmatpush.msra.mxu0 %v433
    %714 = vmatpush.msra.mxu0 %v429
    %715 = vmatpush.msra.mxu0 %v425
    %716 = vmatpush.msra.mxu0 %v421
    %717 = vmatmul.f32.gmra.mxu0 0.0
    %v718 = vpop.f32.mrf.mxu0
    %v719 = vadd.f32 %v699, %v718
    %720 = vdwg.mxu0
    %721 = vmatpush.msra.mxu0 %v418
    %722 = vmatpush.msra.mxu0 %v414
    %723 = vmatpush.msra.mxu0 %v410
    %724 = vmatpush.msra.mxu0 %v406
    %725 = vmatpush.msra.mxu0 %v402
    %726 = vmatpush.msra.mxu0 %v398
    %727 = vmatpush.msra.mxu0 %v394
    %728 = vmatpush.msra.mxu0 %v390
    %729 = vmatpush.msra.mxu0 %v386
    %730 = vmatpush.msra.mxu0 %v382
    %731 = vmatpush.msra.mxu0 %v378
    %732 = vmatpush.msra.mxu0 %v374
    %733 = vmatpush.msra.mxu0 %v370
    %734 = vmatpush.msra.mxu0 %v366
    %735 = vmatpush.msra.mxu0 %v362
    %736 = vmatpush.msra.mxu0 %v358
    %737 = vmatmul.f32.gmra.mxu0 %v640
    %v738 = vpop.f32.mrf.mxu0
    %v739 = vadd.f32 %v488, %v738
    %740 = vdwg.mxu0
    %741 = vmatpush.msra.mxu0 %v482
    %742 = vmatpush.msra.mxu0 %v478
    %743 = vmatpush.msra.mxu0 %v474
    %744 = vmatpush.msra.mxu0 %v470
    %745 = vmatpush.msra.mxu0 %v466
    %746 = vmatpush.msra.mxu0 %v462
    %747 = vmatpush.msra.mxu0 %v458
    %748 = vmatpush.msra.mxu0 %v454
    %749 = vmatpush.msra.mxu0 %v450
    %750 = vmatpush.msra.mxu0 %v446
    %751 = vmatpush.msra.mxu0 %v442
    %752 = vmatpush.msra.mxu0 %v438
    %753 = vmatpush.msra.mxu0 %v434
    %754 = vmatpush.msra.mxu0 %v430
    %755 = vmatpush.msra.mxu0 %v426
    %756 = vmatpush.msra.mxu0 %v422
    %757 = vmatmul.f32.gmra.mxu0 0.0
    %v758 = vpop.f32.mrf.mxu0
    %v759 = vadd.f32 %v739, %v758
    %760 = vdwg.mxu0
    %761 = vmatpush.msra.mxu0 %v419
    %762 = vmatpush.msra.mxu0 %v415
    %763 = vmatpush.msra.mxu0 %v411
    %764 = vmatpush.msra.mxu0 %v407
    %765 = vmatpush.msra.mxu0 %v403
    %766 = vmatpush.msra.mxu0 %v399
    %767 = vmatpush.msra.mxu0 %v395
    %768 = vmatpush.msra.mxu0 %v391
    %769 = vmatpush.msra.mxu0 %v387
    %770 = vmatpush.msra.mxu0 %v383
    %771 = vmatpush.msra.mxu0 %v379
    %772 = vmatpush.msra.mxu0 %v375
    %773 = vmatpush.msra.mxu0 %v371
    %774 = vmatpush.msra.mxu0 %v367
    %775 = vmatpush.msra.mxu0 %v363
    %776 = vmatpush.msra.mxu0 %v359
    %777 = vmatmul.f32.gmra.mxu0 %v640
    %v778 = vpop.f32.mrf.mxu0
    %v779 = vadd.f32 %v489, %v778
    %780 = vdwg.mxu0
    %781 = vmatpush.msra.mxu0 %v483
    %782 = vmatpush.msra.mxu0 %v479
    %783 = vmatpush.msra.mxu0 %v475
    %784 = vmatpush.msra.mxu0 %v471
    %785 = vmatpush.msra.mxu0 %v467
    %786 = vmatpush.msra.mxu0 %v463
    %787 = vmatpush.msra.mxu0 %v459
    %788 = vmatpush.msra.mxu0 %v455
    %789 = vmatpush.msra.mxu0 %v451
    %790 = vmatpush.msra.mxu0 %v447
    %791 = vmatpush.msra.mxu0 %v443
    %792 = vmatpush.msra.mxu0 %v439
    %793 = vmatpush.msra.mxu0 %v435
    %794 = vmatpush.msra.mxu0 %v431
    %795 = vmatpush.msra.mxu0 %v427
    %796 = vmatpush.msra.mxu0 %v423
    %797 = vmatmul.f32.gmra.mxu0 0.0
    %v798 = vpop.f32.mrf.mxu0
    %v799 = vadd.f32 %v779, %v798
    %800 = vdwg.mxu0
    %v801 = vxor.u32 %v679, 2147483648
    %v802 = vmul.f32 %v801, 1.442695
    %v803 = vpow.pop %v802
    %v804 = vadd.f32 %v803, 1.0
    %v805 = vrcp.pop %v804
    %v806 = vmul.f32 %v804, %v805
    %v807 = vsub.f32 1.0, %v806
    %v808 = vmul.f32 %v805, %v807
    %v809 = vadd.f32 %v805, %v808
    %vm810 = vweird.f32 %v804
    %vm811 = vweird.f32 %v805
    %vm812 = vmor %vm810, %vm811
    %v813 = vsel %vm812, %v805, %v809
    %v814 = vand.u32 2147483647, %v804
    %vm815 = vcmp.eq.f32.partialorder %v814, 8.507059e+37
    %v816 = vand.u32 %v804, 2147483648
    %v817 = vor.u32 1.1754944e-38, %v816
    %v818 = vsel %vm815, %v817, %v813
    %v819 = vmul.f32 1.0, %v818
    %v820 = vxor.u32 %v719, 2147483648
    %v821 = vmul.f32 %v820, 1.442695
    %v822 = vpow.pop %v821
    %v823 = vadd.f32 %v822, 1.0
    %v824 = vrcp.pop %v823
    %v825 = vmul.f32 %v823, %v824
    %v826 = vsub.f32 1.0, %v825
    %v827 = vmul.f32 %v824, %v826
    %v828 = vadd.f32 %v824, %v827
    %vm829 = vweird.f32 %v823
    %vm830 = vweird.f32 %v824
    %vm831 = vmor %vm829, %vm830
    %v832 = vsel %vm831, %v824, %v828
    %v833 = vand.u32 2147483647, %v823
    %vm834 = vcmp.eq.f32.partialorder %v833, 8.507059e+37
    %v835 = vand.u32 %v823, 2147483648
    %v836 = vor.u32 1.1754944e-38, %v835
    %v837 = vsel %vm834, %v836, %v832
    %v838 = vmul.f32 1.0, %v837
    %v839 = vtanh.pop %v759
    %v840 = vxor.u32 %v799, 2147483648
    %v841 = vmul.f32 %v840, 1.442695
    %v842 = vpow.pop %v841
    %v843 = vadd.f32 %v842, 1.0
    %v844 = vrcp.pop %v843
    %v845 = vmul.f32 %v843, %v844
    %v846 = vsub.f32 1.0, %v845
    %v847 = vmul.f32 %v844, %v846
    %v848 = vadd.f32 %v844, %v847
    %vm849 = vweird.f32 %v843
    %vm850 = vweird.f32 %v844
    %vm851 = vmor %vm849, %vm850
    %v852 = vsel %vm851, %v844, %v848
    %v853 = vand.u32 2147483647, %v843
    %vm854 = vcmp.eq.f32.partialorder %v853, 8.507059e+37
    %v855 = vand.u32 %v843, 2147483648
    %v856 = vor.u32 1.1754944e-38, %v855
    %v857 = vsel %vm854, %v856, %v852
    %v858 = vmul.f32 1.0, %v857
    %v859 = vmul.f32 %v838, 0.0
    %v860 = vmul.f32 %v819, %v839
    %v861 = vadd.f32 %v859, %v860
    %v862 = vtanh.pop %v861
    %v863 = vmul.f32 %v858, %v862
    %864 = vmatpush.msra.mxu0 %v352
    %865 = vmatpush.msra.mxu0 %v348
    %866 = vmatpush.msra.mxu0 %v344
    %867 = vmatpush.msra.mxu0 %v340
    %868 = vmatpush.msra.mxu0 %v336
    %869 = vmatpush.msra.mxu0 %v332
    %870 = vmatpush.msra.mxu0 %v328
    %871 = vmatpush.msra.mxu0 %v324
    %872 = vmatpush.msra.mxu0 %v320
    %873 = vmatpush.msra.mxu0 %v316
    %874 = vmatpush.msra.mxu0 %v312
    %875 = vmatpush.msra.mxu0 %v308
    %876 = vmatpush.msra.mxu0 %v304
    %877 = vmatpush.msra.mxu0 %v300
    %878 = vmatpush.msra.mxu0 %v296
    %879 = vmatpush.msra.mxu0 %v292
    %880 = vmatmul.f32.gmra.mxu0 %v640
    %v881 = vpop.f32.mrf.mxu0
    %v882 = vadd.f32 0.0, %v881
    %883 = vdwg.mxu0
    %884 = vmatpush.msra.mxu0 %v353
    %885 = vmatpush.msra.mxu0 %v349
    %886 = vmatpush.msra.mxu0 %v345
    %887 = vmatpush.msra.mxu0 %v341
    %888 = vmatpush.msra.mxu0 %v337
    %889 = vmatpush.msra.mxu0 %v333
    %890 = vmatpush.msra.mxu0 %v329
    %891 = vmatpush.msra.mxu0 %v325
    %892 = vmatpush.msra.mxu0 %v321
    %893 = vmatpush.msra.mxu0 %v317
    %894 = vmatpush.msra.mxu0 %v313
    %895 = vmatpush.msra.mxu0 %v309
    %896 = vmatpush.msra.mxu0 %v305
    %897 = vmatpush.msra.mxu0 %v301
    %898 = vmatpush.msra.mxu0 %v297
    %899 = vmatpush.msra.mxu0 %v293
    %900 = vmatmul.f32.gmra.mxu0 %v640
    %v901 = vpop.f32.mrf.mxu0
    %v902 = vadd.f32 0.0, %v901
    %903 = vdwg.mxu0
    %904 = vmatpush.msra.mxu0 %v354
    %905 = vmatpush.msra.mxu0 %v350
    %906 = vmatpush.msra.mxu0 %v346
    %907 = vmatpush.msra.mxu0 %v342
    %908 = vmatpush.msra.mxu0 %v338
    %909 = vmatpush.msra.mxu0 %v334
    %910 = vmatpush.msra.mxu0 %v330
    %911 = vmatpush.msra.mxu0 %v326
    %912 = vmatpush.msra.mxu0 %v322
    %913 = vmatpush.msra.mxu0 %v318
    %914 = vmatpush.msra.mxu0 %v314
    %915 = vmatpush.msra.mxu0 %v310
    %916 = vmatpush.msra.mxu0 %v306
    %917 = vmatpush.msra.mxu0 %v302
    %918 = vmatpush.msra.mxu0 %v298
    %919 = vmatpush.msra.mxu0 %v294
    %920 = vmatmul.f32.gmra.mxu0 %v640
    %v921 = vpop.f32.mrf.mxu0
    %v922 = vadd.f32 0.0, %v921
    %923 = vdwg.mxu0
    %924 = vmatpush.msra.mxu0 %v355
    %925 = vmatpush.msra.mxu0 %v351
    %926 = vmatpush.msra.mxu0 %v347
    %927 = vmatpush.msra.mxu0 %v343
    %928 = vmatpush.msra.mxu0 %v339
    %929 = vmatpush.msra.mxu0 %v335
    %930 = vmatpush.msra.mxu0 %v331
    %931 = vmatpush.msra.mxu0 %v327
    %932 = vmatpush.msra.mxu0 %v323
    %933 = vmatpush.msra.mxu0 %v319
    %934 = vmatpush.msra.mxu0 %v315
    %935 = vmatpush.msra.mxu0 %v311
    %936 = vmatpush.msra.mxu0 %v307
    %937 = vmatpush.msra.mxu0 %v303
    %938 = vmatpush.msra.mxu0 %v299
    %939 = vmatpush.msra.mxu0 %v295
    %940 = vmatmul.f32.gmra.mxu0 %v640
    %v941 = vpop.f32.mrf.mxu0
    %v942 = vadd.f32 0.0, %v941
    %943 = vdwg.mxu0
    %v944 = vadd.f32 %v149, %v882
    %v945 = vadd.f32 %v190, %v902
    %v946 = vadd.f32 %v231, %v922
    %v947 = vadd.f32 %v272, %v942
    %v948 = vxor.u32 %v944, 2147483648
    %v949 = vmul.f32 %v948, 1.442695
    %v950 = vpow.pop %v949
    %v951 = vadd.f32 %v950, 1.0
    %v952 = vrcp.pop %v951
    %v953 = vmul.f32 %v951, %v952
    %v954 = vsub.f32 1.0, %v953
    %v955 = vmul.f32 %v952, %v954
    %v956 = vadd.f32 %v952, %v955
    %vm957 = vweird.f32 %v951
    %vm958 = vweird.f32 %v952
    %vm959 = vmor %vm957, %vm958
    %v960 = vsel %vm959, %v952, %v956
    %v961 = vand.u32 2147483647, %v951
    %vm962 = vcmp.eq.f32.partialorder %v961, 8.507059e+37
    %v963 = vand.u32 %v951, 2147483648
    %v964 = vor.u32 1.1754944e-38, %v963
    %v965 = vsel %vm962, %v964, %v960
    %v966 = vmul.f32 1.0, %v965
    %v967 = vxor.u32 %v945, 2147483648
    %v968 = vmul.f32 %v967, 1.442695
    %v969 = vpow.pop %v968
    %v970 = vadd.f32 %v969, 1.0
    %v971 = vrcp.pop %v970
    %v972 = vmul.f32 %v970, %v971
    %v973 = vsub.f32 1.0, %v972
    %v974 = vmul.f32 %v971, %v973
    %v975 = vadd.f32 %v971, %v974
    %vm976 = vweird.f32 %v970
    %vm977 = vweird.f32 %v971
    %vm978 = vmor %vm976, %vm977
    %v979 = vsel %vm978, %v971, %v975
    %v980 = vand.u32 2147483647, %v970
    %vm981 = vcmp.eq.f32.partialorder %v980, 8.507059e+37
    %v982 = vand.u32 %v970, 2147483648
    %v983 = vor.u32 1.1754944e-38, %v982
    %v984 = vsel %vm981, %v983, %v979
    %v985 = vmul.f32 1.0, %v984
    %v986 = vtanh.pop %v946
    %v987 = vxor.u32 %v947, 2147483648
    %v988 = vmul.f32 %v987, 1.442695
    %v989 = vpow.pop %v988
    %v990 = vadd.f32 %v989, 1.0
    %v991 = vrcp.pop %v990
    %v992 = vmul.f32 %v990, %v991
    %v993 = vsub.f32 1.0, %v992
    %v994 = vmul.f32 %v991, %v993
    %v995 = vadd.f32 %v991, %v994
    %vm996 = vweird.f32 %v990
    %vm997 = vweird.f32 %v991
    %vm998 = vmor %vm996, %vm997
    %v999 = vsel %vm998, %v991, %v995
    %v1000 = vand.u32 2147483647, %v990
    %vm1001 = vcmp.eq.f32.partialorder %v1000, 8.507059e+37
    %v1002 = vand.u32 %v990, 2147483648
    %v1003 = vor.u32 1.1754944e-38, %v1002
    %v1004 = vsel %vm1001, %v1003, %v999
    %v1005 = vmul.f32 1.0, %v1004
    %v1006 = vmul.f32 %v985, %v638
    %v1007 = vmul.f32 %v966, %v986
    %v1008 = vadd.f32 %v1006, %v1007
    %v1009 = vtanh.pop %v1008
    %v1010 = vmul.f32 %v1005, %v1009
    %1011 = vmatpush.msra.mxu0 %v416
    %1012 = vmatpush.msra.mxu0 %v412
    %1013 = vmatpush.msra.mxu0 %v408
    %1014 = vmatpush.msra.mxu0 %v404
    %1015 = vmatpush.msra.mxu0 %v400
    %1016 = vmatpush.msra.mxu0 %v396
    %1017 = vmatpush.msra.mxu0 %v392
    %1018 = vmatpush.msra.mxu0 %v388
    %1019 = vmatpush.msra.mxu0 %v384
    %1020 = vmatpush.msra.mxu0 %v380
    %1021 = vmatpush.msra.mxu0 %v376
    %1022 = vmatpush.msra.mxu0 %v372
    %1023 = vmatpush.msra.mxu0 %v368
    %1024 = vmatpush.msra.mxu0 %v364
    %1025 = vmatpush.msra.mxu0 %v360
    %1026 = vmatpush.msra.mxu0 %v356
    %1027 = vmatmul.f32.gmra.mxu0 %v1010
    %v1028 = vpop.f32.mrf.mxu0
    %v1029 = vadd.f32 %v486, %v1028
    %1030 = vdwg.mxu0
    %1031 = vmatpush.msra.mxu0 %v480
    %1032 = vmatpush.msra.mxu0 %v476
    %1033 = vmatpush.msra.mxu0 %v472
    %1034 = vmatpush.msra.mxu0 %v468
    %1035 = vmatpush.msra.mxu0 %v464
    %1036 = vmatpush.msra.mxu0 %v460
    %1037 = vmatpush.msra.mxu0 %v456
    %1038 = vmatpush.msra.mxu0 %v452
    %1039 = vmatpush.msra.mxu0 %v448
    %1040 = vmatpush.msra.mxu0 %v444
    %1041 = vmatpush.msra.mxu0 %v440
    %1042 = vmatpush.msra.mxu0 %v436
    %1043 = vmatpush.msra.mxu0 %v432
    %1044 = vmatpush.msra.mxu0 %v428
    %1045 = vmatpush.msra.mxu0 %v424
    %1046 = vmatpush.msra.mxu0 %v420
    %1047 = vmatmul.f32.gmra.mxu0 %v863
    %v1048 = vpop.f32.mrf.mxu0
    %v1049 = vadd.f32 %v1029, %v1048
    %1050 = vdwg.mxu0
    %1051 = vmatpush.msra.mxu0 %v417
    %1052 = vmatpush.msra.mxu0 %v413
    %1053 = vmatpush.msra.mxu0 %v409
    %1054 = vmatpush.msra.mxu0 %v405
    %1055 = vmatpush.msra.mxu0 %v401
    %1056 = vmatpush.msra.mxu0 %v397
    %1057 = vmatpush.msra.mxu0 %v393
    %1058 = vmatpush.msra.mxu0 %v389
    %1059 = vmatpush.msra.mxu0 %v385
    %1060 = vmatpush.msra.mxu0 %v381
    %1061 = vmatpush.msra.mxu0 %v377
    %1062 = vmatpush.msra.mxu0 %v373
    %1063 = vmatpush.msra.mxu0 %v369
    %1064 = vmatpush.msra.mxu0 %v365
    %1065 = vmatpush.msra.mxu0 %v361
    %1066 = vmatpush.msra.mxu0 %v357
    %1067 = vmatmul.f32.gmra.mxu0 %v1010
    %v1068 = vpop.f32.mrf.mxu0
    %v1069 = vadd.f32 %v487, %v1068
    %1070 = vdwg.mxu0
    %1071 = vmatpush.msra.mxu0 %v481
    %1072 = vmatpush.msra.mxu0 %v477
    %1073 = vmatpush.msra.mxu0 %v473
    %1074 = vmatpush.msra.mxu0 %v469
    %1075 = vmatpush.msra.mxu0 %v465
    %1076 = vmatpush.msra.mxu0 %v461
    %1077 = vmatpush.msra.mxu0 %v457
    %1078 = vmatpush.msra.mxu0 %v453
    %1079 = vmatpush.msra.mxu0 %v449
    %1080 = vmatpush.msra.mxu0 %v445
    %1081 = vmatpush.msra.mxu0 %v441
    %1082 = vmatpush.msra.mxu0 %v437
    %1083 = vmatpush.msra.mxu0 %v433
    %1084 = vmatpush.msra.mxu0 %v429
    %1085 = vmatpush.msra.mxu0 %v425
    %1086 = vmatpush.msra.mxu0 %v421
    %1087 = vmatmul.f32.gmra.mxu0 %v863
    %v1088 = vpop.f32.mrf.mxu0
    %v1089 = vadd.f32 %v1069, %v1088
    %1090 = vdwg.mxu0
    %1091 = vmatpush.msra.mxu0 %v418
    %1092 = vmatpush.msra.mxu0 %v414
    %1093 = vmatpush.msra.mxu0 %v410
    %1094 = vmatpush.msra.mxu0 %v406
    %1095 = vmatpush.msra.mxu0 %v402
    %1096 = vmatpush.msra.mxu0 %v398
    %1097 = vmatpush.msra.mxu0 %v394
    %1098 = vmatpush.msra.mxu0 %v390
    %1099 = vmatpush.msra.mxu0 %v386
    %1100 = vmatpush.msra.mxu0 %v382
    %1101 = vmatpush.msra.mxu0 %v378
    %1102 = vmatpush.msra.mxu0 %v374
    %1103 = vmatpush.msra.mxu0 %v370
    %1104 = vmatpush.msra.mxu0 %v366
    %1105 = vmatpush.msra.mxu0 %v362
    %1106 = vmatpush.msra.mxu0 %v358
    %1107 = vmatmul.f32.gmra.mxu0 %v1010
    %v1108 = vpop.f32.mrf.mxu0
    %v1109 = vadd.f32 %v488, %v1108
    %1110 = vdwg.mxu0
    %1111 = vmatpush.msra.mxu0 %v482
    %1112 = vmatpush.msra.mxu0 %v478
    %1113 = vmatpush.msra.mxu0 %v474
    %1114 = vmatpush.msra.mxu0 %v470
    %1115 = vmatpush.msra.mxu0 %v466
    %1116 = vmatpush.msra.mxu0 %v462
    %1117 = vmatpush.msra.mxu0 %v458
    %1118 = vmatpush.msra.mxu0 %v454
    %1119 = vmatpush.msra.mxu0 %v450
    %1120 = vmatpush.msra.mxu0 %v446
    %1121 = vmatpush.msra.mxu0 %v442
    %1122 = vmatpush.msra.mxu0 %v438
    %1123 = vmatpush.msra.mxu0 %v434
    %1124 = vmatpush.msra.mxu0 %v430
    %1125 = vmatpush.msra.mxu0 %v426
    %1126 = vmatpush.msra.mxu0 %v422
    %1127 = vmatmul.f32.gmra.mxu0 %v863
    %v1128 = vpop.f32.mrf.mxu0
    %v1129 = vadd.f32 %v1109, %v1128
    %1130 = vdwg.mxu0
    %1131 = vmatpush.msra.mxu0 %v419
    %1132 = vmatpush.msra.mxu0 %v415
    %1133 = vmatpush.msra.mxu0 %v411
    %1134 = vmatpush.msra.mxu0 %v407
    %1135 = vmatpush.msra.mxu0 %v403
    %1136 = vmatpush.msra.mxu0 %v399
    %1137 = vmatpush.msra.mxu0 %v395
    %1138 = vmatpush.msra.mxu0 %v391
    %1139 = vmatpush.msra.mxu0 %v387
    %1140 = vmatpush.msra.mxu0 %v383
    %1141 = vmatpush.msra.mxu0 %v379
    %1142 = vmatpush.msra.mxu0 %v375
    %1143 = vmatpush.msra.mxu0 %v371
    %1144 = vmatpush.msra.mxu0 %v367
    %1145 = vmatpush.msra.mxu0 %v363
    %1146 = vmatpush.msra.mxu0 %v359
    %1147 = vmatmul.f32.gmra.mxu0 %v1010
    %v1148 = vpop.f32.mrf.mxu0
    %v1149 = vadd.f32 %v489, %v1148
    %1150 = vdwg.mxu0
    %1151 = vmatpush.msra.mxu0 %v483
    %1152 = vmatpush.msra.mxu0 %v479
    %1153 = vmatpush.msra.mxu0 %v475
    %1154 = vmatpush.msra.mxu0 %v471
    %1155 = vmatpush.msra.mxu0 %v467
    %1156 = vmatpush.msra.mxu0 %v463
    %1157 = vmatpush.msra.mxu0 %v459
    %1158 = vmatpush.msra.mxu0 %v455
    %1159 = vmatpush.msra.mxu0 %v451
    %1160 = vmatpush.msra.mxu0 %v447
    %1161 = vmatpush.msra.mxu0 %v443
    %1162 = vmatpush.msra.mxu0 %v439
    %1163 = vmatpush.msra.mxu0 %v435
    %1164 = vmatpush.msra.mxu0 %v431
    %1165 = vmatpush.msra.mxu0 %v427
    %1166 = vmatpush.msra.mxu0 %v423
    %1167 = vmatmul.f32.gmra.mxu0 %v863
    %v1168 = vpop.f32.mrf.mxu0
    %v1169 = vadd.f32 %v1149, %v1168
    %1170 = vdwg.mxu0
    %v1171 = vxor.u32 %v1049, 2147483648
    %v1172 = vmul.f32 %v1171, 1.442695
    %v1173 = vpow.pop %v1172
    %v1174 = vadd.f32 %v1173, 1.0
    %v1175 = vrcp.pop %v1174
    %v1176 = vmul.f32 %v1174, %v1175
    %v1177 = vsub.f32 1.0, %v1176
    %v1178 = vmul.f32 %v1175, %v1177
    %v1179 = vadd.f32 %v1175, %v1178
    %vm1180 = vweird.f32 %v1174
    %vm1181 = vweird.f32 %v1175
    %vm1182 = vmor %vm1180, %vm1181
    %v1183 = vsel %vm1182, %v1175, %v1179
    %v1184 = vand.u32 2147483647, %v1174
    %vm1185 = vcmp.eq.f32.partialorder %v1184, 8.507059e+37
    %v1186 = vand.u32 %v1174, 2147483648
    %v1187 = vor.u32 1.1754944e-38, %v1186
    %v1188 = vsel %vm1185, %v1187, %v1183
    %v1189 = vmul.f32 1.0, %v1188
    %v1190 = vxor.u32 %v1089, 2147483648
    %v1191 = vmul.f32 %v1190, 1.442695
    %v1192 = vpow.pop %v1191
    %v1193 = vadd.f32 %v1192, 1.0
    %v1194 = vrcp.pop %v1193
    %v1195 = vmul.f32 %v1193, %v1194
    %v1196 = vsub.f32 1.0, %v1195
    %v1197 = vmul.f32 %v1194, %v1196
    %v1198 = vadd.f32 %v1194, %v1197
    %vm1199 = vweird.f32 %v1193
    %vm1200 = vweird.f32 %v1194
    %vm1201 = vmor %vm1199, %vm1200
    %v1202 = vsel %vm1201, %v1194, %v1198
    %v1203 = vand.u32 2147483647, %v1193
    %vm1204 = vcmp.eq.f32.partialorder %v1203, 8.507059e+37
    %v1205 = vand.u32 %v1193, 2147483648
    %v1206 = vor.u32 1.1754944e-38, %v1205
    %v1207 = vsel %vm1204, %v1206, %v1202
    %v1208 = vmul.f32 1.0, %v1207
    %v1209 = vtanh.pop %v1129
    %v1210 = vxor.u32 %v1169, 2147483648
    %v1211 = vmul.f32 %v1210, 1.442695
    %v1212 = vpow.pop %v1211
    %v1213 = vadd.f32 %v1212, 1.0
    %v1214 = vrcp.pop %v1213
    %v1215 = vmul.f32 %v1213, %v1214
    %v1216 = vsub.f32 1.0, %v1215
    %v1217 = vmul.f32 %v1214, %v1216
    %v1218 = vadd.f32 %v1214, %v1217
    %vm1219 = vweird.f32 %v1213
    %vm1220 = vweird.f32 %v1214
    %vm1221 = vmor %vm1219, %vm1220
    %v1222 = vsel %vm1221, %v1214, %v1218
    %v1223 = vand.u32 2147483647, %v1213
    %vm1224 = vcmp.eq.f32.partialorder %v1223, 8.507059e+37
    %v1225 = vand.u32 %v1213, 2147483648
    %v1226 = vor.u32 1.1754944e-38, %v1225
    %v1227 = vsel %vm1224, %v1226, %v1222
    %v1228 = vmul.f32 1.0, %v1227
    %v1229 = vmul.f32 %v1208, %v861
    %v1230 = vmul.f32 %v1189, %v1209
    %v1231 = vadd.f32 %v1229, %v1230
    %v1232 = vtanh.pop %v1231
    %v1233 = vmul.f32 %v1228, %v1232
    %1234 = vmatpush.msra.mxu0 %v352
    %1235 = vmatpush.msra.mxu0 %v348
    %1236 = vmatpush.msra.mxu0 %v344
    %1237 = vmatpush.msra.mxu0 %v340
    %1238 = vmatpush.msra.mxu0 %v336
    %1239 = vmatpush.msra.mxu0 %v332
    %1240 = vmatpush.msra.mxu0 %v328
    %1241 = vmatpush.msra.mxu0 %v324
    %1242 = vmatpush.msra.mxu0 %v320
    %1243 = vmatpush.msra.mxu0 %v316
    %1244 = vmatpush.msra.mxu0 %v312
    %1245 = vmatpush.msra.mxu0 %v308
    %1246 = vmatpush.msra.mxu0 %v304
    %1247 = vmatpush.msra.mxu0 %v300
    %1248 = vmatpush.msra.mxu0 %v296
    %1249 = vmatpush.msra.mxu0 %v292
    %1250 = vmatmul.f32.gmra.mxu0 %v1010
    %v1251 = vpop.f32.mrf.mxu0
    %v1252 = vadd.f32 0.0, %v1251
    %1253 = vdwg.mxu0
    %1254 = vmatpush.msra.mxu0 %v353
    %1255 = vmatpush.msra.mxu0 %v349
    %1256 = vmatpush.msra.mxu0 %v345
    %1257 = vmatpush.msra.mxu0 %v341
    %1258 = vmatpush.msra.mxu0 %v337
    %1259 = vmatpush.msra.mxu0 %v333
    %1260 = vmatpush.msra.mxu0 %v329
    %1261 = vmatpush.msra.mxu0 %v325
    %1262 = vmatpush.msra.mxu0 %v321
    %1263 = vmatpush.msra.mxu0 %v317
    %1264 = vmatpush.msra.mxu0 %v313
    %1265 = vmatpush.msra.mxu0 %v309
    %1266 = vmatpush.msra.mxu0 %v305
    %1267 = vmatpush.msra.mxu0 %v301
    %1268 = vmatpush.msra.mxu0 %v297
    %1269 = vmatpush.msra.mxu0 %v293
    %1270 = vmatmul.f32.gmra.mxu0 %v1010
    %v1271 = vpop.f32.mrf.mxu0
    %v1272 = vadd.f32 0.0, %v1271
    %1273 = vdwg.mxu0
    %1274 = vmatpush.msra.mxu0 %v354
    %1275 = vmatpush.msra.mxu0 %v350
    %1276 = vmatpush.msra.mxu0 %v346
    %1277 = vmatpush.msra.mxu0 %v342
    %1278 = vmatpush.msra.mxu0 %v338
    %1279 = vmatpush.msra.mxu0 %v334
    %1280 = vmatpush.msra.mxu0 %v330
    %1281 = vmatpush.msra.mxu0 %v326
    %1282 = vmatpush.msra.mxu0 %v322
    %1283 = vmatpush.msra.mxu0 %v318
    %1284 = vmatpush.msra.mxu0 %v314
    %1285 = vmatpush.msra.mxu0 %v310
    %1286 = vmatpush.msra.mxu0 %v306
    %1287 = vmatpush.msra.mxu0 %v302
    %1288 = vmatpush.msra.mxu0 %v298
    %1289 = vmatpush.msra.mxu0 %v294
    %1290 = vmatmul.f32.gmra.mxu0 %v1010
    %v1291 = vpop.f32.mrf.mxu0
    %v1292 = vadd.f32 0.0, %v1291
    %1293 = vdwg.mxu0
    %1294 = vmatpush.msra.mxu0 %v355
    %1295 = vmatpush.msra.mxu0 %v351
    %1296 = vmatpush.msra.mxu0 %v347
    %1297 = vmatpush.msra.mxu0 %v343
    %1298 = vmatpush.msra.mxu0 %v339
    %1299 = vmatpush.msra.mxu0 %v335
    %1300 = vmatpush.msra.mxu0 %v331
    %1301 = vmatpush.msra.mxu0 %v327
    %1302 = vmatpush.msra.mxu0 %v323
    %1303 = vmatpush.msra.mxu0 %v319
    %1304 = vmatpush.msra.mxu0 %v315
    %1305 = vmatpush.msra.mxu0 %v311
    %1306 = vmatpush.msra.mxu0 %v307
    %1307 = vmatpush.msra.mxu0 %v303
    %1308 = vmatpush.msra.mxu0 %v299
    %1309 = vmatpush.msra.mxu0 %v295
    %1310 = vmatmul.f32.gmra.mxu0 %v1010
    %v1311 = vpop.f32.mrf.mxu0
    %v1312 = vadd.f32 0.0, %v1311
    %1313 = vdwg.mxu0
    %v1314 = vadd.f32 %v152, %v1252
    %v1315 = vadd.f32 %v193, %v1272
    %v1316 = vadd.f32 %v234, %v1292
    %v1317 = vadd.f32 %v275, %v1312
    %v1318 = vxor.u32 %v1314, 2147483648
    %v1319 = vmul.f32 %v1318, 1.442695
    %v1320 = vpow.pop %v1319
    %v1321 = vadd.f32 %v1320, 1.0
    %v1322 = vrcp.pop %v1321
    %v1323 = vmul.f32 %v1321, %v1322
    %v1324 = vsub.f32 1.0, %v1323
    %v1325 = vmul.f32 %v1322, %v1324
    %v1326 = vadd.f32 %v1322, %v1325
    %vm1327 = vweird.f32 %v1321
    %vm1328 = vweird.f32 %v1322
    %vm1329 = vmor %vm1327, %vm1328
    %v1330 = vsel %vm1329, %v1322, %v1326
    %v1331 = vand.u32 2147483647, %v1321
    %vm1332 = vcmp.eq.f32.partialorder %v1331, 8.507059e+37
    %v1333 = vand.u32 %v1321, 2147483648
    %v1334 = vor.u32 1.1754944e-38, %v1333
    %v1335 = vsel %vm1332, %v1334, %v1330
    %v1336 = vmul.f32 1.0, %v1335
    %v1337 = vxor.u32 %v1315, 2147483648
    %v1338 = vmul.f32 %v1337, 1.442695
    %v1339 = vpow.pop %v1338
    %v1340 = vadd.f32 %v1339, 1.0
    %v1341 = vrcp.pop %v1340
    %v1342 = vmul.f32 %v1340, %v1341
    %v1343 = vsub.f32 1.0, %v1342
    %v1344 = vmul.f32 %v1341, %v1343
    %v1345 = vadd.f32 %v1341, %v1344
    %vm1346 = vweird.f32 %v1340
    %vm1347 = vweird.f32 %v1341
    %vm1348 = vmor %vm1346, %vm1347
    %v1349 = vsel %vm1348, %v1341, %v1345
    %v1350 = vand.u32 2147483647, %v1340
    %vm1351 = vcmp.eq.f32.partialorder %v1350, 8.507059e+37
    %v1352 = vand.u32 %v1340, 2147483648
    %v1353 = vor.u32 1.1754944e-38, %v1352
    %v1354 = vsel %vm1351, %v1353, %v1349
    %v1355 = vmul.f32 1.0, %v1354
    %v1356 = vtanh.pop %v1316
    %v1357 = vxor.u32 %v1317, 2147483648
    %v1358 = vmul.f32 %v1357, 1.442695
    %v1359 = vpow.pop %v1358
    %v1360 = vadd.f32 %v1359, 1.0
    %v1361 = vrcp.pop %v1360
    %v1362 = vmul.f32 %v1360, %v1361
    %v1363 = vsub.f32 1.0, %v1362
    %v1364 = vmul.f32 %v1361, %v1363
    %v1365 = vadd.f32 %v1361, %v1364
    %vm1366 = vweird.f32 %v1360
    %vm1367 = vweird.f32 %v1361
    %vm1368 = vmor %vm1366, %vm1367
    %v1369 = vsel %vm1368, %v1361, %v1365
    %v1370 = vand.u32 2147483647, %v1360
    %vm1371 = vcmp.eq.f32.partialorder %v1370, 8.507059e+37
    %v1372 = vand.u32 %v1360, 2147483648
    %v1373 = vor.u32 1.1754944e-38, %v1372
    %v1374 = vsel %vm1371, %v1373, %v1369
    %v1375 = vmul.f32 1.0, %v1374
    %v1376 = vmul.f32 %v1355, %v1008
    %v1377 = vmul.f32 %v1336, %v1356
    %v1378 = vadd.f32 %v1376, %v1377
    %v1379 = vtanh.pop %v1378
    %v1380 = vmul.f32 %v1375, %v1379
    %1381 = vmatpush.msra.mxu0 %v416
    %1382 = vmatpush.msra.mxu0 %v412
    %1383 = vmatpush.msra.mxu0 %v408
    %1384 = vmatpush.msra.mxu0 %v404
    %1385 = vmatpush.msra.mxu0 %v400
    %1386 = vmatpush.msra.mxu0 %v396
    %1387 = vmatpush.msra.mxu0 %v392
    %1388 = vmatpush.msra.mxu0 %v388
    %1389 = vmatpush.msra.mxu0 %v384
    %1390 = vmatpush.msra.mxu0 %v380
    %1391 = vmatpush.msra.mxu0 %v376
    %1392 = vmatpush.msra.mxu0 %v372
    %1393 = vmatpush.msra.mxu0 %v368
    %1394 = vmatpush.msra.mxu0 %v364
    %1395 = vmatpush.msra.mxu0 %v360
    %1396 = vmatpush.msra.mxu0 %v356
    %1397 = vmatmul.f32.gmra.mxu0 %v1380
    %v1398 = vpop.f32.mrf.mxu0
    %v1399 = vadd.f32 %v486, %v1398
    %1400 = vdwg.mxu0
    %1401 = vmatpush.msra.mxu0 %v480
    %1402 = vmatpush.msra.mxu0 %v476
    %1403 = vmatpush.msra.mxu0 %v472
    %1404 = vmatpush.msra.mxu0 %v468
    %1405 = vmatpush.msra.mxu0 %v464
    %1406 = vmatpush.msra.mxu0 %v460
    %1407 = vmatpush.msra.mxu0 %v456
    %1408 = vmatpush.msra.mxu0 %v452
    %1409 = vmatpush.msra.mxu0 %v448
    %1410 = vmatpush.msra.mxu0 %v444
    %1411 = vmatpush.msra.mxu0 %v440
    %1412 = vmatpush.msra.mxu0 %v436
    %1413 = vmatpush.msra.mxu0 %v432
    %1414 = vmatpush.msra.mxu0 %v428
    %1415 = vmatpush.msra.mxu0 %v424
    %1416 = vmatpush.msra.mxu0 %v420
    %1417 = vmatmul.f32.gmra.mxu0 %v1233
    %v1418 = vpop.f32.mrf.mxu0
    %v1419 = vadd.f32 %v1399, %v1418
    %1420 = vdwg.mxu0
    %1421 = vmatpush.msra.mxu0 %v417
    %1422 = vmatpush.msra.mxu0 %v413
    %1423 = vmatpush.msra.mxu0 %v409
    %1424 = vmatpush.msra.mxu0 %v405
    %1425 = vmatpush.msra.mxu0 %v401
    %1426 = vmatpush.msra.mxu0 %v397
    %1427 = vmatpush.msra.mxu0 %v393
    %1428 = vmatpush.msra.mxu0 %v389
    %1429 = vmatpush.msra.mxu0 %v385
    %1430 = vmatpush.msra.mxu0 %v381
    %1431 = vmatpush.msra.mxu0 %v377
    %1432 = vmatpush.msra.mxu0 %v373
    %1433 = vmatpush.msra.mxu0 %v369
    %1434 = vmatpush.msra.mxu0 %v365
    %1435 = vmatpush.msra.mxu0 %v361
    %1436 = vmatpush.msra.mxu0 %v357
    %1437 = vmatmul.f32.gmra.mxu0 %v1380
    %v1438 = vpop.f32.mrf.mxu0
    %v1439 = vadd.f32 %v487, %v1438
    %1440 = vdwg.mxu0
    %1441 = vmatpush.msra.mxu0 %v481
    %1442 = vmatpush.msra.mxu0 %v477
    %1443 = vmatpush.msra.mxu0 %v473
    %1444 = vmatpush.msra.mxu0 %v469
    %1445 = vmatpush.msra.mxu0 %v465
    %1446 = vmatpush.msra.mxu0 %v461
    %1447 = vmatpush.msra.mxu0 %v457
    %1448 = vmatpush.msra.mxu0 %v453
    %1449 = vmatpush.msra.mxu0 %v449
    %1450 = vmatpush.msra.mxu0 %v445
    %1451 = vmatpush.msra.mxu0 %v441
    %1452 = vmatpush.msra.mxu0 %v437
    %1453 = vmatpush.msra.mxu0 %v433
    %1454 = vmatpush.msra.mxu0 %v429
    %1455 = vmatpush.msra.mxu0 %v425
    %1456 = vmatpush.msra.mxu0 %v421
    %1457 = vmatmul.f32.gmra.mxu0 %v1233
    %v1458 = vpop.f32.mrf.mxu0
    %v1459 = vadd.f32 %v1439, %v1458
    %1460 = vdwg.mxu0
    %1461 = vmatpush.msra.mxu0 %v418
    %1462 = vmatpush.msra.mxu0 %v414
    %1463 = vmatpush.msra.mxu0 %v410
    %1464 = vmatpush.msra.mxu0 %v406
    %1465 = vmatpush.msra.mxu0 %v402
    %1466 = vmatpush.msra.mxu0 %v398
    %1467 = vmatpush.msra.mxu0 %v394
    %1468 = vmatpush.msra.mxu0 %v390
    %1469 = vmatpush.msra.mxu0 %v386
    %1470 = vmatpush.msra.mxu0 %v382
    %1471 = vmatpush.msra.mxu0 %v378
    %1472 = vmatpush.msra.mxu0 %v374
    %1473 = vmatpush.msra.mxu0 %v370
    %1474 = vmatpush.msra.mxu0 %v366
    %1475 = vmatpush.msra.mxu0 %v362
    %1476 = vmatpush.msra.mxu0 %v358
    %1477 = vmatmul.f32.gmra.mxu0 %v1380
    %v1478 = vpop.f32.mrf.mxu0
    %v1479 = vadd.f32 %v488, %v1478
    %1480 = vdwg.mxu0
    %1481 = vmatpush.msra.mxu0 %v482
    %1482 = vmatpush.msra.mxu0 %v478
    %1483 = vmatpush.msra.mxu0 %v474
    %1484 = vmatpush.msra.mxu0 %v470
    %1485 = vmatpush.msra.mxu0 %v466
    %1486 = vmatpush.msra.mxu0 %v462
    %1487 = vmatpush.msra.mxu0 %v458
    %1488 = vmatpush.msra.mxu0 %v454
    %1489 = vmatpush.msra.mxu0 %v450
    %1490 = vmatpush.msra.mxu0 %v446
    %1491 = vmatpush.msra.mxu0 %v442
    %1492 = vmatpush.msra.mxu0 %v438
    %1493 = vmatpush.msra.mxu0 %v434
    %1494 = vmatpush.msra.mxu0 %v430
    %1495 = vmatpush.msra.mxu0 %v426
    %1496 = vmatpush.msra.mxu0 %v422
    %1497 = vmatmul.f32.gmra.mxu0 %v1233
    %v1498 = vpop.f32.mrf.mxu0
    %v1499 = vadd.f32 %v1479, %v1498
    %1500 = vdwg.mxu0
    %1501 = vmatpush.msra.mxu0 %v419
    %1502 = vmatpush.msra.mxu0 %v415
    %1503 = vmatpush.msra.mxu0 %v411
    %1504 = vmatpush.msra.mxu0 %v407
    %1505 = vmatpush.msra.mxu0 %v403
    %1506 = vmatpush.msra.mxu0 %v399
    %1507 = vmatpush.msra.mxu0 %v395
    %1508 = vmatpush.msra.mxu0 %v391
    %1509 = vmatpush.msra.mxu0 %v387
    %1510 = vmatpush.msra.mxu0 %v383
    %1511 = vmatpush.msra.mxu0 %v379
    %1512 = vmatpush.msra.mxu0 %v375
    %1513 = vmatpush.msra.mxu0 %v371
    %1514 = vmatpush.msra.mxu0 %v367
    %1515 = vmatpush.msra.mxu0 %v363
    %1516 = vmatpush.msra.mxu0 %v359
    %1517 = vmatmul.f32.gmra.mxu0 %v1380
    %v1518 = vpop.f32.mrf.mxu0
    %v1519 = vadd.f32 %v489, %v1518
    %1520 = vdwg.mxu0
    %1521 = vmatpush.msra.mxu0 %v483
    %1522 = vmatpush.msra.mxu0 %v479
    %1523 = vmatpush.msra.mxu0 %v475
    %1524 = vmatpush.msra.mxu0 %v471
    %1525 = vmatpush.msra.mxu0 %v467
    %1526 = vmatpush.msra.mxu0 %v463
    %1527 = vmatpush.msra.mxu0 %v459
    %1528 = vmatpush.msra.mxu0 %v455
    %1529 = vmatpush.msra.mxu0 %v451
    %1530 = vmatpush.msra.mxu0 %v447
    %1531 = vmatpush.msra.mxu0 %v443
    %1532 = vmatpush.msra.mxu0 %v439
    %1533 = vmatpush.msra.mxu0 %v435
    %1534 = vmatpush.msra.mxu0 %v431
    %1535 = vmatpush.msra.mxu0 %v427
    %1536 = vmatpush.msra.mxu0 %v423
    %1537 = vmatmul.f32.gmra.mxu0 %v1233
    %v1538 = vpop.f32.mrf.mxu0
    %v1539 = vadd.f32 %v1519, %v1538
    %1540 = vdwg.mxu0
    %v1541 = vxor.u32 %v1419, 2147483648
    %v1542 = vmul.f32 %v1541, 1.442695
    %v1543 = vpow.pop %v1542
    %v1544 = vadd.f32 %v1543, 1.0
    %v1545 = vrcp.pop %v1544
    %v1546 = vmul.f32 %v1544, %v1545
    %v1547 = vsub.f32 1.0, %v1546
    %v1548 = vmul.f32 %v1545, %v1547
    %v1549 = vadd.f32 %v1545, %v1548
    %vm1550 = vweird.f32 %v1544
    %vm1551 = vweird.f32 %v1545
    %vm1552 = vmor %vm1550, %vm1551
    %v1553 = vsel %vm1552, %v1545, %v1549
    %v1554 = vand.u32 2147483647, %v1544
    %vm1555 = vcmp.eq.f32.partialorder %v1554, 8.507059e+37
    %v1556 = vand.u32 %v1544, 2147483648
    %v1557 = vor.u32 1.1754944e-38, %v1556
    %v1558 = vsel %vm1555, %v1557, %v1553
    %v1559 = vmul.f32 1.0, %v1558
    %v1560 = vxor.u32 %v1459, 2147483648
    %v1561 = vmul.f32 %v1560, 1.442695
    %v1562 = vpow.pop %v1561
    %v1563 = vadd.f32 %v1562, 1.0
    %v1564 = vrcp.pop %v1563
    %v1565 = vmul.f32 %v1563, %v1564
    %v1566 = vsub.f32 1.0, %v1565
    %v1567 = vmul.f32 %v1564, %v1566
    %v1568 = vadd.f32 %v1564, %v1567
    %vm1569 = vweird.f32 %v1563
    %vm1570 = vweird.f32 %v1564
    %vm1571 = vmor %vm1569, %vm1570
    %v1572 = vsel %vm1571, %v1564, %v1568
    %v1573 = vand.u32 2147483647, %v1563
    %vm1574 = vcmp.eq.f32.partialorder %v1573, 8.507059e+37
    %v1575 = vand.u32 %v1563, 2147483648
    %v1576 = vor.u32 1.1754944e-38, %v1575
    %v1577 = vsel %vm1574, %v1576, %v1572
    %v1578 = vmul.f32 1.0, %v1577
    %v1579 = vtanh.pop %v1499
    %v1580 = vxor.u32 %v1539, 2147483648
    %v1581 = vmul.f32 %v1580, 1.442695
    %v1582 = vpow.pop %v1581
    %v1583 = vadd.f32 %v1582, 1.0
    %v1584 = vrcp.pop %v1583
    %v1585 = vmul.f32 %v1583, %v1584
    %v1586 = vsub.f32 1.0, %v1585
    %v1587 = vmul.f32 %v1584, %v1586
    %v1588 = vadd.f32 %v1584, %v1587
    %vm1589 = vweird.f32 %v1583
    %vm1590 = vweird.f32 %v1584
    %vm1591 = vmor %vm1589, %vm1590
    %v1592 = vsel %vm1591, %v1584, %v1588
    %v1593 = vand.u32 2147483647, %v1583
    %vm1594 = vcmp.eq.f32.partialorder %v1593, 8.507059e+37
    %v1595 = vand.u32 %v1583, 2147483648
    %v1596 = vor.u32 1.1754944e-38, %v1595
    %v1597 = vsel %vm1594, %v1596, %v1592
    %v1598 = vmul.f32 1.0, %v1597
    %v1599 = vmul.f32 %v1578, %v1231
    %v1600 = vmul.f32 %v1559, %v1579
    %v1601 = vadd.f32 %v1599, %v1600
    %v1602 = vtanh.pop %v1601
    %v1603 = vmul.f32 %v1598, %v1602
    %1604 = vmatpush.msra.mxu0 %v352
    %1605 = vmatpush.msra.mxu0 %v348
    %1606 = vmatpush.msra.mxu0 %v344
    %1607 = vmatpush.msra.mxu0 %v340
    %1608 = vmatpush.msra.mxu0 %v336
    %1609 = vmatpush.msra.mxu0 %v332
    %1610 = vmatpush.msra.mxu0 %v328
    %1611 = vmatpush.msra.mxu0 %v324
    %1612 = vmatpush.msra.mxu0 %v320
    %1613 = vmatpush.msra.mxu0 %v316
    %1614 = vmatpush.msra.mxu0 %v312
    %1615 = vmatpush.msra.mxu0 %v308
    %1616 = vmatpush.msra.mxu0 %v304
    %1617 = vmatpush.msra.mxu0 %v300
    %1618 = vmatpush.msra.mxu0 %v296
    %1619 = vmatpush.msra.mxu0 %v292
    %1620 = vmatmul.f32.gmra.mxu0 %v1380
    %v1621 = vpop.f32.mrf.mxu0
    %v1622 = vadd.f32 0.0, %v1621
    %1623 = vdwg.mxu0
    %1624 = vmatpush.msra.mxu0 %v353
    %1625 = vmatpush.msra.mxu0 %v349
    %1626 = vmatpush.msra.mxu0 %v345
    %1627 = vmatpush.msra.mxu0 %v341
    %1628 = vmatpush.msra.mxu0 %v337
    %1629 = vmatpush.msra.mxu0 %v333
    %1630 = vmatpush.msra.mxu0 %v329
    %1631 = vmatpush.msra.mxu0 %v325
    %1632 = vmatpush.msra.mxu0 %v321
    %1633 = vmatpush.msra.mxu0 %v317
    %1634 = vmatpush.msra.mxu0 %v313
    %1635 = vmatpush.msra.mxu0 %v309
    %1636 = vmatpush.msra.mxu0 %v305
    %1637 = vmatpush.msra.mxu0 %v301
    %1638 = vmatpush.msra.mxu0 %v297
    %1639 = vmatpush.msra.mxu0 %v293
    %1640 = vmatmul.f32.gmra.mxu0 %v1380
    %v1641 = vpop.f32.mrf.mxu0
    %v1642 = vadd.f32 0.0, %v1641
    %1643 = vdwg.mxu0
    %1644 = vmatpush.msra.mxu0 %v354
    %1645 = vmatpush.msra.mxu0 %v350
    %1646 = vmatpush.msra.mxu0 %v346
    %1647 = vmatpush.msra.mxu0 %v342
    %1648 = vmatpush.msra.mxu0 %v338
    %1649 = vmatpush.msra.mxu0 %v334
    %1650 = vmatpush.msra.mxu0 %v330
    %1651 = vmatpush.msra.mxu0 %v326
    %1652 = vmatpush.msra.mxu0 %v322
    %1653 = vmatpush.msra.mxu0 %v318
    %1654 = vmatpush.msra.mxu0 %v314
    %1655 = vmatpush.msra.mxu0 %v310
    %1656 = vmatpush.msra.mxu0 %v306
    %1657 = vmatpush.msra.mxu0 %v302
    %1658 = vmatpush.msra.mxu0 %v298
    %1659 = vmatpush.msra.mxu0 %v294
    %1660 = vmatmul.f32.gmra.mxu0 %v1380
    %v1661 = vpop.f32.mrf.mxu0
    %v1662 = vadd.f32 0.0, %v1661
    %1663 = vdwg.mxu0
    %1664 = vmatpush.msra.mxu0 %v355
    %1665 = vmatpush.msra.mxu0 %v351
    %1666 = vmatpush.msra.mxu0 %v347
    %1667 = vmatpush.msra.mxu0 %v343
    %1668 = vmatpush.msra.mxu0 %v339
    %1669 = vmatpush.msra.mxu0 %v335
    %1670 = vmatpush.msra.mxu0 %v331
    %1671 = vmatpush.msra.mxu0 %v327
    %1672 = vmatpush.msra.mxu0 %v323
    %1673 = vmatpush.msra.mxu0 %v319
    %1674 = vmatpush.msra.mxu0 %v315
    %1675 = vmatpush.msra.mxu0 %v311
    %1676 = vmatpush.msra.mxu0 %v307
    %1677 = vmatpush.msra.mxu0 %v303
    %1678 = vmatpush.msra.mxu0 %v299
    %1679 = vmatpush.msra.mxu0 %v295
    %1680 = vmatmul.f32.gmra.mxu0 %v1380
    %v1681 = vpop.f32.mrf.mxu0
    %v1682 = vadd.f32 0.0, %v1681
    %1683 = vdwg.mxu0
    %v1684 = vadd.f32 %v155, %v1622
    %v1685 = vadd.f32 %v196, %v1642
    %v1686 = vadd.f32 %v237, %v1662
    %v1687 = vadd.f32 %v278, %v1682
    %v1688 = vxor.u32 %v1684, 2147483648
    %v1689 = vmul.f32 %v1688, 1.442695
    %v1690 = vpow.pop %v1689
    %v1691 = vadd.f32 %v1690, 1.0
    %v1692 = vrcp.pop %v1691
    %v1693 = vmul.f32 %v1691, %v1692
    %v1694 = vsub.f32 1.0, %v1693
    %v1695 = vmul.f32 %v1692, %v1694
    %v1696 = vadd.f32 %v1692, %v1695
    %vm1697 = vweird.f32 %v1691
    %vm1698 = vweird.f32 %v1692
    %vm1699 = vmor %vm1697, %vm1698
    %v1700 = vsel %vm1699, %v1692, %v1696
    %v1701 = vand.u32 2147483647, %v1691
    %vm1702 = vcmp.eq.f32.partialorder %v1701, 8.507059e+37
    %v1703 = vand.u32 %v1691, 2147483648
    %v1704 = vor.u32 1.1754944e-38, %v1703
    %v1705 = vsel %vm1702, %v1704, %v1700
    %v1706 = vmul.f32 1.0, %v1705
    %v1707 = vxor.u32 %v1685, 2147483648
    %v1708 = vmul.f32 %v1707, 1.442695
    %v1709 = vpow.pop %v1708
    %v1710 = vadd.f32 %v1709, 1.0
    %v1711 = vrcp.pop %v1710
    %v1712 = vmul.f32 %v1710, %v1711
    %v1713 = vsub.f32 1.0, %v1712
    %v1714 = vmul.f32 %v1711, %v1713
    %v1715 = vadd.f32 %v1711, %v1714
    %vm1716 = vweird.f32 %v1710
    %vm1717 = vweird.f32 %v1711
    %vm1718 = vmor %vm1716, %vm1717
    %v1719 = vsel %vm1718, %v1711, %v1715
    %v1720 = vand.u32 2147483647, %v1710
    %vm1721 = vcmp.eq.f32.partialorder %v1720, 8.507059e+37
    %v1722 = vand.u32 %v1710, 2147483648
    %v1723 = vor.u32 1.1754944e-38, %v1722
    %v1724 = vsel %vm1721, %v1723, %v1719
    %v1725 = vmul.f32 1.0, %v1724
    %v1726 = vtanh.pop %v1686
    %v1727 = vxor.u32 %v1687, 2147483648
    %v1728 = vmul.f32 %v1727, 1.442695
    %v1729 = vpow.pop %v1728
    %v1730 = vadd.f32 %v1729, 1.0
    %v1731 = vrcp.pop %v1730
    %v1732 = vmul.f32 %v1730, %v1731
    %v1733 = vsub.f32 1.0, %v1732
    %v1734 = vmul.f32 %v1731, %v1733
    %v1735 = vadd.f32 %v1731, %v1734
    %vm1736 = vweird.f32 %v1730
    %vm1737 = vweird.f32 %v1731
    %vm1738 = vmor %vm1736, %vm1737
    %v1739 = vsel %vm1738, %v1731, %v1735
    %v1740 = vand.u32 2147483647, %v1730
    %vm1741 = vcmp.eq.f32.partialorder %v1740, 8.507059e+37
    %v1742 = vand.u32 %v1730, 2147483648
    %v1743 = vor.u32 1.1754944e-38, %v1742
    %v1744 = vsel %vm1741, %v1743, %v1739
    %v1745 = vmul.f32 1.0, %v1744
    %v1746 = vmul.f32 %v1725, %v1378
    %v1747 = vmul.f32 %v1706, %v1726
    %v1748 = vadd.f32 %v1746, %v1747
    %v1749 = vtanh.pop %v1748
    %v1750 = vmul.f32 %v1745, %v1749
    %1751 = vmatpush.msra.mxu0 %v416
    %1752 = vmatpush.msra.mxu0 %v412
    %1753 = vmatpush.msra.mxu0 %v408
    %1754 = vmatpush.msra.mxu0 %v404
    %1755 = vmatpush.msra.mxu0 %v400
    %1756 = vmatpush.msra.mxu0 %v396
    %1757 = vmatpush.msra.mxu0 %v392
    %1758 = vmatpush.msra.mxu0 %v388
    %1759 = vmatpush.msra.mxu0 %v384
    %1760 = vmatpush.msra.mxu0 %v380
    %1761 = vmatpush.msra.mxu0 %v376
    %1762 = vmatpush.msra.mxu0 %v372
    %1763 = vmatpush.msra.mxu0 %v368
    %1764 = vmatpush.msra.mxu0 %v364
    %1765 = vmatpush.msra.mxu0 %v360
    %1766 = vmatpush.msra.mxu0 %v356
    %1767 = vmatmul.f32.gmra.mxu0 %v1750
    %v1768 = vpop.f32.mrf.mxu0
    %v1769 = vadd.f32 %v486, %v1768
    %1770 = vdwg.mxu0
    %1771 = vmatpush.msra.mxu0 %v480
    %1772 = vmatpush.msra.mxu0 %v476
    %1773 = vmatpush.msra.mxu0 %v472
    %1774 = vmatpush.msra.mxu0 %v468
    %1775 = vmatpush.msra.mxu0 %v464
    %1776 = vmatpush.msra.mxu0 %v460
    %1777 = vmatpush.msra.mxu0 %v456
    %1778 = vmatpush.msra.mxu0 %v452
    %1779 = vmatpush.msra.mxu0 %v448
    %1780 = vmatpush.msra.mxu0 %v444
    %1781 = vmatpush.msra.mxu0 %v440
    %1782 = vmatpush.msra.mxu0 %v436
    %1783 = vmatpush.msra.mxu0 %v432
    %1784 = vmatpush.msra.mxu0 %v428
    %1785 = vmatpush.msra.mxu0 %v424
    %1786 = vmatpush.msra.mxu0 %v420
    %1787 = vmatmul.f32.gmra.mxu0 %v1603
    %v1788 = vpop.f32.mrf.mxu0
    %v1789 = vadd.f32 %v1769, %v1788
    %1790 = vdwg.mxu0
    %1791 = vmatpush.msra.mxu0 %v417
    %1792 = vmatpush.msra.mxu0 %v413
    %1793 = vmatpush.msra.mxu0 %v409
    %1794 = vmatpush.msra.mxu0 %v405
    %1795 = vmatpush.msra.mxu0 %v401
    %1796 = vmatpush.msra.mxu0 %v397
    %1797 = vmatpush.msra.mxu0 %v393
    %1798 = vmatpush.msra.mxu0 %v389
    %1799 = vmatpush.msra.mxu0 %v385
    %1800 = vmatpush.msra.mxu0 %v381
    %1801 = vmatpush.msra.mxu0 %v377
    %1802 = vmatpush.msra.mxu0 %v373
    %1803 = vmatpush.msra.mxu0 %v369
    %1804 = vmatpush.msra.mxu0 %v365
    %1805 = vmatpush.msra.mxu0 %v361
    %1806 = vmatpush.msra.mxu0 %v357
    %1807 = vmatmul.f32.gmra.mxu0 %v1750
    %v1808 = vpop.f32.mrf.mxu0
    %v1809 = vadd.f32 %v487, %v1808
    %1810 = vdwg.mxu0
    %1811 = vmatpush.msra.mxu0 %v481
    %1812 = vmatpush.msra.mxu0 %v477
    %1813 = vmatpush.msra.mxu0 %v473
    %1814 = vmatpush.msra.mxu0 %v469
    %1815 = vmatpush.msra.mxu0 %v465
    %1816 = vmatpush.msra.mxu0 %v461
    %1817 = vmatpush.msra.mxu0 %v457
    %1818 = vmatpush.msra.mxu0 %v453
    %1819 = vmatpush.msra.mxu0 %v449
    %1820 = vmatpush.msra.mxu0 %v445
    %1821 = vmatpush.msra.mxu0 %v441
    %1822 = vmatpush.msra.mxu0 %v437
    %1823 = vmatpush.msra.mxu0 %v433
    %1824 = vmatpush.msra.mxu0 %v429
    %1825 = vmatpush.msra.mxu0 %v425
    %1826 = vmatpush.msra.mxu0 %v421
    %1827 = vmatmul.f32.gmra.mxu0 %v1603
    %v1828 = vpop.f32.mrf.mxu0
    %v1829 = vadd.f32 %v1809, %v1828
    %1830 = vdwg.mxu0
    %1831 = vmatpush.msra.mxu0 %v418
    %1832 = vmatpush.msra.mxu0 %v414
    %1833 = vmatpush.msra.mxu0 %v410
    %1834 = vmatpush.msra.mxu0 %v406
    %1835 = vmatpush.msra.mxu0 %v402
    %1836 = vmatpush.msra.mxu0 %v398
    %1837 = vmatpush.msra.mxu0 %v394
    %1838 = vmatpush.msra.mxu0 %v390
    %1839 = vmatpush.msra.mxu0 %v386
    %1840 = vmatpush.msra.mxu0 %v382
    %1841 = vmatpush.msra.mxu0 %v378
    %1842 = vmatpush.msra.mxu0 %v374
    %1843 = vmatpush.msra.mxu0 %v370
    %1844 = vmatpush.msra.mxu0 %v366
    %1845 = vmatpush.msra.mxu0 %v362
    %1846 = vmatpush.msra.mxu0 %v358
    %1847 = vmatmul.f32.gmra.mxu0 %v1750
    %v1848 = vpop.f32.mrf.mxu0
    %v1849 = vadd.f32 %v488, %v1848
    %1850 = vdwg.mxu0
    %1851 = vmatpush.msra.mxu0 %v482
    %1852 = vmatpush.msra.mxu0 %v478
    %1853 = vmatpush.msra.mxu0 %v474
    %1854 = vmatpush.msra.mxu0 %v470
    %1855 = vmatpush.msra.mxu0 %v466
    %1856 = vmatpush.msra.mxu0 %v462
    %1857 = vmatpush.msra.mxu0 %v458
    %1858 = vmatpush.msra.mxu0 %v454
    %1859 = vmatpush.msra.mxu0 %v450
    %1860 = vmatpush.msra.mxu0 %v446
    %1861 = vmatpush.msra.mxu0 %v442
    %1862 = vmatpush.msra.mxu0 %v438
    %1863 = vmatpush.msra.mxu0 %v434
    %1864 = vmatpush.msra.mxu0 %v430
    %1865 = vmatpush.msra.mxu0 %v426
    %1866 = vmatpush.msra.mxu0 %v422
    %1867 = vmatmul.f32.gmra.mxu0 %v1603
    %v1868 = vpop.f32.mrf.mxu0
    %v1869 = vadd.f32 %v1849, %v1868
    %1870 = vdwg.mxu0
    %1871 = vmatpush.msra.mxu0 %v419
    %1872 = vmatpush.msra.mxu0 %v415
    %1873 = vmatpush.msra.mxu0 %v411
    %1874 = vmatpush.msra.mxu0 %v407
    %1875 = vmatpush.msra.mxu0 %v403
    %1876 = vmatpush.msra.mxu0 %v399
    %1877 = vmatpush.msra.mxu0 %v395
    %1878 = vmatpush.msra.mxu0 %v391
    %1879 = vmatpush.msra.mxu0 %v387
    %1880 = vmatpush.msra.mxu0 %v383
    %1881 = vmatpush.msra.mxu0 %v379
    %1882 = vmatpush.msra.mxu0 %v375
    %1883 = vmatpush.msra.mxu0 %v371
    %1884 = vmatpush.msra.mxu0 %v367
    %1885 = vmatpush.msra.mxu0 %v363
    %1886 = vmatpush.msra.mxu0 %v359
    %1887 = vmatmul.f32.gmra.mxu0 %v1750
    %v1888 = vpop.f32.mrf.mxu0
    %v1889 = vadd.f32 %v489, %v1888
    %1890 = vdwg.mxu0
    %1891 = vmatpush.msra.mxu0 %v483
    %1892 = vmatpush.msra.mxu0 %v479
    %1893 = vmatpush.msra.mxu0 %v475
    %1894 = vmatpush.msra.mxu0 %v471
    %1895 = vmatpush.msra.mxu0 %v467
    %1896 = vmatpush.msra.mxu0 %v463
    %1897 = vmatpush.msra.mxu0 %v459
    %1898 = vmatpush.msra.mxu0 %v455
    %1899 = vmatpush.msra.mxu0 %v451
    %1900 = vmatpush.msra.mxu0 %v447
    %1901 = vmatpush.msra.mxu0 %v443
    %1902 = vmatpush.msra.mxu0 %v439
    %1903 = vmatpush.msra.mxu0 %v435
    %1904 = vmatpush.msra.mxu0 %v431
    %1905 = vmatpush.msra.mxu0 %v427
    %1906 = vmatpush.msra.mxu0 %v423
    %1907 = vmatmul.f32.gmra.mxu0 %v1603
    %v1908 = vpop.f32.mrf.mxu0
    %v1909 = vadd.f32 %v1889, %v1908
    %1910 = vdwg.mxu0
    %v1911 = vxor.u32 %v1789, 2147483648
    %v1912 = vmul.f32 %v1911, 1.442695
    %v1913 = vpow.pop %v1912
    %v1914 = vadd.f32 %v1913, 1.0
    %v1915 = vrcp.pop %v1914
    %v1916 = vmul.f32 %v1914, %v1915
    %v1917 = vsub.f32 1.0, %v1916
    %v1918 = vmul.f32 %v1915, %v1917
    %v1919 = vadd.f32 %v1915, %v1918
    %vm1920 = vweird.f32 %v1914
    %vm1921 = vweird.f32 %v1915
    %vm1922 = vmor %vm1920, %vm1921
    %v1923 = vsel %vm1922, %v1915, %v1919
    %v1924 = vand.u32 2147483647, %v1914
    %vm1925 = vcmp.eq.f32.partialorder %v1924, 8.507059e+37
    %v1926 = vand.u32 %v1914, 2147483648
    %v1927 = vor.u32 1.1754944e-38, %v1926
    %v1928 = vsel %vm1925, %v1927, %v1923
    %v1929 = vmul.f32 1.0, %v1928
    %v1930 = vxor.u32 %v1829, 2147483648
    %v1931 = vmul.f32 %v1930, 1.442695
    %v1932 = vpow.pop %v1931
    %v1933 = vadd.f32 %v1932, 1.0
    %v1934 = vrcp.pop %v1933
    %v1935 = vmul.f32 %v1933, %v1934
    %v1936 = vsub.f32 1.0, %v1935
    %v1937 = vmul.f32 %v1934, %v1936
    %v1938 = vadd.f32 %v1934, %v1937
    %vm1939 = vweird.f32 %v1933
    %vm1940 = vweird.f32 %v1934
    %vm1941 = vmor %vm1939, %vm1940
    %v1942 = vsel %vm1941, %v1934, %v1938
    %v1943 = vand.u32 2147483647, %v1933
    %vm1944 = vcmp.eq.f32.partialorder %v1943, 8.507059e+37
    %v1945 = vand.u32 %v1933, 2147483648
    %v1946 = vor.u32 1.1754944e-38, %v1945
    %v1947 = vsel %vm1944, %v1946, %v1942
    %v1948 = vmul.f32 1.0, %v1947
    %v1949 = vtanh.pop %v1869
    %v1950 = vxor.u32 %v1909, 2147483648
    %v1951 = vmul.f32 %v1950, 1.442695
    %v1952 = vpow.pop %v1951
    %v1953 = vadd.f32 %v1952, 1.0
    %v1954 = vrcp.pop %v1953
    %v1955 = vmul.f32 %v1953, %v1954
    %v1956 = vsub.f32 1.0, %v1955
    %v1957 = vmul.f32 %v1954, %v1956
    %v1958 = vadd.f32 %v1954, %v1957
    %vm1959 = vweird.f32 %v1953
    %vm1960 = vweird.f32 %v1954
    %vm1961 = vmor %vm1959, %vm1960
    %v1962 = vsel %vm1961, %v1954, %v1958
    %v1963 = vand.u32 2147483647, %v1953
    %vm1964 = vcmp.eq.f32.partialorder %v1963, 8.507059e+37
    %v1965 = vand.u32 %v1953, 2147483648
    %v1966 = vor.u32 1.1754944e-38, %v1965
    %v1967 = vsel %vm1964, %v1966, %v1962
    %v1968 = vmul.f32 1.0, %v1967
    %v1969 = vmul.f32 %v1948, %v1601
    %v1970 = vmul.f32 %v1929, %v1949
    %v1971 = vadd.f32 %v1969, %v1970
    %v1972 = vtanh.pop %v1971
    %v1973 = vmul.f32 %v1968, %v1972
    %1974 = vmatpush.msra.mxu0 %v352
    %1975 = vmatpush.msra.mxu0 %v348
    %1976 = vmatpush.msra.mxu0 %v344
    %1977 = vmatpush.msra.mxu0 %v340
    %1978 = vmatpush.msra.mxu0 %v336
    %1979 = vmatpush.msra.mxu0 %v332
    %1980 = vmatpush.msra.mxu0 %v328
    %1981 = vmatpush.msra.mxu0 %v324
    %1982 = vmatpush.msra.mxu0 %v320
    %1983 = vmatpush.msra.mxu0 %v316
    %1984 = vmatpush.msra.mxu0 %v312
    %1985 = vmatpush.msra.mxu0 %v308
    %1986 = vmatpush.msra.mxu0 %v304
    %1987 = vmatpush.msra.mxu0 %v300
    %1988 = vmatpush.msra.mxu0 %v296
    %1989 = vmatpush.msra.mxu0 %v292
    %1990 = vmatmul.f32.gmra.mxu0 %v1750
    %v1991 = vpop.f32.mrf.mxu0
    %v1992 = vadd.f32 0.0, %v1991
    %1993 = vdwg.mxu0
    %1994 = vmatpush.msra.mxu0 %v353
    %1995 = vmatpush.msra.mxu0 %v349
    %1996 = vmatpush.msra.mxu0 %v345
    %1997 = vmatpush.msra.mxu0 %v341
    %1998 = vmatpush.msra.mxu0 %v337
    %1999 = vmatpush.msra.mxu0 %v333
    %2000 = vmatpush.msra.mxu0 %v329
    %2001 = vmatpush.msra.mxu0 %v325
    %2002 = vmatpush.msra.mxu0 %v321
    %2003 = vmatpush.msra.mxu0 %v317
    %2004 = vmatpush.msra.mxu0 %v313
    %2005 = vmatpush.msra.mxu0 %v309
    %2006 = vmatpush.msra.mxu0 %v305
    %2007 = vmatpush.msra.mxu0 %v301
    %2008 = vmatpush.msra.mxu0 %v297
    %2009 = vmatpush.msra.mxu0 %v293
    %2010 = vmatmul.f32.gmra.mxu0 %v1750
    %v2011 = vpop.f32.mrf.mxu0
    %v2012 = vadd.f32 0.0, %v2011
    %2013 = vdwg.mxu0
    %2014 = vmatpush.msra.mxu0 %v354
    %2015 = vmatpush.msra.mxu0 %v350
    %2016 = vmatpush.msra.mxu0 %v346
    %2017 = vmatpush.msra.mxu0 %v342
    %2018 = vmatpush.msra.mxu0 %v338
    %2019 = vmatpush.msra.mxu0 %v334
    %2020 = vmatpush.msra.mxu0 %v330
    %2021 = vmatpush.msra.mxu0 %v326
    %2022 = vmatpush.msra.mxu0 %v322
    %2023 = vmatpush.msra.mxu0 %v318
    %2024 = vmatpush.msra.mxu0 %v314
    %2025 = vmatpush.msra.mxu0 %v310
    %2026 = vmatpush.msra.mxu0 %v306
    %2027 = vmatpush.msra.mxu0 %v302
    %2028 = vmatpush.msra.mxu0 %v298
    %2029 = vmatpush.msra.mxu0 %v294
    %2030 = vmatmul.f32.gmra.mxu0 %v1750
    %v2031 = vpop.f32.mrf.mxu0
    %v2032 = vadd.f32 0.0, %v2031
    %2033 = vdwg.mxu0
    %2034 = vmatpush.msra.mxu0 %v355
    %2035 = vmatpush.msra.mxu0 %v351
    %2036 = vmatpush.msra.mxu0 %v347
    %2037 = vmatpush.msra.mxu0 %v343
    %2038 = vmatpush.msra.mxu0 %v339
    %2039 = vmatpush.msra.mxu0 %v335
    %2040 = vmatpush.msra.mxu0 %v331
    %2041 = vmatpush.msra.mxu0 %v327
    %2042 = vmatpush.msra.mxu0 %v323
    %2043 = vmatpush.msra.mxu0 %v319
    %2044 = vmatpush.msra.mxu0 %v315
    %2045 = vmatpush.msra.mxu0 %v311
    %2046 = vmatpush.msra.mxu0 %v307
    %2047 = vmatpush.msra.mxu0 %v303
    %2048 = vmatpush.msra.mxu0 %v299
    %2049 = vmatpush.msra.mxu0 %v295
    %2050 = vmatmul.f32.gmra.mxu0 %v1750
    %v2051 = vpop.f32.mrf.mxu0
    %v2052 = vadd.f32 0.0, %v2051
    %2053 = vdwg.mxu0
    %v2054 = vadd.f32 %v158, %v1992
    %v2055 = vadd.f32 %v199, %v2012
    %v2056 = vadd.f32 %v240, %v2032
    %v2057 = vadd.f32 %v281, %v2052
    %v2058 = vxor.u32 %v2054, 2147483648
    %v2059 = vmul.f32 %v2058, 1.442695
    %v2060 = vpow.pop %v2059
    %v2061 = vadd.f32 %v2060, 1.0
    %v2062 = vrcp.pop %v2061
    %v2063 = vmul.f32 %v2061, %v2062
    %v2064 = vsub.f32 1.0, %v2063
    %v2065 = vmul.f32 %v2062, %v2064
    %v2066 = vadd.f32 %v2062, %v2065
    %vm2067 = vweird.f32 %v2061
    %vm2068 = vweird.f32 %v2062
    %vm2069 = vmor %vm2067, %vm2068
    %v2070 = vsel %vm2069, %v2062, %v2066
    %v2071 = vand.u32 2147483647, %v2061
    %vm2072 = vcmp.eq.f32.partialorder %v2071, 8.507059e+37
    %v2073 = vand.u32 %v2061, 2147483648
    %v2074 = vor.u32 1.1754944e-38, %v2073
    %v2075 = vsel %vm2072, %v2074, %v2070
    %v2076 = vmul.f32 1.0, %v2075
    %v2077 = vxor.u32 %v2055, 2147483648
    %v2078 = vmul.f32 %v2077, 1.442695
    %v2079 = vpow.pop %v2078
    %v2080 = vadd.f32 %v2079, 1.0
    %v2081 = vrcp.pop %v2080
    %v2082 = vmul.f32 %v2080, %v2081
    %v2083 = vsub.f32 1.0, %v2082
    %v2084 = vmul.f32 %v2081, %v2083
    %v2085 = vadd.f32 %v2081, %v2084
    %vm2086 = vweird.f32 %v2080
    %vm2087 = vweird.f32 %v2081
    %vm2088 = vmor %vm2086, %vm2087
    %v2089 = vsel %vm2088, %v2081, %v2085
    %v2090 = vand.u32 2147483647, %v2080
    %vm2091 = vcmp.eq.f32.partialorder %v2090, 8.507059e+37
    %v2092 = vand.u32 %v2080, 2147483648
    %v2093 = vor.u32 1.1754944e-38, %v2092
    %v2094 = vsel %vm2091, %v2093, %v2089
    %v2095 = vmul.f32 1.0, %v2094
    %v2096 = vtanh.pop %v2056
    %v2097 = vxor.u32 %v2057, 2147483648
    %v2098 = vmul.f32 %v2097, 1.442695
    %v2099 = vpow.pop %v2098
    %v2100 = vadd.f32 %v2099, 1.0
    %v2101 = vrcp.pop %v2100
    %v2102 = vmul.f32 %v2100, %v2101
    %v2103 = vsub.f32 1.0, %v2102
    %v2104 = vmul.f32 %v2101, %v2103
    %v2105 = vadd.f32 %v2101, %v2104
    %vm2106 = vweird.f32 %v2100
    %vm2107 = vweird.f32 %v2101
    %vm2108 = vmor %vm2106, %vm2107
    %v2109 = vsel %vm2108, %v2101, %v2105
    %v2110 = vand.u32 2147483647, %v2100
    %vm2111 = vcmp.eq.f32.partialorder %v2110, 8.507059e+37
    %v2112 = vand.u32 %v2100, 2147483648
    %v2113 = vor.u32 1.1754944e-38, %v2112
    %v2114 = vsel %vm2111, %v2113, %v2109
    %v2115 = vmul.f32 1.0, %v2114
    %v2116 = vmul.f32 %v2095, %v1748
    %v2117 = vmul.f32 %v2076, %v2096
    %v2118 = vadd.f32 %v2116, %v2117
    %v2119 = vtanh.pop %v2118
    %v2120 = vmul.f32 %v2115, %v2119
    %2121 = vmatpush.msra.mxu0 %v416
    %2122 = vmatpush.msra.mxu0 %v412
    %2123 = vmatpush.msra.mxu0 %v408
    %2124 = vmatpush.msra.mxu0 %v404
    %2125 = vmatpush.msra.mxu0 %v400
    %2126 = vmatpush.msra.mxu0 %v396
    %2127 = vmatpush.msra.mxu0 %v392
    %2128 = vmatpush.msra.mxu0 %v388
    %2129 = vmatpush.msra.mxu0 %v384
    %2130 = vmatpush.msra.mxu0 %v380
    %2131 = vmatpush.msra.mxu0 %v376
    %2132 = vmatpush.msra.mxu0 %v372
    %2133 = vmatpush.msra.mxu0 %v368
    %2134 = vmatpush.msra.mxu0 %v364
    %2135 = vmatpush.msra.mxu0 %v360
    %2136 = vmatpush.msra.mxu0 %v356
    %2137 = vmatmul.f32.gmra.mxu0 %v2120
    %v2138 = vpop.f32.mrf.mxu0
    %v2139 = vadd.f32 %v486, %v2138
    %2140 = vdwg.mxu0
    %2141 = vmatpush.msra.mxu0 %v480
    %2142 = vmatpush.msra.mxu0 %v476
    %2143 = vmatpush.msra.mxu0 %v472
    %2144 = vmatpush.msra.mxu0 %v468
    %2145 = vmatpush.msra.mxu0 %v464
    %2146 = vmatpush.msra.mxu0 %v460
    %2147 = vmatpush.msra.mxu0 %v456
    %2148 = vmatpush.msra.mxu0 %v452
    %2149 = vmatpush.msra.mxu0 %v448
    %2150 = vmatpush.msra.mxu0 %v444
    %2151 = vmatpush.msra.mxu0 %v440
    %2152 = vmatpush.msra.mxu0 %v436
    %2153 = vmatpush.msra.mxu0 %v432
    %2154 = vmatpush.msra.mxu0 %v428
    %2155 = vmatpush.msra.mxu0 %v424
    %2156 = vmatpush.msra.mxu0 %v420
    %2157 = vmatmul.f32.gmra.mxu0 %v1973
    %v2158 = vpop.f32.mrf.mxu0
    %v2159 = vadd.f32 %v2139, %v2158
    %2160 = vdwg.mxu0
    %2161 = vmatpush.msra.mxu0 %v417
    %2162 = vmatpush.msra.mxu0 %v413
    %2163 = vmatpush.msra.mxu0 %v409
    %2164 = vmatpush.msra.mxu0 %v405
    %2165 = vmatpush.msra.mxu0 %v401
    %2166 = vmatpush.msra.mxu0 %v397
    %2167 = vmatpush.msra.mxu0 %v393
    %2168 = vmatpush.msra.mxu0 %v389
    %2169 = vmatpush.msra.mxu0 %v385
    %2170 = vmatpush.msra.mxu0 %v381
    %2171 = vmatpush.msra.mxu0 %v377
    %2172 = vmatpush.msra.mxu0 %v373
    %2173 = vmatpush.msra.mxu0 %v369
    %2174 = vmatpush.msra.mxu0 %v365
    %2175 = vmatpush.msra.mxu0 %v361
    %2176 = vmatpush.msra.mxu0 %v357
    %2177 = vmatmul.f32.gmra.mxu0 %v2120
    %v2178 = vpop.f32.mrf.mxu0
    %v2179 = vadd.f32 %v487, %v2178
    %2180 = vdwg.mxu0
    %2181 = vmatpush.msra.mxu0 %v481
    %2182 = vmatpush.msra.mxu0 %v477
    %2183 = vmatpush.msra.mxu0 %v473
    %2184 = vmatpush.msra.mxu0 %v469
    %2185 = vmatpush.msra.mxu0 %v465
    %2186 = vmatpush.msra.mxu0 %v461
    %2187 = vmatpush.msra.mxu0 %v457
    %2188 = vmatpush.msra.mxu0 %v453
    %2189 = vmatpush.msra.mxu0 %v449
    %2190 = vmatpush.msra.mxu0 %v445
    %2191 = vmatpush.msra.mxu0 %v441
    %2192 = vmatpush.msra.mxu0 %v437
    %2193 = vmatpush.msra.mxu0 %v433
    %2194 = vmatpush.msra.mxu0 %v429
    %2195 = vmatpush.msra.mxu0 %v425
    %2196 = vmatpush.msra.mxu0 %v421
    %2197 = vmatmul.f32.gmra.mxu0 %v1973
    %v2198 = vpop.f32.mrf.mxu0
    %v2199 = vadd.f32 %v2179, %v2198
    %2200 = vdwg.mxu0
    %2201 = vmatpush.msra.mxu0 %v418
    %2202 = vmatpush.msra.mxu0 %v414
    %2203 = vmatpush.msra.mxu0 %v410
    %2204 = vmatpush.msra.mxu0 %v406
    %2205 = vmatpush.msra.mxu0 %v402
    %2206 = vmatpush.msra.mxu0 %v398
    %2207 = vmatpush.msra.mxu0 %v394
    %2208 = vmatpush.msra.mxu0 %v390
    %2209 = vmatpush.msra.mxu0 %v386
    %2210 = vmatpush.msra.mxu0 %v382
    %2211 = vmatpush.msra.mxu0 %v378
    %2212 = vmatpush.msra.mxu0 %v374
    %2213 = vmatpush.msra.mxu0 %v370
    %2214 = vmatpush.msra.mxu0 %v366
    %2215 = vmatpush.msra.mxu0 %v362
    %2216 = vmatpush.msra.mxu0 %v358
    %2217 = vmatmul.f32.gmra.mxu0 %v2120
    %v2218 = vpop.f32.mrf.mxu0
    %v2219 = vadd.f32 %v488, %v2218
    %2220 = vdwg.mxu0
    %2221 = vmatpush.msra.mxu0 %v482
    %2222 = vmatpush.msra.mxu0 %v478
    %2223 = vmatpush.msra.mxu0 %v474
    %2224 = vmatpush.msra.mxu0 %v470
    %2225 = vmatpush.msra.mxu0 %v466
    %2226 = vmatpush.msra.mxu0 %v462
    %2227 = vmatpush.msra.mxu0 %v458
    %2228 = vmatpush.msra.mxu0 %v454
    %2229 = vmatpush.msra.mxu0 %v450
    %2230 = vmatpush.msra.mxu0 %v446
    %2231 = vmatpush.msra.mxu0 %v442
    %2232 = vmatpush.msra.mxu0 %v438
    %2233 = vmatpush.msra.mxu0 %v434
    %2234 = vmatpush.msra.mxu0 %v430
    %2235 = vmatpush.msra.mxu0 %v426
    %2236 = vmatpush.msra.mxu0 %v422
    %2237 = vmatmul.f32.gmra.mxu0 %v1973
    %v2238 = vpop.f32.mrf.mxu0
    %v2239 = vadd.f32 %v2219, %v2238
    %2240 = vdwg.mxu0
    %2241 = vmatpush.msra.mxu0 %v419
    %2242 = vmatpush.msra.mxu0 %v415
    %2243 = vmatpush.msra.mxu0 %v411
    %2244 = vmatpush.msra.mxu0 %v407
    %2245 = vmatpush.msra.mxu0 %v403
    %2246 = vmatpush.msra.mxu0 %v399
    %2247 = vmatpush.msra.mxu0 %v395
    %2248 = vmatpush.msra.mxu0 %v391
    %2249 = vmatpush.msra.mxu0 %v387
    %2250 = vmatpush.msra.mxu0 %v383
    %2251 = vmatpush.msra.mxu0 %v379
    %2252 = vmatpush.msra.mxu0 %v375
    %2253 = vmatpush.msra.mxu0 %v371
    %2254 = vmatpush.msra.mxu0 %v367
    %2255 = vmatpush.msra.mxu0 %v363
    %2256 = vmatpush.msra.mxu0 %v359
    %2257 = vmatmul.f32.gmra.mxu0 %v2120
    %v2258 = vpop.f32.mrf.mxu0
    %v2259 = vadd.f32 %v489, %v2258
    %2260 = vdwg.mxu0
    %2261 = vmatpush.msra.mxu0 %v483
    %2262 = vmatpush.msra.mxu0 %v479
    %2263 = vmatpush.msra.mxu0 %v475
    %2264 = vmatpush.msra.mxu0 %v471
    %2265 = vmatpush.msra.mxu0 %v467
    %2266 = vmatpush.msra.mxu0 %v463
    %2267 = vmatpush.msra.mxu0 %v459
    %2268 = vmatpush.msra.mxu0 %v455
    %2269 = vmatpush.msra.mxu0 %v451
    %2270 = vmatpush.msra.mxu0 %v447
    %2271 = vmatpush.msra.mxu0 %v443
    %2272 = vmatpush.msra.mxu0 %v439
    %2273 = vmatpush.msra.mxu0 %v435
    %2274 = vmatpush.msra.mxu0 %v431
    %2275 = vmatpush.msra.mxu0 %v427
    %2276 = vmatpush.msra.mxu0 %v423
    %2277 = vmatmul.f32.gmra.mxu0 %v1973
    %v2278 = vpop.f32.mrf.mxu0
    %v2279 = vadd.f32 %v2259, %v2278
    %2280 = vdwg.mxu0
    %v2281 = vxor.u32 %v2159, 2147483648
    %v2282 = vmul.f32 %v2281, 1.442695
    %v2283 = vpow.pop %v2282
    %v2284 = vadd.f32 %v2283, 1.0
    %v2285 = vrcp.pop %v2284
    %v2286 = vmul.f32 %v2284, %v2285
    %v2287 = vsub.f32 1.0, %v2286
    %v2288 = vmul.f32 %v2285, %v2287
    %v2289 = vadd.f32 %v2285, %v2288
    %vm2290 = vweird.f32 %v2284
    %vm2291 = vweird.f32 %v2285
    %vm2292 = vmor %vm2290, %vm2291
    %v2293 = vsel %vm2292, %v2285, %v2289
    %v2294 = vand.u32 2147483647, %v2284
    %vm2295 = vcmp.eq.f32.partialorder %v2294, 8.507059e+37
    %v2296 = vand.u32 %v2284, 2147483648
    %v2297 = vor.u32 1.1754944e-38, %v2296
    %v2298 = vsel %vm2295, %v2297, %v2293
    %v2299 = vmul.f32 1.0, %v2298
    %v2300 = vxor.u32 %v2199, 2147483648
    %v2301 = vmul.f32 %v2300, 1.442695
    %v2302 = vpow.pop %v2301
    %v2303 = vadd.f32 %v2302, 1.0
    %v2304 = vrcp.pop %v2303
    %v2305 = vmul.f32 %v2303, %v2304
    %v2306 = vsub.f32 1.0, %v2305
    %v2307 = vmul.f32 %v2304, %v2306
    %v2308 = vadd.f32 %v2304, %v2307
    %vm2309 = vweird.f32 %v2303
    %vm2310 = vweird.f32 %v2304
    %vm2311 = vmor %vm2309, %vm2310
    %v2312 = vsel %vm2311, %v2304, %v2308
    %v2313 = vand.u32 2147483647, %v2303
    %vm2314 = vcmp.eq.f32.partialorder %v2313, 8.507059e+37
    %v2315 = vand.u32 %v2303, 2147483648
    %v2316 = vor.u32 1.1754944e-38, %v2315
    %v2317 = vsel %vm2314, %v2316, %v2312
    %v2318 = vmul.f32 1.0, %v2317
    %v2319 = vtanh.pop %v2239
    %v2320 = vxor.u32 %v2279, 2147483648
    %v2321 = vmul.f32 %v2320, 1.442695
    %v2322 = vpow.pop %v2321
    %v2323 = vadd.f32 %v2322, 1.0
    %v2324 = vrcp.pop %v2323
    %v2325 = vmul.f32 %v2323, %v2324
    %v2326 = vsub.f32 1.0, %v2325
    %v2327 = vmul.f32 %v2324, %v2326
    %v2328 = vadd.f32 %v2324, %v2327
    %vm2329 = vweird.f32 %v2323
    %vm2330 = vweird.f32 %v2324
    %vm2331 = vmor %vm2329, %vm2330
    %v2332 = vsel %vm2331, %v2324, %v2328
    %v2333 = vand.u32 2147483647, %v2323
    %vm2334 = vcmp.eq.f32.partialorder %v2333, 8.507059e+37
    %v2335 = vand.u32 %v2323, 2147483648
    %v2336 = vor.u32 1.1754944e-38, %v2335
    %v2337 = vsel %vm2334, %v2336, %v2332
    %v2338 = vmul.f32 1.0, %v2337
    %v2339 = vmul.f32 %v2318, %v1971
    %v2340 = vmul.f32 %v2299, %v2319
    %v2341 = vadd.f32 %v2339, %v2340
    %v2342 = vtanh.pop %v2341
    %v2343 = vmul.f32 %v2338, %v2342
    %2344 = vmatpush.msra.mxu0 %v352
    %2345 = vmatpush.msra.mxu0 %v348
    %2346 = vmatpush.msra.mxu0 %v344
    %2347 = vmatpush.msra.mxu0 %v340
    %2348 = vmatpush.msra.mxu0 %v336
    %2349 = vmatpush.msra.mxu0 %v332
    %2350 = vmatpush.msra.mxu0 %v328
    %2351 = vmatpush.msra.mxu0 %v324
    %2352 = vmatpush.msra.mxu0 %v320
    %2353 = vmatpush.msra.mxu0 %v316
    %2354 = vmatpush.msra.mxu0 %v312
    %2355 = vmatpush.msra.mxu0 %v308
    %2356 = vmatpush.msra.mxu0 %v304
    %2357 = vmatpush.msra.mxu0 %v300
    %2358 = vmatpush.msra.mxu0 %v296
    %2359 = vmatpush.msra.mxu0 %v292
    %2360 = vmatmul.f32.gmra.mxu0 %v2120
    %v2361 = vpop.f32.mrf.mxu0
    %v2362 = vadd.f32 0.0, %v2361
    %2363 = vdwg.mxu0
    %2364 = vmatpush.msra.mxu0 %v353
    %2365 = vmatpush.msra.mxu0 %v349
    %2366 = vmatpush.msra.mxu0 %v345
    %2367 = vmatpush.msra.mxu0 %v341
    %2368 = vmatpush.msra.mxu0 %v337
    %2369 = vmatpush.msra.mxu0 %v333
    %2370 = vmatpush.msra.mxu0 %v329
    %2371 = vmatpush.msra.mxu0 %v325
    %2372 = vmatpush.msra.mxu0 %v321
    %2373 = vmatpush.msra.mxu0 %v317
    %2374 = vmatpush.msra.mxu0 %v313
    %2375 = vmatpush.msra.mxu0 %v309
    %2376 = vmatpush.msra.mxu0 %v305
    %2377 = vmatpush.msra.mxu0 %v301
    %2378 = vmatpush.msra.mxu0 %v297
    %2379 = vmatpush.msra.mxu0 %v293
    %2380 = vmatmul.f32.gmra.mxu0 %v2120
    %v2381 = vpop.f32.mrf.mxu0
    %v2382 = vadd.f32 0.0, %v2381
    %2383 = vdwg.mxu0
    %2384 = vmatpush.msra.mxu0 %v354
    %2385 = vmatpush.msra.mxu0 %v350
    %2386 = vmatpush.msra.mxu0 %v346
    %2387 = vmatpush.msra.mxu0 %v342
    %2388 = vmatpush.msra.mxu0 %v338
    %2389 = vmatpush.msra.mxu0 %v334
    %2390 = vmatpush.msra.mxu0 %v330
    %2391 = vmatpush.msra.mxu0 %v326
    %2392 = vmatpush.msra.mxu0 %v322
    %2393 = vmatpush.msra.mxu0 %v318
    %2394 = vmatpush.msra.mxu0 %v314
    %2395 = vmatpush.msra.mxu0 %v310
    %2396 = vmatpush.msra.mxu0 %v306
    %2397 = vmatpush.msra.mxu0 %v302
    %2398 = vmatpush.msra.mxu0 %v298
    %2399 = vmatpush.msra.mxu0 %v294
    %2400 = vmatmul.f32.gmra.mxu0 %v2120
    %v2401 = vpop.f32.mrf.mxu0
    %v2402 = vadd.f32 0.0, %v2401
    %2403 = vdwg.mxu0
    %2404 = vmatpush.msra.mxu0 %v355
    %2405 = vmatpush.msra.mxu0 %v351
    %2406 = vmatpush.msra.mxu0 %v347
    %2407 = vmatpush.msra.mxu0 %v343
    %2408 = vmatpush.msra.mxu0 %v339
    %2409 = vmatpush.msra.mxu0 %v335
    %2410 = vmatpush.msra.mxu0 %v331
    %2411 = vmatpush.msra.mxu0 %v327
    %2412 = vmatpush.msra.mxu0 %v323
    %2413 = vmatpush.msra.mxu0 %v319
    %2414 = vmatpush.msra.mxu0 %v315
    %2415 = vmatpush.msra.mxu0 %v311
    %2416 = vmatpush.msra.mxu0 %v307
    %2417 = vmatpush.msra.mxu0 %v303
    %2418 = vmatpush.msra.mxu0 %v299
    %2419 = vmatpush.msra.mxu0 %v295
    %2420 = vmatmul.f32.gmra.mxu0 %v2120
    %v2421 = vpop.f32.mrf.mxu0
    %v2422 = vadd.f32 0.0, %v2421
    %2423 = vdwg.mxu0
    %v2424 = vadd.f32 %v161, %v2362
    %v2425 = vadd.f32 %v202, %v2382
    %v2426 = vadd.f32 %v243, %v2402
    %v2427 = vadd.f32 %v284, %v2422
    %v2428 = vxor.u32 %v2424, 2147483648
    %v2429 = vmul.f32 %v2428, 1.442695
    %v2430 = vpow.pop %v2429
    %v2431 = vadd.f32 %v2430, 1.0
    %v2432 = vrcp.pop %v2431
    %v2433 = vmul.f32 %v2431, %v2432
    %v2434 = vsub.f32 1.0, %v2433
    %v2435 = vmul.f32 %v2432, %v2434
    %v2436 = vadd.f32 %v2432, %v2435
    %vm2437 = vweird.f32 %v2431
    %vm2438 = vweird.f32 %v2432
    %vm2439 = vmor %vm2437, %vm2438
    %v2440 = vsel %vm2439, %v2432, %v2436
    %v2441 = vand.u32 2147483647, %v2431
    %vm2442 = vcmp.eq.f32.partialorder %v2441, 8.507059e+37
    %v2443 = vand.u32 %v2431, 2147483648
    %v2444 = vor.u32 1.1754944e-38, %v2443
    %v2445 = vsel %vm2442, %v2444, %v2440
    %v2446 = vmul.f32 1.0, %v2445
    %v2447 = vxor.u32 %v2425, 2147483648
    %v2448 = vmul.f32 %v2447, 1.442695
    %v2449 = vpow.pop %v2448
    %v2450 = vadd.f32 %v2449, 1.0
    %v2451 = vrcp.pop %v2450
    %v2452 = vmul.f32 %v2450, %v2451
    %v2453 = vsub.f32 1.0, %v2452
    %v2454 = vmul.f32 %v2451, %v2453
    %v2455 = vadd.f32 %v2451, %v2454
    %vm2456 = vweird.f32 %v2450
    %vm2457 = vweird.f32 %v2451
    %vm2458 = vmor %vm2456, %vm2457
    %v2459 = vsel %vm2458, %v2451, %v2455
    %v2460 = vand.u32 2147483647, %v2450
    %vm2461 = vcmp.eq.f32.partialorder %v2460, 8.507059e+37
    %v2462 = vand.u32 %v2450, 2147483648
    %v2463 = vor.u32 1.1754944e-38, %v2462
    %v2464 = vsel %vm2461, %v2463, %v2459
    %v2465 = vmul.f32 1.0, %v2464
    %v2466 = vtanh.pop %v2426
    %v2467 = vxor.u32 %v2427, 2147483648
    %v2468 = vmul.f32 %v2467, 1.442695
    %v2469 = vpow.pop %v2468
    %v2470 = vadd.f32 %v2469, 1.0
    %v2471 = vrcp.pop %v2470
    %v2472 = vmul.f32 %v2470, %v2471
    %v2473 = vsub.f32 1.0, %v2472
    %v2474 = vmul.f32 %v2471, %v2473
    %v2475 = vadd.f32 %v2471, %v2474
    %vm2476 = vweird.f32 %v2470
    %vm2477 = vweird.f32 %v2471
    %vm2478 = vmor %vm2476, %vm2477
    %v2479 = vsel %vm2478, %v2471, %v2475
    %v2480 = vand.u32 2147483647, %v2470
    %vm2481 = vcmp.eq.f32.partialorder %v2480, 8.507059e+37
    %v2482 = vand.u32 %v2470, 2147483648
    %v2483 = vor.u32 1.1754944e-38, %v2482
    %v2484 = vsel %vm2481, %v2483, %v2479
    %v2485 = vmul.f32 1.0, %v2484
    %v2486 = vmul.f32 %v2465, %v2118
    %v2487 = vmul.f32 %v2446, %v2466
    %v2488 = vadd.f32 %v2486, %v2487
    %v2489 = vtanh.pop %v2488
    %v2490 = vmul.f32 %v2485, %v2489
    %2491 = vmatpush.msra.mxu0 %v416
    %2492 = vmatpush.msra.mxu0 %v412
    %2493 = vmatpush.msra.mxu0 %v408
    %2494 = vmatpush.msra.mxu0 %v404
    %2495 = vmatpush.msra.mxu0 %v400
    %2496 = vmatpush.msra.mxu0 %v396
    %2497 = vmatpush.msra.mxu0 %v392
    %2498 = vmatpush.msra.mxu0 %v388
    %2499 = vmatpush.msra.mxu0 %v384
    %2500 = vmatpush.msra.mxu0 %v380
    %2501 = vmatpush.msra.mxu0 %v376
    %2502 = vmatpush.msra.mxu0 %v372
    %2503 = vmatpush.msra.mxu0 %v368
    %2504 = vmatpush.msra.mxu0 %v364
    %2505 = vmatpush.msra.mxu0 %v360
    %2506 = vmatpush.msra.mxu0 %v356
    %2507 = vmatmul.f32.gmra.mxu0 %v2490
    %v2508 = vpop.f32.mrf.mxu0
    %v2509 = vadd.f32 %v486, %v2508
    %2510 = vdwg.mxu0
    %2511 = vmatpush.msra.mxu0 %v480
    %2512 = vmatpush.msra.mxu0 %v476
    %2513 = vmatpush.msra.mxu0 %v472
    %2514 = vmatpush.msra.mxu0 %v468
    %2515 = vmatpush.msra.mxu0 %v464
    %2516 = vmatpush.msra.mxu0 %v460
    %2517 = vmatpush.msra.mxu0 %v456
    %2518 = vmatpush.msra.mxu0 %v452
    %2519 = vmatpush.msra.mxu0 %v448
    %2520 = vmatpush.msra.mxu0 %v444
    %2521 = vmatpush.msra.mxu0 %v440
    %2522 = vmatpush.msra.mxu0 %v436
    %2523 = vmatpush.msra.mxu0 %v432
    %2524 = vmatpush.msra.mxu0 %v428
    %2525 = vmatpush.msra.mxu0 %v424
    %2526 = vmatpush.msra.mxu0 %v420
    %2527 = vmatmul.f32.gmra.mxu0 %v2343
    %v2528 = vpop.f32.mrf.mxu0
    %v2529 = vadd.f32 %v2509, %v2528
    %2530 = vdwg.mxu0
    %2531 = vmatpush.msra.mxu0 %v417
    %2532 = vmatpush.msra.mxu0 %v413
    %2533 = vmatpush.msra.mxu0 %v409
    %2534 = vmatpush.msra.mxu0 %v405
    %2535 = vmatpush.msra.mxu0 %v401
    %2536 = vmatpush.msra.mxu0 %v397
    %2537 = vmatpush.msra.mxu0 %v393
    %2538 = vmatpush.msra.mxu0 %v389
    %2539 = vmatpush.msra.mxu0 %v385
    %2540 = vmatpush.msra.mxu0 %v381
    %2541 = vmatpush.msra.mxu0 %v377
    %2542 = vmatpush.msra.mxu0 %v373
    %2543 = vmatpush.msra.mxu0 %v369
    %2544 = vmatpush.msra.mxu0 %v365
    %2545 = vmatpush.msra.mxu0 %v361
    %2546 = vmatpush.msra.mxu0 %v357
    %2547 = vmatmul.f32.gmra.mxu0 %v2490
    %v2548 = vpop.f32.mrf.mxu0
    %v2549 = vadd.f32 %v487, %v2548
    %2550 = vdwg.mxu0
    %2551 = vmatpush.msra.mxu0 %v481
    %2552 = vmatpush.msra.mxu0 %v477
    %2553 = vmatpush.msra.mxu0 %v473
    %2554 = vmatpush.msra.mxu0 %v469
    %2555 = vmatpush.msra.mxu0 %v465
    %2556 = vmatpush.msra.mxu0 %v461
    %2557 = vmatpush.msra.mxu0 %v457
    %2558 = vmatpush.msra.mxu0 %v453
    %2559 = vmatpush.msra.mxu0 %v449
    %2560 = vmatpush.msra.mxu0 %v445
    %2561 = vmatpush.msra.mxu0 %v441
    %2562 = vmatpush.msra.mxu0 %v437
    %2563 = vmatpush.msra.mxu0 %v433
    %2564 = vmatpush.msra.mxu0 %v429
    %2565 = vmatpush.msra.mxu0 %v425
    %2566 = vmatpush.msra.mxu0 %v421
    %2567 = vmatmul.f32.gmra.mxu0 %v2343
    %v2568 = vpop.f32.mrf.mxu0
    %v2569 = vadd.f32 %v2549, %v2568
    %2570 = vdwg.mxu0
    %2571 = vmatpush.msra.mxu0 %v418
    %2572 = vmatpush.msra.mxu0 %v414
    %2573 = vmatpush.msra.mxu0 %v410
    %2574 = vmatpush.msra.mxu0 %v406
    %2575 = vmatpush.msra.mxu0 %v402
    %2576 = vmatpush.msra.mxu0 %v398
    %2577 = vmatpush.msra.mxu0 %v394
    %2578 = vmatpush.msra.mxu0 %v390
    %2579 = vmatpush.msra.mxu0 %v386
    %2580 = vmatpush.msra.mxu0 %v382
    %2581 = vmatpush.msra.mxu0 %v378
    %2582 = vmatpush.msra.mxu0 %v374
    %2583 = vmatpush.msra.mxu0 %v370
    %2584 = vmatpush.msra.mxu0 %v366
    %2585 = vmatpush.msra.mxu0 %v362
    %2586 = vmatpush.msra.mxu0 %v358
    %2587 = vmatmul.f32.gmra.mxu0 %v2490
    %v2588 = vpop.f32.mrf.mxu0
    %v2589 = vadd.f32 %v488, %v2588
    %2590 = vdwg.mxu0
    %2591 = vmatpush.msra.mxu0 %v482
    %2592 = vmatpush.msra.mxu0 %v478
    %2593 = vmatpush.msra.mxu0 %v474
    %2594 = vmatpush.msra.mxu0 %v470
    %2595 = vmatpush.msra.mxu0 %v466
    %2596 = vmatpush.msra.mxu0 %v462
    %2597 = vmatpush.msra.mxu0 %v458
    %2598 = vmatpush.msra.mxu0 %v454
    %2599 = vmatpush.msra.mxu0 %v450
    %2600 = vmatpush.msra.mxu0 %v446
    %2601 = vmatpush.msra.mxu0 %v442
    %2602 = vmatpush.msra.mxu0 %v438
    %2603 = vmatpush.msra.mxu0 %v434
    %2604 = vmatpush.msra.mxu0 %v430
    %2605 = vmatpush.msra.mxu0 %v426
    %2606 = vmatpush.msra.mxu0 %v422
    %2607 = vmatmul.f32.gmra.mxu0 %v2343
    %v2608 = vpop.f32.mrf.mxu0
    %v2609 = vadd.f32 %v2589, %v2608
    %2610 = vdwg.mxu0
    %2611 = vmatpush.msra.mxu0 %v419
    %2612 = vmatpush.msra.mxu0 %v415
    %2613 = vmatpush.msra.mxu0 %v411
    %2614 = vmatpush.msra.mxu0 %v407
    %2615 = vmatpush.msra.mxu0 %v403
    %2616 = vmatpush.msra.mxu0 %v399
    %2617 = vmatpush.msra.mxu0 %v395
    %2618 = vmatpush.msra.mxu0 %v391
    %2619 = vmatpush.msra.mxu0 %v387
    %2620 = vmatpush.msra.mxu0 %v383
    %2621 = vmatpush.msra.mxu0 %v379
    %2622 = vmatpush.msra.mxu0 %v375
    %2623 = vmatpush.msra.mxu0 %v371
    %2624 = vmatpush.msra.mxu0 %v367
    %2625 = vmatpush.msra.mxu0 %v363
    %2626 = vmatpush.msra.mxu0 %v359
    %2627 = vmatmul.f32.gmra.mxu0 %v2490
    %v2628 = vpop.f32.mrf.mxu0
    %v2629 = vadd.f32 %v489, %v2628
    %2630 = vdwg.mxu0
    %2631 = vmatpush.msra.mxu0 %v483
    %2632 = vmatpush.msra.mxu0 %v479
    %2633 = vmatpush.msra.mxu0 %v475
    %2634 = vmatpush.msra.mxu0 %v471
    %2635 = vmatpush.msra.mxu0 %v467
    %2636 = vmatpush.msra.mxu0 %v463
    %2637 = vmatpush.msra.mxu0 %v459
    %2638 = vmatpush.msra.mxu0 %v455
    %2639 = vmatpush.msra.mxu0 %v451
    %2640 = vmatpush.msra.mxu0 %v447
    %2641 = vmatpush.msra.mxu0 %v443
    %2642 = vmatpush.msra.mxu0 %v439
    %2643 = vmatpush.msra.mxu0 %v435
    %2644 = vmatpush.msra.mxu0 %v431
    %2645 = vmatpush.msra.mxu0 %v427
    %2646 = vmatpush.msra.mxu0 %v423
    %2647 = vmatmul.f32.gmra.mxu0 %v2343
    %v2648 = vpop.f32.mrf.mxu0
    %v2649 = vadd.f32 %v2629, %v2648
    %2650 = vdwg.mxu0
    %v2651 = vxor.u32 %v2529, 2147483648
    %v2652 = vmul.f32 %v2651, 1.442695
    %v2653 = vpow.pop %v2652
    %v2654 = vadd.f32 %v2653, 1.0
    %v2655 = vrcp.pop %v2654
    %v2656 = vmul.f32 %v2654, %v2655
    %v2657 = vsub.f32 1.0, %v2656
    %v2658 = vmul.f32 %v2655, %v2657
    %v2659 = vadd.f32 %v2655, %v2658
    %vm2660 = vweird.f32 %v2654
    %vm2661 = vweird.f32 %v2655
    %vm2662 = vmor %vm2660, %vm2661
    %v2663 = vsel %vm2662, %v2655, %v2659
    %v2664 = vand.u32 2147483647, %v2654
    %vm2665 = vcmp.eq.f32.partialorder %v2664, 8.507059e+37
    %v2666 = vand.u32 %v2654, 2147483648
    %v2667 = vor.u32 1.1754944e-38, %v2666
    %v2668 = vsel %vm2665, %v2667, %v2663
    %v2669 = vmul.f32 1.0, %v2668
    %v2670 = vxor.u32 %v2569, 2147483648
    %v2671 = vmul.f32 %v2670, 1.442695
    %v2672 = vpow.pop %v2671
    %v2673 = vadd.f32 %v2672, 1.0
    %v2674 = vrcp.pop %v2673
    %v2675 = vmul.f32 %v2673, %v2674
    %v2676 = vsub.f32 1.0, %v2675
    %v2677 = vmul.f32 %v2674, %v2676
    %v2678 = vadd.f32 %v2674, %v2677
    %vm2679 = vweird.f32 %v2673
    %vm2680 = vweird.f32 %v2674
    %vm2681 = vmor %vm2679, %vm2680
    %v2682 = vsel %vm2681, %v2674, %v2678
    %v2683 = vand.u32 2147483647, %v2673
    %vm2684 = vcmp.eq.f32.partialorder %v2683, 8.507059e+37
    %v2685 = vand.u32 %v2673, 2147483648
    %v2686 = vor.u32 1.1754944e-38, %v2685
    %v2687 = vsel %vm2684, %v2686, %v2682
    %v2688 = vmul.f32 1.0, %v2687
    %v2689 = vtanh.pop %v2609
    %v2690 = vxor.u32 %v2649, 2147483648
    %v2691 = vmul.f32 %v2690, 1.442695
    %v2692 = vpow.pop %v2691
    %v2693 = vadd.f32 %v2692, 1.0
    %v2694 = vrcp.pop %v2693
    %v2695 = vmul.f32 %v2693, %v2694
    %v2696 = vsub.f32 1.0, %v2695
    %v2697 = vmul.f32 %v2694, %v2696
    %v2698 = vadd.f32 %v2694, %v2697
    %vm2699 = vweird.f32 %v2693
    %vm2700 = vweird.f32 %v2694
    %vm2701 = vmor %vm2699, %vm2700
    %v2702 = vsel %vm2701, %v2694, %v2698
    %v2703 = vand.u32 2147483647, %v2693
    %vm2704 = vcmp.eq.f32.partialorder %v2703, 8.507059e+37
    %v2705 = vand.u32 %v2693, 2147483648
    %v2706 = vor.u32 1.1754944e-38, %v2705
    %v2707 = vsel %vm2704, %v2706, %v2702
    %v2708 = vmul.f32 1.0, %v2707
    %v2709 = vmul.f32 %v2688, %v2341
    %v2710 = vmul.f32 %v2669, %v2689
    %v2711 = vadd.f32 %v2709, %v2710
    %v2712 = vtanh.pop %v2711
    %v2713 = vmul.f32 %v2708, %v2712
    %2714 = vmatpush.msra.mxu0 %v352
    %2715 = vmatpush.msra.mxu0 %v348
    %2716 = vmatpush.msra.mxu0 %v344
    %2717 = vmatpush.msra.mxu0 %v340
    %2718 = vmatpush.msra.mxu0 %v336
    %2719 = vmatpush.msra.mxu0 %v332
    %2720 = vmatpush.msra.mxu0 %v328
    %2721 = vmatpush.msra.mxu0 %v324
    %2722 = vmatpush.msra.mxu0 %v320
    %2723 = vmatpush.msra.mxu0 %v316
    %2724 = vmatpush.msra.mxu0 %v312
    %2725 = vmatpush.msra.mxu0 %v308
    %2726 = vmatpush.msra.mxu0 %v304
    %2727 = vmatpush.msra.mxu0 %v300
    %2728 = vmatpush.msra.mxu0 %v296
    %2729 = vmatpush.msra.mxu0 %v292
    %2730 = vmatmul.f32.gmra.mxu0 %v2490
    %v2731 = vpop.f32.mrf.mxu0
    %v2732 = vadd.f32 0.0, %v2731
    %2733 = vdwg.mxu0
    %2734 = vmatpush.msra.mxu0 %v353
    %2735 = vmatpush.msra.mxu0 %v349
    %2736 = vmatpush.msra.mxu0 %v345
    %2737 = vmatpush.msra.mxu0 %v341
    %2738 = vmatpush.msra.mxu0 %v337
    %2739 = vmatpush.msra.mxu0 %v333
    %2740 = vmatpush.msra.mxu0 %v329
    %2741 = vmatpush.msra.mxu0 %v325
    %2742 = vmatpush.msra.mxu0 %v321
    %2743 = vmatpush.msra.mxu0 %v317
    %2744 = vmatpush.msra.mxu0 %v313
    %2745 = vmatpush.msra.mxu0 %v309
    %2746 = vmatpush.msra.mxu0 %v305
    %2747 = vmatpush.msra.mxu0 %v301
    %2748 = vmatpush.msra.mxu0 %v297
    %2749 = vmatpush.msra.mxu0 %v293
    %2750 = vmatmul.f32.gmra.mxu0 %v2490
    %v2751 = vpop.f32.mrf.mxu0
    %v2752 = vadd.f32 0.0, %v2751
    %2753 = vdwg.mxu0
    %2754 = vmatpush.msra.mxu0 %v354
    %2755 = vmatpush.msra.mxu0 %v350
    %2756 = vmatpush.msra.mxu0 %v346
    %2757 = vmatpush.msra.mxu0 %v342
    %2758 = vmatpush.msra.mxu0 %v338
    %2759 = vmatpush.msra.mxu0 %v334
    %2760 = vmatpush.msra.mxu0 %v330
    %2761 = vmatpush.msra.mxu0 %v326
    %2762 = vmatpush.msra.mxu0 %v322
    %2763 = vmatpush.msra.mxu0 %v318
    %2764 = vmatpush.msra.mxu0 %v314
    %2765 = vmatpush.msra.mxu0 %v310
    %2766 = vmatpush.msra.mxu0 %v306
    %2767 = vmatpush.msra.mxu0 %v302
    %2768 = vmatpush.msra.mxu0 %v298
    %2769 = vmatpush.msra.mxu0 %v294
    %2770 = vmatmul.f32.gmra.mxu0 %v2490
    %v2771 = vpop.f32.mrf.mxu0
    %v2772 = vadd.f32 0.0, %v2771
    %2773 = vdwg.mxu0
    %2774 = vmatpush.msra.mxu0 %v355
    %2775 = vmatpush.msra.mxu0 %v351
    %2776 = vmatpush.msra.mxu0 %v347
    %2777 = vmatpush.msra.mxu0 %v343
    %2778 = vmatpush.msra.mxu0 %v339
    %2779 = vmatpush.msra.mxu0 %v335
    %2780 = vmatpush.msra.mxu0 %v331
    %2781 = vmatpush.msra.mxu0 %v327
    %2782 = vmatpush.msra.mxu0 %v323
    %2783 = vmatpush.msra.mxu0 %v319
    %2784 = vmatpush.msra.mxu0 %v315
    %2785 = vmatpush.msra.mxu0 %v311
    %2786 = vmatpush.msra.mxu0 %v307
    %2787 = vmatpush.msra.mxu0 %v303
    %2788 = vmatpush.msra.mxu0 %v299
    %2789 = vmatpush.msra.mxu0 %v295
    %2790 = vmatmul.f32.gmra.mxu0 %v2490
    %v2791 = vpop.f32.mrf.mxu0
    %v2792 = vadd.f32 0.0, %v2791
    %2793 = vdwg.mxu0
    %v2794 = vadd.f32 %v164, %v2732
    %v2795 = vadd.f32 %v205, %v2752
    %v2796 = vadd.f32 %v246, %v2772
    %v2797 = vadd.f32 %v287, %v2792
    %v2798 = vxor.u32 %v2794, 2147483648
    %v2799 = vmul.f32 %v2798, 1.442695
    %v2800 = vpow.pop %v2799
    %v2801 = vadd.f32 %v2800, 1.0
    %v2802 = vrcp.pop %v2801
    %v2803 = vmul.f32 %v2801, %v2802
    %v2804 = vsub.f32 1.0, %v2803
    %v2805 = vmul.f32 %v2802, %v2804
    %v2806 = vadd.f32 %v2802, %v2805
    %vm2807 = vweird.f32 %v2801
    %vm2808 = vweird.f32 %v2802
    %vm2809 = vmor %vm2807, %vm2808
    %v2810 = vsel %vm2809, %v2802, %v2806
    %v2811 = vand.u32 2147483647, %v2801
    %vm2812 = vcmp.eq.f32.partialorder %v2811, 8.507059e+37
    %v2813 = vand.u32 %v2801, 2147483648
    %v2814 = vor.u32 1.1754944e-38, %v2813
    %v2815 = vsel %vm2812, %v2814, %v2810
    %v2816 = vmul.f32 1.0, %v2815
    %v2817 = vxor.u32 %v2795, 2147483648
    %v2818 = vmul.f32 %v2817, 1.442695
    %v2819 = vpow.pop %v2818
    %v2820 = vadd.f32 %v2819, 1.0
    %v2821 = vrcp.pop %v2820
    %v2822 = vmul.f32 %v2820, %v2821
    %v2823 = vsub.f32 1.0, %v2822
    %v2824 = vmul.f32 %v2821, %v2823
    %v2825 = vadd.f32 %v2821, %v2824
    %vm2826 = vweird.f32 %v2820
    %vm2827 = vweird.f32 %v2821
    %vm2828 = vmor %vm2826, %vm2827
    %v2829 = vsel %vm2828, %v2821, %v2825
    %v2830 = vand.u32 2147483647, %v2820
    %vm2831 = vcmp.eq.f32.partialorder %v2830, 8.507059e+37
    %v2832 = vand.u32 %v2820, 2147483648
    %v2833 = vor.u32 1.1754944e-38, %v2832
    %v2834 = vsel %vm2831, %v2833, %v2829
    %v2835 = vmul.f32 1.0, %v2834
    %v2836 = vtanh.pop %v2796
    %v2837 = vxor.u32 %v2797, 2147483648
    %v2838 = vmul.f32 %v2837, 1.442695
    %v2839 = vpow.pop %v2838
    %v2840 = vadd.f32 %v2839, 1.0
    %v2841 = vrcp.pop %v2840
    %v2842 = vmul.f32 %v2840, %v2841
    %v2843 = vsub.f32 1.0, %v2842
    %v2844 = vmul.f32 %v2841, %v2843
    %v2845 = vadd.f32 %v2841, %v2844
    %vm2846 = vweird.f32 %v2840
    %vm2847 = vweird.f32 %v2841
    %vm2848 = vmor %vm2846, %vm2847
    %v2849 = vsel %vm2848, %v2841, %v2845
    %v2850 = vand.u32 2147483647, %v2840
    %vm2851 = vcmp.eq.f32.partialorder %v2850, 8.507059e+37
    %v2852 = vand.u32 %v2840, 2147483648
    %v2853 = vor.u32 1.1754944e-38, %v2852
    %v2854 = vsel %vm2851, %v2853, %v2849
    %v2855 = vmul.f32 1.0, %v2854
    %v2856 = vmul.f32 %v2835, %v2488
    %v2857 = vmul.f32 %v2816, %v2836
    %v2858 = vadd.f32 %v2856, %v2857
    %v2859 = vtanh.pop %v2858
    %v2860 = vmul.f32 %v2855, %v2859
    %2861 = vmatpush.msra.mxu0 %v416
    %2862 = vmatpush.msra.mxu0 %v412
    %2863 = vmatpush.msra.mxu0 %v408
    %2864 = vmatpush.msra.mxu0 %v404
    %2865 = vmatpush.msra.mxu0 %v400
    %2866 = vmatpush.msra.mxu0 %v396
    %2867 = vmatpush.msra.mxu0 %v392
    %2868 = vmatpush.msra.mxu0 %v388
    %2869 = vmatpush.msra.mxu0 %v384
    %2870 = vmatpush.msra.mxu0 %v380
    %2871 = vmatpush.msra.mxu0 %v376
    %2872 = vmatpush.msra.mxu0 %v372
    %2873 = vmatpush.msra.mxu0 %v368
    %2874 = vmatpush.msra.mxu0 %v364
    %2875 = vmatpush.msra.mxu0 %v360
    %2876 = vmatpush.msra.mxu0 %v356
    %2877 = vmatmul.f32.gmra.mxu0 %v2860
    %v2878 = vpop.f32.mrf.mxu0
    %v2879 = vadd.f32 %v486, %v2878
    %2880 = vdwg.mxu0
    %2881 = vmatpush.msra.mxu0 %v480
    %2882 = vmatpush.msra.mxu0 %v476
    %2883 = vmatpush.msra.mxu0 %v472
    %2884 = vmatpush.msra.mxu0 %v468
    %2885 = vmatpush.msra.mxu0 %v464
    %2886 = vmatpush.msra.mxu0 %v460
    %2887 = vmatpush.msra.mxu0 %v456
    %2888 = vmatpush.msra.mxu0 %v452
    %2889 = vmatpush.msra.mxu0 %v448
    %2890 = vmatpush.msra.mxu0 %v444
    %2891 = vmatpush.msra.mxu0 %v440
    %2892 = vmatpush.msra.mxu0 %v436
    %2893 = vmatpush.msra.mxu0 %v432
    %2894 = vmatpush.msra.mxu0 %v428
    %2895 = vmatpush.msra.mxu0 %v424
    %2896 = vmatpush.msra.mxu0 %v420
    %2897 = vmatmul.f32.gmra.mxu0 %v2713
    %v2898 = vpop.f32.mrf.mxu0
    %v2899 = vadd.f32 %v2879, %v2898
    %2900 = vdwg.mxu0
    %2901 = vmatpush.msra.mxu0 %v417
    %2902 = vmatpush.msra.mxu0 %v413
    %2903 = vmatpush.msra.mxu0 %v409
    %2904 = vmatpush.msra.mxu0 %v405
    %2905 = vmatpush.msra.mxu0 %v401
    %2906 = vmatpush.msra.mxu0 %v397
    %2907 = vmatpush.msra.mxu0 %v393
    %2908 = vmatpush.msra.mxu0 %v389
    %2909 = vmatpush.msra.mxu0 %v385
    %2910 = vmatpush.msra.mxu0 %v381
    %2911 = vmatpush.msra.mxu0 %v377
    %2912 = vmatpush.msra.mxu0 %v373
    %2913 = vmatpush.msra.mxu0 %v369
    %2914 = vmatpush.msra.mxu0 %v365
    %2915 = vmatpush.msra.mxu0 %v361
    %2916 = vmatpush.msra.mxu0 %v357
    %2917 = vmatmul.f32.gmra.mxu0 %v2860
    %v2918 = vpop.f32.mrf.mxu0
    %v2919 = vadd.f32 %v487, %v2918
    %2920 = vdwg.mxu0
    %2921 = vmatpush.msra.mxu0 %v481
    %2922 = vmatpush.msra.mxu0 %v477
    %2923 = vmatpush.msra.mxu0 %v473
    %2924 = vmatpush.msra.mxu0 %v469
    %2925 = vmatpush.msra.mxu0 %v465
    %2926 = vmatpush.msra.mxu0 %v461
    %2927 = vmatpush.msra.mxu0 %v457
    %2928 = vmatpush.msra.mxu0 %v453
    %2929 = vmatpush.msra.mxu0 %v449
    %2930 = vmatpush.msra.mxu0 %v445
    %2931 = vmatpush.msra.mxu0 %v441
    %2932 = vmatpush.msra.mxu0 %v437
    %2933 = vmatpush.msra.mxu0 %v433
    %2934 = vmatpush.msra.mxu0 %v429
    %2935 = vmatpush.msra.mxu0 %v425
    %2936 = vmatpush.msra.mxu0 %v421
    %2937 = vmatmul.f32.gmra.mxu0 %v2713
    %v2938 = vpop.f32.mrf.mxu0
    %v2939 = vadd.f32 %v2919, %v2938
    %2940 = vdwg.mxu0
    %2941 = vmatpush.msra.mxu0 %v418
    %2942 = vmatpush.msra.mxu0 %v414
    %2943 = vmatpush.msra.mxu0 %v410
    %2944 = vmatpush.msra.mxu0 %v406
    %2945 = vmatpush.msra.mxu0 %v402
    %2946 = vmatpush.msra.mxu0 %v398
    %2947 = vmatpush.msra.mxu0 %v394
    %2948 = vmatpush.msra.mxu0 %v390
    %2949 = vmatpush.msra.mxu0 %v386
    %2950 = vmatpush.msra.mxu0 %v382
    %2951 = vmatpush.msra.mxu0 %v378
    %2952 = vmatpush.msra.mxu0 %v374
    %2953 = vmatpush.msra.mxu0 %v370
    %2954 = vmatpush.msra.mxu0 %v366
    %2955 = vmatpush.msra.mxu0 %v362
    %2956 = vmatpush.msra.mxu0 %v358
    %2957 = vmatmul.f32.gmra.mxu0 %v2860
    %v2958 = vpop.f32.mrf.mxu0
    %v2959 = vadd.f32 %v488, %v2958
    %2960 = vdwg.mxu0
    %2961 = vmatpush.msra.mxu0 %v482
    %2962 = vmatpush.msra.mxu0 %v478
    %2963 = vmatpush.msra.mxu0 %v474
    %2964 = vmatpush.msra.mxu0 %v470
    %2965 = vmatpush.msra.mxu0 %v466
    %2966 = vmatpush.msra.mxu0 %v462
    %2967 = vmatpush.msra.mxu0 %v458
    %2968 = vmatpush.msra.mxu0 %v454
    %2969 = vmatpush.msra.mxu0 %v450
    %2970 = vmatpush.msra.mxu0 %v446
    %2971 = vmatpush.msra.mxu0 %v442
    %2972 = vmatpush.msra.mxu0 %v438
    %2973 = vmatpush.msra.mxu0 %v434
    %2974 = vmatpush.msra.mxu0 %v430
    %2975 = vmatpush.msra.mxu0 %v426
    %2976 = vmatpush.msra.mxu0 %v422
    %2977 = vmatmul.f32.gmra.mxu0 %v2713
    %v2978 = vpop.f32.mrf.mxu0
    %v2979 = vadd.f32 %v2959, %v2978
    %2980 = vdwg.mxu0
    %2981 = vmatpush.msra.mxu0 %v419
    %2982 = vmatpush.msra.mxu0 %v415
    %2983 = vmatpush.msra.mxu0 %v411
    %2984 = vmatpush.msra.mxu0 %v407
    %2985 = vmatpush.msra.mxu0 %v403
    %2986 = vmatpush.msra.mxu0 %v399
    %2987 = vmatpush.msra.mxu0 %v395
    %2988 = vmatpush.msra.mxu0 %v391
    %2989 = vmatpush.msra.mxu0 %v387
    %2990 = vmatpush.msra.mxu0 %v383
    %2991 = vmatpush.msra.mxu0 %v379
    %2992 = vmatpush.msra.mxu0 %v375
    %2993 = vmatpush.msra.mxu0 %v371
    %2994 = vmatpush.msra.mxu0 %v367
    %2995 = vmatpush.msra.mxu0 %v363
    %2996 = vmatpush.msra.mxu0 %v359
    %2997 = vmatmul.f32.gmra.mxu0 %v2860
    %v2998 = vpop.f32.mrf.mxu0
    %v2999 = vadd.f32 %v489, %v2998
    %3000 = vdwg.mxu0
    %3001 = vmatpush.msra.mxu0 %v483
    %3002 = vmatpush.msra.mxu0 %v479
    %3003 = vmatpush.msra.mxu0 %v475
    %3004 = vmatpush.msra.mxu0 %v471
    %3005 = vmatpush.msra.mxu0 %v467
    %3006 = vmatpush.msra.mxu0 %v463
    %3007 = vmatpush.msra.mxu0 %v459
    %3008 = vmatpush.msra.mxu0 %v455
    %3009 = vmatpush.msra.mxu0 %v451
    %3010 = vmatpush.msra.mxu0 %v447
    %3011 = vmatpush.msra.mxu0 %v443
    %3012 = vmatpush.msra.mxu0 %v439
    %3013 = vmatpush.msra.mxu0 %v435
    %3014 = vmatpush.msra.mxu0 %v431
    %3015 = vmatpush.msra.mxu0 %v427
    %3016 = vmatpush.msra.mxu0 %v423
    %3017 = vmatmul.f32.gmra.mxu0 %v2713
    %v3018 = vpop.f32.mrf.mxu0
    %v3019 = vadd.f32 %v2999, %v3018
    %3020 = vdwg.mxu0
    %v3021 = vxor.u32 %v2899, 2147483648
    %v3022 = vmul.f32 %v3021, 1.442695
    %v3023 = vpow.pop %v3022
    %v3024 = vadd.f32 %v3023, 1.0
    %v3025 = vrcp.pop %v3024
    %v3026 = vmul.f32 %v3024, %v3025
    %v3027 = vsub.f32 1.0, %v3026
    %v3028 = vmul.f32 %v3025, %v3027
    %v3029 = vadd.f32 %v3025, %v3028
    %vm3030 = vweird.f32 %v3024
    %vm3031 = vweird.f32 %v3025
    %vm3032 = vmor %vm3030, %vm3031
    %v3033 = vsel %vm3032, %v3025, %v3029
    %v3034 = vand.u32 2147483647, %v3024
    %vm3035 = vcmp.eq.f32.partialorder %v3034, 8.507059e+37
    %v3036 = vand.u32 %v3024, 2147483648
    %v3037 = vor.u32 1.1754944e-38, %v3036
    %v3038 = vsel %vm3035, %v3037, %v3033
    %v3039 = vmul.f32 1.0, %v3038
    %v3040 = vxor.u32 %v2939, 2147483648
    %v3041 = vmul.f32 %v3040, 1.442695
    %v3042 = vpow.pop %v3041
    %v3043 = vadd.f32 %v3042, 1.0
    %v3044 = vrcp.pop %v3043
    %v3045 = vmul.f32 %v3043, %v3044
    %v3046 = vsub.f32 1.0, %v3045
    %v3047 = vmul.f32 %v3044, %v3046
    %v3048 = vadd.f32 %v3044, %v3047
    %vm3049 = vweird.f32 %v3043
    %vm3050 = vweird.f32 %v3044
    %vm3051 = vmor %vm3049, %vm3050
    %v3052 = vsel %vm3051, %v3044, %v3048
    %v3053 = vand.u32 2147483647, %v3043
    %vm3054 = vcmp.eq.f32.partialorder %v3053, 8.507059e+37
    %v3055 = vand.u32 %v3043, 2147483648
    %v3056 = vor.u32 1.1754944e-38, %v3055
    %v3057 = vsel %vm3054, %v3056, %v3052
    %v3058 = vmul.f32 1.0, %v3057
    %v3059 = vtanh.pop %v2979
    %v3060 = vxor.u32 %v3019, 2147483648
    %v3061 = vmul.f32 %v3060, 1.442695
    %v3062 = vpow.pop %v3061
    %v3063 = vadd.f32 %v3062, 1.0
    %v3064 = vrcp.pop %v3063
    %v3065 = vmul.f32 %v3063, %v3064
    %v3066 = vsub.f32 1.0, %v3065
    %v3067 = vmul.f32 %v3064, %v3066
    %v3068 = vadd.f32 %v3064, %v3067
    %vm3069 = vweird.f32 %v3063
    %vm3070 = vweird.f32 %v3064
    %vm3071 = vmor %vm3069, %vm3070
    %v3072 = vsel %vm3071, %v3064, %v3068
    %v3073 = vand.u32 2147483647, %v3063
    %vm3074 = vcmp.eq.f32.partialorder %v3073, 8.507059e+37
    %v3075 = vand.u32 %v3063, 2147483648
    %v3076 = vor.u32 1.1754944e-38, %v3075
    %v3077 = vsel %vm3074, %v3076, %v3072
    %v3078 = vmul.f32 1.0, %v3077
    %v3079 = vmul.f32 %v3058, %v2711
    %v3080 = vmul.f32 %v3039, %v3059
    %v3081 = vadd.f32 %v3079, %v3080
    %v3082 = vtanh.pop %v3081
    %v3083 = vmul.f32 %v3078, %v3082
    %3084 = vmatpush.msra.mxu0 %v352
    %3085 = vmatpush.msra.mxu0 %v348
    %3086 = vmatpush.msra.mxu0 %v344
    %3087 = vmatpush.msra.mxu0 %v340
    %3088 = vmatpush.msra.mxu0 %v336
    %3089 = vmatpush.msra.mxu0 %v332
    %3090 = vmatpush.msra.mxu0 %v328
    %3091 = vmatpush.msra.mxu0 %v324
    %3092 = vmatpush.msra.mxu0 %v320
    %3093 = vmatpush.msra.mxu0 %v316
    %3094 = vmatpush.msra.mxu0 %v312
    %3095 = vmatpush.msra.mxu0 %v308
    %3096 = vmatpush.msra.mxu0 %v304
    %3097 = vmatpush.msra.mxu0 %v300
    %3098 = vmatpush.msra.mxu0 %v296
    %3099 = vmatpush.msra.mxu0 %v292
    %3100 = vmatmul.f32.gmra.mxu0 %v2860
    %v3101 = vpop.f32.mrf.mxu0
    %v3102 = vadd.f32 0.0, %v3101
    %3103 = vdwg.mxu0
    %3104 = vmatpush.msra.mxu0 %v353
    %3105 = vmatpush.msra.mxu0 %v349
    %3106 = vmatpush.msra.mxu0 %v345
    %3107 = vmatpush.msra.mxu0 %v341
    %3108 = vmatpush.msra.mxu0 %v337
    %3109 = vmatpush.msra.mxu0 %v333
    %3110 = vmatpush.msra.mxu0 %v329
    %3111 = vmatpush.msra.mxu0 %v325
    %3112 = vmatpush.msra.mxu0 %v321
    %3113 = vmatpush.msra.mxu0 %v317
    %3114 = vmatpush.msra.mxu0 %v313
    %3115 = vmatpush.msra.mxu0 %v309
    %3116 = vmatpush.msra.mxu0 %v305
    %3117 = vmatpush.msra.mxu0 %v301
    %3118 = vmatpush.msra.mxu0 %v297
    %3119 = vmatpush.msra.mxu0 %v293
    %3120 = vmatmul.f32.gmra.mxu0 %v2860
    %v3121 = vpop.f32.mrf.mxu0
    %v3122 = vadd.f32 0.0, %v3121
    %3123 = vdwg.mxu0
    %3124 = vmatpush.msra.mxu0 %v354
    %3125 = vmatpush.msra.mxu0 %v350
    %3126 = vmatpush.msra.mxu0 %v346
    %3127 = vmatpush.msra.mxu0 %v342
    %3128 = vmatpush.msra.mxu0 %v338
    %3129 = vmatpush.msra.mxu0 %v334
    %3130 = vmatpush.msra.mxu0 %v330
    %3131 = vmatpush.msra.mxu0 %v326
    %3132 = vmatpush.msra.mxu0 %v322
    %3133 = vmatpush.msra.mxu0 %v318
    %3134 = vmatpush.msra.mxu0 %v314
    %3135 = vmatpush.msra.mxu0 %v310
    %3136 = vmatpush.msra.mxu0 %v306
    %3137 = vmatpush.msra.mxu0 %v302
    %3138 = vmatpush.msra.mxu0 %v298
    %3139 = vmatpush.msra.mxu0 %v294
    %3140 = vmatmul.f32.gmra.mxu0 %v2860
    %v3141 = vpop.f32.mrf.mxu0
    %v3142 = vadd.f32 0.0, %v3141
    %3143 = vdwg.mxu0
    %3144 = vmatpush.msra.mxu0 %v355
    %3145 = vmatpush.msra.mxu0 %v351
    %3146 = vmatpush.msra.mxu0 %v347
    %3147 = vmatpush.msra.mxu0 %v343
    %3148 = vmatpush.msra.mxu0 %v339
    %3149 = vmatpush.msra.mxu0 %v335
    %3150 = vmatpush.msra.mxu0 %v331
    %3151 = vmatpush.msra.mxu0 %v327
    %3152 = vmatpush.msra.mxu0 %v323
    %3153 = vmatpush.msra.mxu0 %v319
    %3154 = vmatpush.msra.mxu0 %v315
    %3155 = vmatpush.msra.mxu0 %v311
    %3156 = vmatpush.msra.mxu0 %v307
    %3157 = vmatpush.msra.mxu0 %v303
    %3158 = vmatpush.msra.mxu0 %v299
    %3159 = vmatpush.msra.mxu0 %v295
    %3160 = vmatmul.f32.gmra.mxu0 %v2860
    %v3161 = vpop.f32.mrf.mxu0
    %v3162 = vadd.f32 0.0, %v3161
    %3163 = vdwg.mxu0
    %v3164 = vadd.f32 %v167, %v3102
    %v3165 = vadd.f32 %v208, %v3122
    %v3166 = vadd.f32 %v249, %v3142
    %v3167 = vadd.f32 %v290, %v3162
    %v3168 = vxor.u32 %v3164, 2147483648
    %v3169 = vmul.f32 %v3168, 1.442695
    %v3170 = vpow.pop %v3169
    %v3171 = vadd.f32 %v3170, 1.0
    %v3172 = vrcp.pop %v3171
    %v3173 = vmul.f32 %v3171, %v3172
    %v3174 = vsub.f32 1.0, %v3173
    %v3175 = vmul.f32 %v3172, %v3174
    %v3176 = vadd.f32 %v3172, %v3175
    %vm3177 = vweird.f32 %v3171
    %vm3178 = vweird.f32 %v3172
    %vm3179 = vmor %vm3177, %vm3178
    %v3180 = vsel %vm3179, %v3172, %v3176
    %v3181 = vand.u32 2147483647, %v3171
    %vm3182 = vcmp.eq.f32.partialorder %v3181, 8.507059e+37
    %v3183 = vand.u32 %v3171, 2147483648
    %v3184 = vor.u32 1.1754944e-38, %v3183
    %v3185 = vsel %vm3182, %v3184, %v3180
    %v3186 = vmul.f32 1.0, %v3185
    %v3187 = vxor.u32 %v3165, 2147483648
    %v3188 = vmul.f32 %v3187, 1.442695
    %v3189 = vpow.pop %v3188
    %v3190 = vadd.f32 %v3189, 1.0
    %v3191 = vrcp.pop %v3190
    %v3192 = vmul.f32 %v3190, %v3191
    %v3193 = vsub.f32 1.0, %v3192
    %v3194 = vmul.f32 %v3191, %v3193
    %v3195 = vadd.f32 %v3191, %v3194
    %vm3196 = vweird.f32 %v3190
    %vm3197 = vweird.f32 %v3191
    %vm3198 = vmor %vm3196, %vm3197
    %v3199 = vsel %vm3198, %v3191, %v3195
    %v3200 = vand.u32 2147483647, %v3190
    %vm3201 = vcmp.eq.f32.partialorder %v3200, 8.507059e+37
    %v3202 = vand.u32 %v3190, 2147483648
    %v3203 = vor.u32 1.1754944e-38, %v3202
    %v3204 = vsel %vm3201, %v3203, %v3199
    %v3205 = vmul.f32 1.0, %v3204
    %v3206 = vtanh.pop %v3166
    %v3207 = vxor.u32 %v3167, 2147483648
    %v3208 = vmul.f32 %v3207, 1.442695
    %v3209 = vpow.pop %v3208
    %v3210 = vadd.f32 %v3209, 1.0
    %v3211 = vrcp.pop %v3210
    %v3212 = vmul.f32 %v3210, %v3211
    %v3213 = vsub.f32 1.0, %v3212
    %v3214 = vmul.f32 %v3211, %v3213
    %v3215 = vadd.f32 %v3211, %v3214
    %vm3216 = vweird.f32 %v3210
    %vm3217 = vweird.f32 %v3211
    %vm3218 = vmor %vm3216, %vm3217
    %v3219 = vsel %vm3218, %v3211, %v3215
    %v3220 = vand.u32 2147483647, %v3210
    %vm3221 = vcmp.eq.f32.partialorder %v3220, 8.507059e+37
    %v3222 = vand.u32 %v3210, 2147483648
    %v3223 = vor.u32 1.1754944e-38, %v3222
    %v3224 = vsel %vm3221, %v3223, %v3219
    %v3225 = vmul.f32 1.0, %v3224
    %v3226 = vmul.f32 %v3205, %v2858
    %v3227 = vmul.f32 %v3186, %v3206
    %v3228 = vadd.f32 %v3226, %v3227
    %v3229 = vtanh.pop %v3228
    %v3230 = vmul.f32 %v3225, %v3229
    %3231 = vmatpush.msra.mxu0 %v416
    %3232 = vmatpush.msra.mxu0 %v412
    %3233 = vmatpush.msra.mxu0 %v408
    %3234 = vmatpush.msra.mxu0 %v404
    %3235 = vmatpush.msra.mxu0 %v400
    %3236 = vmatpush.msra.mxu0 %v396
    %3237 = vmatpush.msra.mxu0 %v392
    %3238 = vmatpush.msra.mxu0 %v388
    %3239 = vmatpush.msra.mxu0 %v384
    %3240 = vmatpush.msra.mxu0 %v380
    %3241 = vmatpush.msra.mxu0 %v376
    %3242 = vmatpush.msra.mxu0 %v372
    %3243 = vmatpush.msra.mxu0 %v368
    %3244 = vmatpush.msra.mxu0 %v364
    %3245 = vmatpush.msra.mxu0 %v360
    %3246 = vmatpush.msra.mxu0 %v356
    %3247 = vmatmul.f32.gmra.mxu0 %v3230
    %v3248 = vpop.f32.mrf.mxu0
    %v3249 = vadd.f32 %v486, %v3248
    %3250 = vdwg.mxu0
    %3251 = vmatpush.msra.mxu0 %v480
    %3252 = vmatpush.msra.mxu0 %v476
    %3253 = vmatpush.msra.mxu0 %v472
    %3254 = vmatpush.msra.mxu0 %v468
    %3255 = vmatpush.msra.mxu0 %v464
    %3256 = vmatpush.msra.mxu0 %v460
    %3257 = vmatpush.msra.mxu0 %v456
    %3258 = vmatpush.msra.mxu0 %v452
    %3259 = vmatpush.msra.mxu0 %v448
    %3260 = vmatpush.msra.mxu0 %v444
    %3261 = vmatpush.msra.mxu0 %v440
    %3262 = vmatpush.msra.mxu0 %v436
    %3263 = vmatpush.msra.mxu0 %v432
    %3264 = vmatpush.msra.mxu0 %v428
    %3265 = vmatpush.msra.mxu0 %v424
    %3266 = vmatpush.msra.mxu0 %v420
    %3267 = vmatmul.f32.gmra.mxu0 %v3083
    %v3268 = vpop.f32.mrf.mxu0
    %v3269 = vadd.f32 %v3249, %v3268
    %3270 = vdwg.mxu0
    %3271 = vmatpush.msra.mxu0 %v417
    %3272 = vmatpush.msra.mxu0 %v413
    %3273 = vmatpush.msra.mxu0 %v409
    %3274 = vmatpush.msra.mxu0 %v405
    %3275 = vmatpush.msra.mxu0 %v401
    %3276 = vmatpush.msra.mxu0 %v397
    %3277 = vmatpush.msra.mxu0 %v393
    %3278 = vmatpush.msra.mxu0 %v389
    %3279 = vmatpush.msra.mxu0 %v385
    %3280 = vmatpush.msra.mxu0 %v381
    %3281 = vmatpush.msra.mxu0 %v377
    %3282 = vmatpush.msra.mxu0 %v373
    %3283 = vmatpush.msra.mxu0 %v369
    %3284 = vmatpush.msra.mxu0 %v365
    %3285 = vmatpush.msra.mxu0 %v361
    %3286 = vmatpush.msra.mxu0 %v357
    %3287 = vmatmul.f32.gmra.mxu0 %v3230
    %v3288 = vpop.f32.mrf.mxu0
    %v3289 = vadd.f32 %v487, %v3288
    %3290 = vdwg.mxu0
    %3291 = vmatpush.msra.mxu0 %v481
    %3292 = vmatpush.msra.mxu0 %v477
    %3293 = vmatpush.msra.mxu0 %v473
    %3294 = vmatpush.msra.mxu0 %v469
    %3295 = vmatpush.msra.mxu0 %v465
    %3296 = vmatpush.msra.mxu0 %v461
    %3297 = vmatpush.msra.mxu0 %v457
    %3298 = vmatpush.msra.mxu0 %v453
    %3299 = vmatpush.msra.mxu0 %v449
    %3300 = vmatpush.msra.mxu0 %v445
    %3301 = vmatpush.msra.mxu0 %v441
    %3302 = vmatpush.msra.mxu0 %v437
    %3303 = vmatpush.msra.mxu0 %v433
    %3304 = vmatpush.msra.mxu0 %v429
    %3305 = vmatpush.msra.mxu0 %v425
    %3306 = vmatpush.msra.mxu0 %v421
    %3307 = vmatmul.f32.gmra.mxu0 %v3083
    %v3308 = vpop.f32.mrf.mxu0
    %v3309 = vadd.f32 %v3289, %v3308
    %3310 = vdwg.mxu0
    %3311 = vmatpush.msra.mxu0 %v418
    %3312 = vmatpush.msra.mxu0 %v414
    %3313 = vmatpush.msra.mxu0 %v410
    %3314 = vmatpush.msra.mxu0 %v406
    %3315 = vmatpush.msra.mxu0 %v402
    %3316 = vmatpush.msra.mxu0 %v398
    %3317 = vmatpush.msra.mxu0 %v394
    %3318 = vmatpush.msra.mxu0 %v390
    %3319 = vmatpush.msra.mxu0 %v386
    %3320 = vmatpush.msra.mxu0 %v382
    %3321 = vmatpush.msra.mxu0 %v378
    %3322 = vmatpush.msra.mxu0 %v374
    %3323 = vmatpush.msra.mxu0 %v370
    %3324 = vmatpush.msra.mxu0 %v366
    %3325 = vmatpush.msra.mxu0 %v362
    %3326 = vmatpush.msra.mxu0 %v358
    %3327 = vmatmul.f32.gmra.mxu0 %v3230
    %v3328 = vpop.f32.mrf.mxu0
    %v3329 = vadd.f32 %v488, %v3328
    %3330 = vdwg.mxu0
    %3331 = vmatpush.msra.mxu0 %v482
    %3332 = vmatpush.msra.mxu0 %v478
    %3333 = vmatpush.msra.mxu0 %v474
    %3334 = vmatpush.msra.mxu0 %v470
    %3335 = vmatpush.msra.mxu0 %v466
    %3336 = vmatpush.msra.mxu0 %v462
    %3337 = vmatpush.msra.mxu0 %v458
    %3338 = vmatpush.msra.mxu0 %v454
    %3339 = vmatpush.msra.mxu0 %v450
    %3340 = vmatpush.msra.mxu0 %v446
    %3341 = vmatpush.msra.mxu0 %v442
    %3342 = vmatpush.msra.mxu0 %v438
    %3343 = vmatpush.msra.mxu0 %v434
    %3344 = vmatpush.msra.mxu0 %v430
    %3345 = vmatpush.msra.mxu0 %v426
    %3346 = vmatpush.msra.mxu0 %v422
    %3347 = vmatmul.f32.gmra.mxu0 %v3083
    %v3348 = vpop.f32.mrf.mxu0
    %v3349 = vadd.f32 %v3329, %v3348
    %3350 = vdwg.mxu0
    %3351 = vmatpush.msra.mxu0 %v419
    %3352 = vmatpush.msra.mxu0 %v415
    %3353 = vmatpush.msra.mxu0 %v411
    %3354 = vmatpush.msra.mxu0 %v407
    %3355 = vmatpush.msra.mxu0 %v403
    %3356 = vmatpush.msra.mxu0 %v399
    %3357 = vmatpush.msra.mxu0 %v395
    %3358 = vmatpush.msra.mxu0 %v391
    %3359 = vmatpush.msra.mxu0 %v387
    %3360 = vmatpush.msra.mxu0 %v383
    %3361 = vmatpush.msra.mxu0 %v379
    %3362 = vmatpush.msra.mxu0 %v375
    %3363 = vmatpush.msra.mxu0 %v371
    %3364 = vmatpush.msra.mxu0 %v367
    %3365 = vmatpush.msra.mxu0 %v363
    %3366 = vmatpush.msra.mxu0 %v359
    %3367 = vmatmul.f32.gmra.mxu0 %v3230
    %v3368 = vpop.f32.mrf.mxu0
    %v3369 = vadd.f32 %v489, %v3368
    %3370 = vdwg.mxu0
    %3371 = vmatpush.msra.mxu0 %v483
    %3372 = vmatpush.msra.mxu0 %v479
    %3373 = vmatpush.msra.mxu0 %v475
    %3374 = vmatpush.msra.mxu0 %v471
    %3375 = vmatpush.msra.mxu0 %v467
    %3376 = vmatpush.msra.mxu0 %v463
    %3377 = vmatpush.msra.mxu0 %v459
    %3378 = vmatpush.msra.mxu0 %v455
    %3379 = vmatpush.msra.mxu0 %v451
    %3380 = vmatpush.msra.mxu0 %v447
    %3381 = vmatpush.msra.mxu0 %v443
    %3382 = vmatpush.msra.mxu0 %v439
    %3383 = vmatpush.msra.mxu0 %v435
    %3384 = vmatpush.msra.mxu0 %v431
    %3385 = vmatpush.msra.mxu0 %v427
    %3386 = vmatpush.msra.mxu0 %v423
    %3387 = vmatmul.f32.gmra.mxu0 %v3083
    %v3388 = vpop.f32.mrf.mxu0
    %v3389 = vadd.f32 %v3369, %v3388
    %3390 = vdwg.mxu0
    %v3391 = vxor.u32 %v3269, 2147483648
    %v3392 = vmul.f32 %v3391, 1.442695
    %v3393 = vpow.pop %v3392
    %v3394 = vadd.f32 %v3393, 1.0
    %v3395 = vrcp.pop %v3394
    %v3396 = vmul.f32 %v3394, %v3395
    %v3397 = vsub.f32 1.0, %v3396
    %v3398 = vmul.f32 %v3395, %v3397
    %v3399 = vadd.f32 %v3395, %v3398
    %vm3400 = vweird.f32 %v3394
    %vm3401 = vweird.f32 %v3395
    %vm3402 = vmor %vm3400, %vm3401
    %v3403 = vsel %vm3402, %v3395, %v3399
    %v3404 = vand.u32 2147483647, %v3394
    %vm3405 = vcmp.eq.f32.partialorder %v3404, 8.507059e+37
    %v3406 = vand.u32 %v3394, 2147483648
    %v3407 = vor.u32 1.1754944e-38, %v3406
    %v3408 = vsel %vm3405, %v3407, %v3403
    %v3409 = vmul.f32 1.0, %v3408
    %v3410 = vxor.u32 %v3309, 2147483648
    %v3411 = vmul.f32 %v3410, 1.442695
    %v3412 = vpow.pop %v3411
    %v3413 = vadd.f32 %v3412, 1.0
    %v3414 = vrcp.pop %v3413
    %v3415 = vmul.f32 %v3413, %v3414
    %v3416 = vsub.f32 1.0, %v3415
    %v3417 = vmul.f32 %v3414, %v3416
    %v3418 = vadd.f32 %v3414, %v3417
    %vm3419 = vweird.f32 %v3413
    %vm3420 = vweird.f32 %v3414
    %vm3421 = vmor %vm3419, %vm3420
    %v3422 = vsel %vm3421, %v3414, %v3418
    %v3423 = vand.u32 2147483647, %v3413
    %vm3424 = vcmp.eq.f32.partialorder %v3423, 8.507059e+37
    %v3425 = vand.u32 %v3413, 2147483648
    %v3426 = vor.u32 1.1754944e-38, %v3425
    %v3427 = vsel %vm3424, %v3426, %v3422
    %v3428 = vmul.f32 1.0, %v3427
    %v3429 = vtanh.pop %v3349
    %v3430 = vxor.u32 %v3389, 2147483648
    %v3431 = vmul.f32 %v3430, 1.442695
    %v3432 = vpow.pop %v3431
    %v3433 = vadd.f32 %v3432, 1.0
    %v3434 = vrcp.pop %v3433
    %v3435 = vmul.f32 %v3433, %v3434
    %v3436 = vsub.f32 1.0, %v3435
    %v3437 = vmul.f32 %v3434, %v3436
    %v3438 = vadd.f32 %v3434, %v3437
    %vm3439 = vweird.f32 %v3433
    %vm3440 = vweird.f32 %v3434
    %vm3441 = vmor %vm3439, %vm3440
    %v3442 = vsel %vm3441, %v3434, %v3438
    %v3443 = vand.u32 2147483647, %v3433
    %vm3444 = vcmp.eq.f32.partialorder %v3443, 8.507059e+37
    %v3445 = vand.u32 %v3433, 2147483648
    %v3446 = vor.u32 1.1754944e-38, %v3445
    %v3447 = vsel %vm3444, %v3446, %v3442
    %v3448 = vmul.f32 1.0, %v3447
    %v3449 = vmul.f32 %v3428, %v3081
    %v3450 = vmul.f32 %v3409, %v3429
    %v3451 = vadd.f32 %v3449, %v3450
    %v3452 = vtanh.pop %v3451
    %v3453 = vmul.f32 %v3448, %v3452
    %v3454 = vld [vmem:[#allocation7] sm:$0xff]
    %v3455 = vld [vmem:[#allocation7 + $0x8] sm:$0xff]
    %v3456 = vld [vmem:[#allocation7 + $0x10] sm:$0xff]
    %v3457 = vld [vmem:[#allocation7 + $0x18] sm:$0xff]
    %v3458 = vld [vmem:[#allocation7 + $0x20] sm:$0xff]
    %v3459 = vld [vmem:[#allocation7 + $0x28] sm:$0xff]
    %v3460 = vld [vmem:[#allocation7 + $0x30] sm:$0xff]
    %v3461 = vld [vmem:[#allocation7 + $0x38] sm:$0xff]
    %v3462 = vld [vmem:[#allocation7 + $0x40] sm:$0xff]
    %v3463 = vld [vmem:[#allocation7 + $0x48] sm:$0xff]
    %v3464 = vld [vmem:[#allocation7 + $0x50] sm:$0xff]
    %v3465 = vld [vmem:[#allocation7 + $0x58] sm:$0xff]
    %v3466 = vld [vmem:[#allocation7 + $0x60] sm:$0xff]
    %v3467 = vld [vmem:[#allocation7 + $0x68] sm:$0xff]
    %v3468 = vld [vmem:[#allocation7 + $0x70] sm:$0xff]
    %v3469 = vld [vmem:[#allocation7 + $0x78] sm:$0xff]
    %v3470 = vld [vmem:[%s7] sm:$0x1]
    %v3472 = vperm.slane %v3470, 0
    %3474 = vmatpush.msra.mxu0 %v3469
    %3475 = vmatpush.msra.mxu0 %v3468
    %3476 = vmatpush.msra.mxu0 %v3467
    %3477 = vmatpush.msra.mxu0 %v3466
    %3478 = vmatpush.msra.mxu0 %v3465
    %3479 = vmatpush.msra.mxu0 %v3464
    %3480 = vmatpush.msra.mxu0 %v3463
    %3481 = vmatpush.msra.mxu0 %v3462
    %3482 = vmatpush.msra.mxu0 %v3461
    %3483 = vmatpush.msra.mxu0 %v3460
    %3484 = vmatpush.msra.mxu0 %v3459
    %3485 = vmatpush.msra.mxu0 %v3458
    %3486 = vmatpush.msra.mxu0 %v3457
    %3487 = vmatpush.msra.mxu0 %v3456
    %3488 = vmatpush.msra.mxu0 %v3455
    %3489 = vmatpush.msra.mxu0 %v3454
    %3490 = vmatmul.f32.gmra.mxu0 %v3453
    %v3491 = vpop.f32.mrf.mxu0
    %v3492 = vadd.f32 %v3472, %v3491
    %3493 = vdwg.mxu0
    %3494 = vst [vmem:[#allocation8] sm:$0xff] %v3492
    // Predicated region
    $region46: #{tpu_custom_call.1} parent=1 // pred_check
      _
    $region47: #{tpu_custom_call.1} parent=1 // pred_check_branch
      %3496 = sbr.rel (0) target = $region49
    $region48: #{tpu_custom_call.1} parent=1 // pred_region
      %3498 = vsyncadd [#allocation4], 0
      %s3500 = sshll.u32 [#allocation8], 4
      %s3501 = int_to_ptr.vmem [resolvable:$true] %s3500
      %s3502 = sshll.u32 %s8, 4
      %s3503 = int_to_ptr.hbm [resolvable:$true] %s3502
      %3505 = dma.vmem_to_hbm [thread:$0]  %s3501, 128, %s3503, [#allocation4]
    $region49: #{tpu_custom_call.1} parent=1 // pred_fallthru
      _
    // Predicated region
    $region50: #{tpu_custom_call.1} parent=1 // pred_check
      _
    $region51: #{tpu_custom_call.1} parent=1 // pred_check_branch
      %3507 = sbr.rel (0) target = $region53
    $region52: #{tpu_custom_call.1} parent=1 // pred_region
      %3509 = dma.done [#allocation4], 128
    $region53: #{tpu_custom_call.1} parent=1 // pred_fallthru
      _
    %3510 = vsyncpa [#allocation3], 1
    %3511 = vsyncpa [#allocation6], 1
    %3512 = vsyncpa [#allocation4], 1

</llo_original>
